<compile_context>
chip_gen: v6e
topology: v6e:2x2x1
jax: 0.10.0
libtpu: 0.0.40
codegen_flags: <defaults>
</compile_context>

<pallas_src>
import math

import jax
import jax.numpy as jnp
from jax.experimental import pallas as pl
from jax.experimental.pallas import tpu as pltpu

INPUT_DIM = 768
LATENT_DIM = 5
NUM_CLASSES = 3
CLS_HIDDEN = max(16, LATENT_DIM // 2)   # = 16

LAT_PAD = 128       # latent dim padded to a full lane group
CLS_HID_PAD = 128   # classifier hidden padded
ZL_PAD = 128        # combined z/logits output width
LOGIT_OFF = 8       # logits live in lanes [LOGIT_OFF, LOGIT_OFF + NUM_CLASSES)

SUBLANE = 16        # bf16 sublane packing granularity


def _device_kind():
    try:
        return jax.devices()[0].device_kind.lower()
    except Exception:
        return ""


def _make_kernel(bf16_valu):
    """Build the fused forward kernel. `bf16_valu` is a compile-time flag selecting
    bf16 bias-add/ReLU (v6e/v7x) vs f32 (v5*)."""
    f32 = jnp.float32
    bf16 = jnp.bfloat16

    def hidden(a_bf, w_ref, b_ref):
        acc = jnp.dot(a_bf, w_ref[...], preferred_element_type=f32)
        if bf16_valu:
            # bias + ReLU on the bf16 VALU (halves elementwise slot pressure)
            return jnp.maximum(acc.astype(bf16) + b_ref[...].astype(bf16), 0.0)
        return jnp.maximum(acc + b_ref[...], 0.0).astype(bf16)

    def kernel(x_ref,
               w1, b1, w2, b2, w3, b3,      # encoder
               w4, b4, w5, b5, w6, b6,      # decoder
               wc1, bc1, wc2, bc2,          # classifier
               recon_ref, zl_ref):
        # TODO(synk): nn.Dropout(0.3) is identity here (inference/eval semantics).
        x = x_ref[...].astype(bf16)                                   # (bm, 768)

        # ----- encoder: 768 -> 512 -> 256 -> latent (padded to 128 lanes) -----
        h = hidden(x, w1, b1)
        h = hidden(h, w2, b2)
        z = jnp.dot(h, w3[...], preferred_element_type=f32) + b3[...]  # f32; lanes 5.. == 0
        z_bf = z.astype(bf16)   # decoder/classifier consume bf16-rounded z (doc'd deviation)

        # ----- decoder: latent -> 256 -> 512 -> 768 -----
        d = hidden(z_bf, w4, b4)
        d = hidden(d, w5, b5)
        recon = jnp.dot(d, w6[...], preferred_element_type=f32) + b6[...]

        # ----- classifier: latent -> 16 (padded) -> 3 (placed in lanes 8..10) -----
        c = hidden(z_bf, wc1, bc1)
        logits = jnp.dot(c, wc2[...], preferred_element_type=f32) + bc2[...]

        recon_ref[...] = recon.astype(recon_ref.dtype)                 # bf16 writeback
        # z occupies lanes 0..4, logits lanes 8..10; all other lanes are exact zeros,
        # so a plain add packs both into a single lane-dense output tile.
        zl_ref[...] = (z + logits).astype(zl_ref.dtype)

    return kernel


def init_params(seed=0):
    """Deterministic PyTorch-style init (uniform +/- 1/sqrt(fan_in)).

    Returns (kernel_params, true_params): kernel_params are zero-padded, lane-aligned
    bf16 weights / f32 biases (the last classifier layer's columns are shifted to
    LOGIT_OFF); true_params are the unpadded f32 (w, b) pairs for the JAX reference.
    """
    key = jax.random.PRNGKey(seed)
    layer_dims = [
        (INPUT_DIM, 512), (512, 256), (256, LATENT_DIM),        # encoder
        (LATENT_DIM, 256), (256, 512), (512, INPUT_DIM),        # decoder
        (LATENT_DIM, CLS_HIDDEN), (CLS_HIDDEN, NUM_CLASSES),    # classifier
    ]
    pad_dims = [
        (INPUT_DIM, 512), (512, 256), (256, LAT_PAD),
        (LAT_PAD, 256), (256, 512), (512, INPUT_DIM),
        (LAT_PAD, CLS_HID_PAD), (CLS_HID_PAD, ZL_PAD),
    ]
    col_off = [0, 0, 0, 0, 0, 0, 0, LOGIT_OFF]   # final logits land in lanes 8..10

    params, true_params = [], []
    for (fan_in, fan_out), (pin, pout), off in zip(layer_dims, pad_dims, col_off):
        key, kw, kb = jax.random.split(key, 3)
        bound = 1.0 / math.sqrt(fan_in)
        w = jax.random.uniform(kw, (fan_in, fan_out), jnp.float32, -bound, bound)
        b = jax.random.uniform(kb, (fan_out,), jnp.float32, -bound, bound)
        w_p = (jnp.zeros((pin, pout), jnp.bfloat16)
               .at[:fan_in, off:off + fan_out].set(w.astype(jnp.bfloat16)))
        b_p = jnp.zeros((1, pout), jnp.float32).at[0, off:off + fan_out].set(b)
        params += [w_p, b_p]
        true_params.append((w, b))
    return params, true_params


def _pick_bm(B_eff, bm_cap, multi_tc):
    """Batch tile. One big tile on single-TC chips; only split into 256-row tiles on
    multi-TC chips (v7x) when both halves stay MXU-full."""
    if multi_tc and B_eff >= 2 * 256:
        return min(bm_cap, 256)
    if B_eff >= bm_cap:
        return bm_cap
    return max(SUBLANE, (B_eff // SUBLANE) * SUBLANE)


def brain_state_forward(x, params, bm=512, out_dtype=jnp.float32):
    """x: (B, 768). Returns (x_recon (B,768), z (B,5), logits (B,3)) in `out_dtype`."""
    B = x.shape[0]
    kind = _device_kind()
    multi_tc = ("v7" in kind) or ("7x" in kind)   # 2 TensorCores per chip
    bf16_valu = "v5" not in kind                  # v5* has no bf16 VPU

    x_in = x
    B_eff = B
    if B < SUBLANE:
        # tiny batch: pad to one sublane-aligned tile (< 16 rows, negligible copy)
        x_in = jnp.zeros((SUBLANE, INPUT_DIM), x.dtype).at[:B].set(x)
        B_eff = SUBLANE

    bm = _pick_bm(B_eff, bm, multi_tc)
    grid = pl.cdiv(B_eff, bm)   # last block may be partial; ops are row-independent

    # x tiled over the batch; weights/biases resident and single-buffered.
    in_specs = [pl.BlockSpec((bm, INPUT_DIM), lambda i: (i, 0))]
    in_specs += [
        pl.BlockSpec(p.shape, lambda i: (0, 0), pipeline_mode=pl.Buffered(1))
        for p in params
    ]

    out_shapes = (
        jax.ShapeDtypeStruct((B_eff, INPUT_DIM), jnp.bfloat16),
        jax.ShapeDtypeStruct((B_eff, ZL_PAD), jnp.bfloat16),
    )
    out_specs = (
        pl.BlockSpec((bm, INPUT_DIM), lambda i: (i, 0)),
        pl.BlockSpec((bm, ZL_PAD), lambda i: (i, 0)),
    )

    # Advisory cost estimate so XLA can schedule surrounding ops around the call.
    flops = 2 * B_eff * (
        INPUT_DIM * 512 + 512 * 256 + 256 * LATENT_DIM
        + LATENT_DIM * 256 + 256 * 512 + 512 * INPUT_DIM
        + LATENT_DIM * CLS_HIDDEN + CLS_HIDDEN * NUM_CLASSES)
    weight_bytes = sum(int(p.size) * p.dtype.itemsize for p in params)
    bytes_accessed = weight_bytes + B_eff * (
        INPUT_DIM * x_in.dtype.itemsize    # x in
        + INPUT_DIM * 2                    # recon out (bf16)
        + ZL_PAD * 2)                      # packed z/logits out (bf16)

    recon_p, zl_p = pl.pallas_call(
        _make_kernel(bf16_valu),
        out_shape=out_shapes,
        grid_spec=pltpu.PrefetchScalarGridSpec(
            num_scalar_prefetch=0,
            grid=(grid,),
            in_specs=in_specs,
            out_specs=out_specs,
        ),
        compiler_params=pltpu.CompilerParams(
            dimension_semantics=("parallel",),
            vmem_limit_bytes=32 << 20,   # footprint ~6-12 MB even at bm=512
        ),
        cost_estimate=pl.CostEstimate(
            flops=flops, transcendentals=0, bytes_accessed=bytes_accessed),
    )(x_in, *params)

    recon = recon_p[:B].astype(out_dtype)
    z = zl_p[:B, :LATENT_DIM].astype(out_dtype)
    logits = zl_p[:B, LOGIT_OFF:LOGIT_OFF + NUM_CLASSES].astype(out_dtype)
    return recon, z, logits


def _reference_forward(x, true_params):
    """Plain-JAX f32 reference mirroring the PyTorch module (eval mode)."""
    (w1, b1), (w2, b2), (w3, b3), (w4, b4), (w5, b5), (w6, b6), (wc1, bc1), (wc2, bc2) = true_params
    h = jnp.maximum(x @ w1 + b1, 0.0)
    h = jnp.maximum(h @ w2 + b2, 0.0)
    z = h @ w3 + b3
    d = jnp.maximum(z @ w4 + b4, 0.0)
    d = jnp.maximum(d @ w5 + b5, 0.0)
    recon = d @ w6 + b6
    c = jnp.maximum(z @ wc1 + bc1, 0.0)
    logits = c @ wc2 + bc2
    return recon, z, logits


if __name__ == "__main__":
    params, true_params = init_params(seed=0)

    batch = 24   # ragged vs the 16-row sublane granule -> exercises partial last block
    x = jax.random.normal(jax.random.PRNGKey(0), (batch, INPUT_DIM), jnp.float32)

    recon, z, logits = brain_state_forward(x, params)
    jax.block_until_ready((recon, z, logits))

    # sanity check against the plain-JAX f32 reference
    r_ref, z_ref, l_ref = _reference_forward(x, true_params)
    assert recon.shape == (batch, INPUT_DIM)
    assert z.shape == (batch, LATENT_DIM)
    assert logits.shape == (batch, NUM_CLASSES)
    # kernel uses bf16 weights/activations (f32 accumulation) + bf16 writeback
    assert jnp.allclose(recon, r_ref, atol=3e-2, rtol=3e-2)
    assert jnp.allclose(z, z_ref, atol=3e-2, rtol=3e-2)
    assert jnp.allclose(logits, l_ref, atol=3e-2, rtol=3e-2)

    print("KERNEL_OK")
</pallas_src>

<mosaic_0001>
module attributes {stable_mosaic.version = 11 : i64} {
  func.func @kernel(%arg0: i32, %arg1: memref<16x768xf32, #tpu.memory_space<vmem>>, %arg2: memref<768x512xbf16, #tpu.memory_space<vmem>>, %arg3: memref<1x512xf32, #tpu.memory_space<vmem>>, %arg4: memref<512x256xbf16, #tpu.memory_space<vmem>>, %arg5: memref<1x256xf32, #tpu.memory_space<vmem>>, %arg6: memref<256x128xbf16, #tpu.memory_space<vmem>>, %arg7: memref<1x128xf32, #tpu.memory_space<vmem>>, %arg8: memref<128x256xbf16, #tpu.memory_space<vmem>>, %arg9: memref<1x256xf32, #tpu.memory_space<vmem>>, %arg10: memref<256x512xbf16, #tpu.memory_space<vmem>>, %arg11: memref<1x512xf32, #tpu.memory_space<vmem>>, %arg12: memref<512x768xbf16, #tpu.memory_space<vmem>>, %arg13: memref<1x768xf32, #tpu.memory_space<vmem>>, %arg14: memref<128x128xbf16, #tpu.memory_space<vmem>>, %arg15: memref<1x128xf32, #tpu.memory_space<vmem>>, %arg16: memref<128x128xbf16, #tpu.memory_space<vmem>>, %arg17: memref<1x128xf32, #tpu.memory_space<vmem>>, %arg18: memref<16x768xbf16, #tpu.memory_space<vmem>>, %arg19: memref<16x128xbf16, #tpu.memory_space<vmem>>) attributes {dimension_semantics = [#tpu.dimension_semantics<parallel>], iteration_bounds = array<i64: 2>, scalar_prefetch = 0 : i64, scratch_operands = 0 : i64, tpu.core_type = #tpu.core_type<tc>, window_params = [{transform_indices = @transform_0, window_bounds = array<i64: 16, 768>}, {pipeline_mode = #tpu.pipeline_mode<synchronous>, transform_indices = @transform_1, window_bounds = array<i64: 768, 512>}, {pipeline_mode = #tpu.pipeline_mode<synchronous>, transform_indices = @transform_2, window_bounds = array<i64: 1, 512>}, {pipeline_mode = #tpu.pipeline_mode<synchronous>, transform_indices = @transform_3, window_bounds = array<i64: 512, 256>}, {pipeline_mode = #tpu.pipeline_mode<synchronous>, transform_indices = @transform_4, window_bounds = array<i64: 1, 256>}, {pipeline_mode = #tpu.pipeline_mode<synchronous>, transform_indices = @transform_5, window_bounds = array<i64: 256, 128>}, {pipeline_mode = #tpu.pipeline_mode<synchronous>, transform_indices = @transform_6, window_bounds = array<i64: 1, 128>}, {pipeline_mode = #tpu.pipeline_mode<synchronous>, transform_indices = @transform_7, window_bounds = array<i64: 128, 256>}, {pipeline_mode = #tpu.pipeline_mode<synchronous>, transform_indices = @transform_8, window_bounds = array<i64: 1, 256>}, {pipeline_mode = #tpu.pipeline_mode<synchronous>, transform_indices = @transform_9, window_bounds = array<i64: 256, 512>}, {pipeline_mode = #tpu.pipeline_mode<synchronous>, transform_indices = @transform_10, window_bounds = array<i64: 1, 512>}, {pipeline_mode = #tpu.pipeline_mode<synchronous>, transform_indices = @transform_11, window_bounds = array<i64: 512, 768>}, {pipeline_mode = #tpu.pipeline_mode<synchronous>, transform_indices = @transform_12, window_bounds = array<i64: 1, 768>}, {pipeline_mode = #tpu.pipeline_mode<synchronous>, transform_indices = @transform_13, window_bounds = array<i64: 128, 128>}, {pipeline_mode = #tpu.pipeline_mode<synchronous>, transform_indices = @transform_14, window_bounds = array<i64: 1, 128>}, {pipeline_mode = #tpu.pipeline_mode<synchronous>, transform_indices = @transform_15, window_bounds = array<i64: 128, 128>}, {pipeline_mode = #tpu.pipeline_mode<synchronous>, transform_indices = @transform_16, window_bounds = array<i64: 1, 128>}, {transform_indices = @transform_17, window_bounds = array<i64: 16, 768>}, {transform_indices = @transform_18, window_bounds = array<i64: 16, 128>}]} {
    %c0 = arith.constant 0 : index
    %c0_0 = arith.constant 0 : index
    %0 = vector.load %arg1[%c0, %c0_0] : memref<16x768xf32, #tpu.memory_space<vmem>>, vector<16x768xf32>
    %1 = arith.truncf %0 : vector<16x768xf32> to vector<16x768xbf16>
    %c0_1 = arith.constant 0 : index
    %c0_2 = arith.constant 0 : index
    %2 = vector.load %arg2[%c0_1, %c0_2] : memref<768x512xbf16, #tpu.memory_space<vmem>>, vector<768x512xbf16>
    %cst = arith.constant dense<0.000000e+00> : vector<16x512xf32>
    %3 = tpu.matmul %1, %2, %cst {dimension_numbers = #tpu.dot_dimension_numbers<[1], [0], [0], [1], [0, 0, 1, 1], [], []>} : vector<16x768xbf16>, vector<768x512xbf16>, vector<16x512xf32> -> vector<16x512xf32>
    %4 = arith.truncf %3 : vector<16x512xf32> to vector<16x512xbf16>
    %c0_3 = arith.constant 0 : index
    %c0_4 = arith.constant 0 : index
    %5 = vector.load %arg3[%c0_3, %c0_4] : memref<1x512xf32, #tpu.memory_space<vmem>>, vector<1x512xf32>
    %6 = arith.truncf %5 : vector<1x512xf32> to vector<1x512xbf16>
    %7 = vector.broadcast %6 : vector<1x512xbf16> to vector<16x512xbf16>
    %8 = arith.addf %4, %7 : vector<16x512xbf16>
    %cst_5 = arith.constant 0.000000e+00 : bf16
    %9 = vector.broadcast %cst_5 : bf16 to vector<16x512xbf16>
    %10 = arith.maximumf %8, %9 : vector<16x512xbf16>
    %c0_6 = arith.constant 0 : index
    %c0_7 = arith.constant 0 : index
    %11 = vector.load %arg4[%c0_6, %c0_7] : memref<512x256xbf16, #tpu.memory_space<vmem>>, vector<512x256xbf16>
    %cst_8 = arith.constant dense<0.000000e+00> : vector<16x256xf32>
    %12 = tpu.matmul %10, %11, %cst_8 {dimension_numbers = #tpu.dot_dimension_numbers<[1], [0], [0], [1], [0, 0, 1, 1], [], []>} : vector<16x512xbf16>, vector<512x256xbf16>, vector<16x256xf32> -> vector<16x256xf32>
    %13 = arith.truncf %12 : vector<16x256xf32> to vector<16x256xbf16>
    %c0_9 = arith.constant 0 : index
    %c0_10 = arith.constant 0 : index
    %14 = vector.load %arg5[%c0_9, %c0_10] : memref<1x256xf32, #tpu.memory_space<vmem>>, vector<1x256xf32>
    %15 = arith.truncf %14 : vector<1x256xf32> to vector<1x256xbf16>
    %16 = vector.broadcast %15 : vector<1x256xbf16> to vector<16x256xbf16>
    %17 = arith.addf %13, %16 : vector<16x256xbf16>
    %cst_11 = arith.constant 0.000000e+00 : bf16
    %18 = vector.broadcast %cst_11 : bf16 to vector<16x256xbf16>
    %19 = arith.maximumf %17, %18 : vector<16x256xbf16>
    %c0_12 = arith.constant 0 : index
    %c0_13 = arith.constant 0 : index
    %20 = vector.load %arg6[%c0_12, %c0_13] : memref<256x128xbf16, #tpu.memory_space<vmem>>, vector<256x128xbf16>
    %cst_14 = arith.constant dense<0.000000e+00> : vector<16x128xf32>
    %21 = tpu.matmul %19, %20, %cst_14 {dimension_numbers = #tpu.dot_dimension_numbers<[1], [0], [0], [1], [0, 0, 1, 1], [], []>} : vector<16x256xbf16>, vector<256x128xbf16>, vector<16x128xf32> -> vector<16x128xf32>
    %c0_15 = arith.constant 0 : index
    %c0_16 = arith.constant 0 : index
    %22 = vector.load %arg7[%c0_15, %c0_16] : memref<1x128xf32, #tpu.memory_space<vmem>>, vector<1x128xf32>
    %23 = vector.broadcast %22 : vector<1x128xf32> to vector<16x128xf32>
    %24 = arith.addf %21, %23 : vector<16x128xf32>
    %25 = arith.truncf %24 : vector<16x128xf32> to vector<16x128xbf16>
    %c0_17 = arith.constant 0 : index
    %c0_18 = arith.constant 0 : index
    %26 = vector.load %arg8[%c0_17, %c0_18] : memref<128x256xbf16, #tpu.memory_space<vmem>>, vector<128x256xbf16>
    %cst_19 = arith.constant dense<0.000000e+00> : vector<16x256xf32>
    %27 = tpu.matmul %25, %26, %cst_19 {dimension_numbers = #tpu.dot_dimension_numbers<[1], [0], [0], [1], [0, 0, 1, 1], [], []>} : vector<16x128xbf16>, vector<128x256xbf16>, vector<16x256xf32> -> vector<16x256xf32>
    %28 = arith.truncf %27 : vector<16x256xf32> to vector<16x256xbf16>
    %c0_20 = arith.constant 0 : index
    %c0_21 = arith.constant 0 : index
    %29 = vector.load %arg9[%c0_20, %c0_21] : memref<1x256xf32, #tpu.memory_space<vmem>>, vector<1x256xf32>
    %30 = arith.truncf %29 : vector<1x256xf32> to vector<1x256xbf16>
    %31 = vector.broadcast %30 : vector<1x256xbf16> to vector<16x256xbf16>
    %32 = arith.addf %28, %31 : vector<16x256xbf16>
    %cst_22 = arith.constant 0.000000e+00 : bf16
    %33 = vector.broadcast %cst_22 : bf16 to vector<16x256xbf16>
    %34 = arith.maximumf %32, %33 : vector<16x256xbf16>
    %c0_23 = arith.constant 0 : index
    %c0_24 = arith.constant 0 : index
    %35 = vector.load %arg10[%c0_23, %c0_24] : memref<256x512xbf16, #tpu.memory_space<vmem>>, vector<256x512xbf16>
    %cst_25 = arith.constant dense<0.000000e+00> : vector<16x512xf32>
    %36 = tpu.matmul %34, %35, %cst_25 {dimension_numbers = #tpu.dot_dimension_numbers<[1], [0], [0], [1], [0, 0, 1, 1], [], []>} : vector<16x256xbf16>, vector<256x512xbf16>, vector<16x512xf32> -> vector<16x512xf32>
    %37 = arith.truncf %36 : vector<16x512xf32> to vector<16x512xbf16>
    %c0_26 = arith.constant 0 : index
    %c0_27 = arith.constant 0 : index
    %38 = vector.load %arg11[%c0_26, %c0_27] : memref<1x512xf32, #tpu.memory_space<vmem>>, vector<1x512xf32>
    %39 = arith.truncf %38 : vector<1x512xf32> to vector<1x512xbf16>
    %40 = vector.broadcast %39 : vector<1x512xbf16> to vector<16x512xbf16>
    %41 = arith.addf %37, %40 : vector<16x512xbf16>
    %cst_28 = arith.constant 0.000000e+00 : bf16
    %42 = vector.broadcast %cst_28 : bf16 to vector<16x512xbf16>
    %43 = arith.maximumf %41, %42 : vector<16x512xbf16>
    %c0_29 = arith.constant 0 : index
    %c0_30 = arith.constant 0 : index
    %44 = vector.load %arg12[%c0_29, %c0_30] : memref<512x768xbf16, #tpu.memory_space<vmem>>, vector<512x768xbf16>
    %cst_31 = arith.constant dense<0.000000e+00> : vector<16x768xf32>
    %45 = tpu.matmul %43, %44, %cst_31 {dimension_numbers = #tpu.dot_dimension_numbers<[1], [0], [0], [1], [0, 0, 1, 1], [], []>} : vector<16x512xbf16>, vector<512x768xbf16>, vector<16x768xf32> -> vector<16x768xf32>
    %c0_32 = arith.constant 0 : index
    %c0_33 = arith.constant 0 : index
    %46 = vector.load %arg13[%c0_32, %c0_33] : memref<1x768xf32, #tpu.memory_space<vmem>>, vector<1x768xf32>
    %47 = vector.broadcast %46 : vector<1x768xf32> to vector<16x768xf32>
    %48 = arith.addf %45, %47 : vector<16x768xf32>
    %c0_34 = arith.constant 0 : index
    %c0_35 = arith.constant 0 : index
    %49 = vector.load %arg14[%c0_34, %c0_35] : memref<128x128xbf16, #tpu.memory_space<vmem>>, vector<128x128xbf16>
    %cst_36 = arith.constant dense<0.000000e+00> : vector<16x128xf32>
    %50 = tpu.matmul %25, %49, %cst_36 {dimension_numbers = #tpu.dot_dimension_numbers<[1], [0], [0], [1], [0, 0, 1, 1], [], []>} : vector<16x128xbf16>, vector<128x128xbf16>, vector<16x128xf32> -> vector<16x128xf32>
    %51 = arith.truncf %50 : vector<16x128xf32> to vector<16x128xbf16>
    %c0_37 = arith.constant 0 : index
    %c0_38 = arith.constant 0 : index
    %52 = vector.load %arg15[%c0_37, %c0_38] : memref<1x128xf32, #tpu.memory_space<vmem>>, vector<1x128xf32>
    %53 = arith.truncf %52 : vector<1x128xf32> to vector<1x128xbf16>
    %54 = vector.broadcast %53 : vector<1x128xbf16> to vector<16x128xbf16>
    %55 = arith.addf %51, %54 : vector<16x128xbf16>
    %cst_39 = arith.constant 0.000000e+00 : bf16
    %56 = vector.broadcast %cst_39 : bf16 to vector<16x128xbf16>
    %57 = arith.maximumf %55, %56 : vector<16x128xbf16>
    %c0_40 = arith.constant 0 : index
    %c0_41 = arith.constant 0 : index
    %58 = vector.load %arg16[%c0_40, %c0_41] : memref<128x128xbf16, #tpu.memory_space<vmem>>, vector<128x128xbf16>
    %cst_42 = arith.constant dense<0.000000e+00> : vector<16x128xf32>
    %59 = tpu.matmul %57, %58, %cst_42 {dimension_numbers = #tpu.dot_dimension_numbers<[1], [0], [0], [1], [0, 0, 1, 1], [], []>} : vector<16x128xbf16>, vector<128x128xbf16>, vector<16x128xf32> -> vector<16x128xf32>
    %c0_43 = arith.constant 0 : index
    %c0_44 = arith.constant 0 : index
    %60 = vector.load %arg17[%c0_43, %c0_44] : memref<1x128xf32, #tpu.memory_space<vmem>>, vector<1x128xf32>
    %61 = vector.broadcast %60 : vector<1x128xf32> to vector<16x128xf32>
    %62 = arith.addf %59, %61 : vector<16x128xf32>
    %63 = arith.truncf %48 : vector<16x768xf32> to vector<16x768xbf16>
    %c0_45 = arith.constant 0 : index
    %c0_46 = arith.constant 0 : index
    %64 = vector.load %arg18[%c0_45, %c0_46] : memref<16x768xbf16, #tpu.memory_space<vmem>>, vector<16x768xbf16>
    tpu.vector_store %arg18[%c0_45, %c0_46], %63 {strides = array<i32>} : memref<16x768xbf16, #tpu.memory_space<vmem>>, vector<16x768xbf16>,
    %65 = arith.addf %24, %62 : vector<16x128xf32>
    %66 = arith.truncf %65 : vector<16x128xf32> to vector<16x128xbf16>
    %c0_47 = arith.constant 0 : index
    %c0_48 = arith.constant 0 : index
    %67 = vector.load %arg19[%c0_47, %c0_48] : memref<16x128xbf16, #tpu.memory_space<vmem>>, vector<16x128xbf16>
    tpu.vector_store %arg19[%c0_47, %c0_48], %66 {strides = array<i32>} : memref<16x128xbf16, #tpu.memory_space<vmem>>, vector<16x128xbf16>,
    return
  }
  func.func @transform_0(%arg0: i32) -> (i32, i32) {
    %c0_i32 = arith.constant 0 : i32
    %c0_i32_0 = arith.constant 0 : i32
    return %arg0, %c0_i32 : i32, i32
  }
  func.func @transform_1(%arg0: i32) -> (i32, i32) {
    %c0_i32 = arith.constant 0 : i32
    %c0_i32_0 = arith.constant 0 : i32
    %c0_i32_1 = arith.constant 0 : i32
    return %c0_i32, %c0_i32_0 : i32, i32
  }
  func.func @transform_2(%arg0: i32) -> (i32, i32) {
    %c0_i32 = arith.constant 0 : i32
    %c0_i32_0 = arith.constant 0 : i32
    %c0_i32_1 = arith.constant 0 : i32
    return %c0_i32, %c0_i32_0 : i32, i32
  }
  func.func @transform_3(%arg0: i32) -> (i32, i32) {
    %c0_i32 = arith.constant 0 : i32
    %c0_i32_0 = arith.constant 0 : i32
    %c0_i32_1 = arith.constant 0 : i32
    return %c0_i32, %c0_i32_0 : i32, i32
  }
  func.func @transform_4(%arg0: i32) -> (i32, i32) {
    %c0_i32 = arith.constant 0 : i32
    %c0_i32_0 = arith.constant 0 : i32
    %c0_i32_1 = arith.constant 0 : i32
    return %c0_i32, %c0_i32_0 : i32, i32
  }
  func.func @transform_5(%arg0: i32) -> (i32, i32) {
    %c0_i32 = arith.constant 0 : i32
    %c0_i32_0 = arith.constant 0 : i32
    %c0_i32_1 = arith.constant 0 : i32
    return %c0_i32, %c0_i32_0 : i32, i32
  }
  func.func @transform_6(%arg0: i32) -> (i32, i32) {
    %c0_i32 = arith.constant 0 : i32
    %c0_i32_0 = arith.constant 0 : i32
    %c0_i32_1 = arith.constant 0 : i32
    return %c0_i32, %c0_i32_0 : i32, i32
  }
  func.func @transform_7(%arg0: i32) -> (i32, i32) {
    %c0_i32 = arith.constant 0 : i32
    %c0_i32_0 = arith.constant 0 : i32
    %c0_i32_1 = arith.constant 0 : i32
    return %c0_i32, %c0_i32_0 : i32, i32
  }
  func.func @transform_8(%arg0: i32) -> (i32, i32) {
    %c0_i32 = arith.constant 0 : i32
    %c0_i32_0 = arith.constant 0 : i32
    %c0_i32_1 = arith.constant 0 : i32
    return %c0_i32, %c0_i32_0 : i32, i32
  }
  func.func @transform_9(%arg0: i32) -> (i32, i32) {
    %c0_i32 = arith.constant 0 : i32
    %c0_i32_0 = arith.constant 0 : i32
    %c0_i32_1 = arith.constant 0 : i32
    return %c0_i32, %c0_i32_0 : i32, i32
  }
  func.func @transform_10(%arg0: i32) -> (i32, i32) {
    %c0_i32 = arith.constant 0 : i32
    %c0_i32_0 = arith.constant 0 : i32
    %c0_i32_1 = arith.constant 0 : i32
    return %c0_i32, %c0_i32_0 : i32, i32
  }
  func.func @transform_11(%arg0: i32) -> (i32, i32) {
    %c0_i32 = arith.constant 0 : i32
    %c0_i32_0 = arith.constant 0 : i32
    %c0_i32_1 = arith.constant 0 : i32
    return %c0_i32, %c0_i32_0 : i32, i32
  }
  func.func @transform_12(%arg0: i32) -> (i32, i32) {
    %c0_i32 = arith.constant 0 : i32
    %c0_i32_0 = arith.constant 0 : i32
    %c0_i32_1 = arith.constant 0 : i32
    return %c0_i32, %c0_i32_0 : i32, i32
  }
  func.func @transform_13(%arg0: i32) -> (i32, i32) {
    %c0_i32 = arith.constant 0 : i32
    %c0_i32_0 = arith.constant 0 : i32
    %c0_i32_1 = arith.constant 0 : i32
    return %c0_i32, %c0_i32_0 : i32, i32
  }
  func.func @transform_14(%arg0: i32) -> (i32, i32) {
    %c0_i32 = arith.constant 0 : i32
    %c0_i32_0 = arith.constant 0 : i32
    %c0_i32_1 = arith.constant 0 : i32
    return %c0_i32, %c0_i32_0 : i32, i32
  }
  func.func @transform_15(%arg0: i32) -> (i32, i32) {
    %c0_i32 = arith.constant 0 : i32
    %c0_i32_0 = arith.constant 0 : i32
    %c0_i32_1 = arith.constant 0 : i32
    return %c0_i32, %c0_i32_0 : i32, i32
  }
  func.func @transform_16(%arg0: i32) -> (i32, i32) {
    %c0_i32 = arith.constant 0 : i32
    %c0_i32_0 = arith.constant 0 : i32
    %c0_i32_1 = arith.constant 0 : i32
    return %c0_i32, %c0_i32_0 : i32, i32
  }
  func.func @transform_17(%arg0: i32) -> (i32, i32) {
    %c0_i32 = arith.constant 0 : i32
    %c0_i32_0 = arith.constant 0 : i32
    return %arg0, %c0_i32 : i32, i32
  }
  func.func @transform_18(%arg0: i32) -> (i32, i32) {
    %c0_i32 = arith.constant 0 : i32
    %c0_i32_0 = arith.constant 0 : i32
    return %arg0, %c0_i32 : i32, i32
  }
}

</mosaic_0001>

<llo_original>
// kernel: tpu_custom_call.1
$region0: #{tpu_custom_call.1}
  #allocation0 [shape = 'u32[]', space=smem, size = 0x4, offset = 0x4, fixed_abs, tag = 'smem constant byte address 0x4 - core index']
  #allocation1 [shape = 'u32[144,128]{1,0:T(1,128)}', space=vmem, size = 0x12000, scoped, tag = 'internal scratch']
  %s0 = inlined_call_operand.hbm [shape: f32[24,768], index: 0, kind: input, shape index: {}]
  %s1 = inlined_call_operand.hbm [shape: bf16[768,512], index: 1, kind: input, shape index: {}]
  %s2 = inlined_call_operand.hbm [shape: f32[1,512], index: 2, kind: input, shape index: {}]
  %s3 = inlined_call_operand.hbm [shape: bf16[512,256], index: 3, kind: input, shape index: {}]
  %s4 = inlined_call_operand.vmem [shape: f32[1,256], index: 4, kind: input, shape index: {}]
  %s5 = inlined_call_operand.hbm [shape: bf16[256,128], index: 5, kind: input, shape index: {}]
  %s6 = inlined_call_operand.hbm [shape: f32[1,128], index: 6, kind: input, shape index: {}]
  %s7 = inlined_call_operand.hbm [shape: bf16[128,256], index: 7, kind: input, shape index: {}]
  %s8 = inlined_call_operand.vmem [shape: f32[1,256], index: 8, kind: input, shape index: {}]
  %s9 = inlined_call_operand.hbm [shape: bf16[256,512], index: 9, kind: input, shape index: {}]
  %s10 = inlined_call_operand.vmem [shape: f32[1,512], index: 10, kind: input, shape index: {}]
  %s11 = inlined_call_operand.hbm [shape: bf16[512,768], index: 11, kind: input, shape index: {}]
  %s12 = inlined_call_operand.vmem [shape: f32[1,768], index: 12, kind: input, shape index: {}]
  %s13 = inlined_call_operand.hbm [shape: bf16[128,128], index: 13, kind: input, shape index: {}]
  %s14 = inlined_call_operand.vmem [shape: f32[1,128], index: 14, kind: input, shape index: {}]
  %s15 = inlined_call_operand.hbm [shape: bf16[128,128], index: 15, kind: input, shape index: {}]
  %s16 = inlined_call_operand.vmem [shape: f32[1,128], index: 16, kind: input, shape index: {}]
  %s17 = inlined_call_operand.hbm [shape: bf16[24,768], index: 17, kind: output, shape index: {0}]
  %s18 = inlined_call_operand.hbm [shape: bf16[24,128], index: 18, kind: output, shape index: {1}]
  %19 = xla_tuple %s17, %s18
  %s20 = sld [smem:[#allocation0]]
  $region153: #{tpu_custom_call.1} parent=0
    _
  %s22 = ssub.s32 1, %s20
  %s23 = scalar_select 0, %s22, %s20
  $region1: #{tpu_custom_call.1} parent=0
    #allocation2 [shape = 'u8[98304]{0}', space=vmem, size = 0x18000, scoped, tag = 'input window, operand 0']
    #allocation3 [shape = 's32[2]{0}', space=sflag, size = 0x8, scoped, tag = 'scoped memory for tpu_custom_call.1']
    #allocation4 [shape = 's32[2]{0}', space=sflag, size = 0x8, scoped, tag = 'scoped memory for tpu_custom_call.1']
    #allocation5 [shape = 'u8[786432]{0}', space=vmem, size = 0xc0000, scoped, tag = 'input window, operand 1, single buffered']
    #allocation6 [shape = 's32[1]{0}', space=sflag, size = 0x4, scoped, tag = 'scoped memory for tpu_custom_call.1']
    #allocation7 [shape = 'u8[2048]{0}', space=vmem, size = 0x800, scoped, tag = 'input window, operand 2, single buffered']
    #allocation8 [shape = 'u8[262144]{0}', space=vmem, size = 0x40000, scoped, tag = 'input window, operand 3, single buffered']
    #allocation9 [shape = 's32[1]{0}', space=sflag, size = 0x4, scoped, tag = 'scoped memory for tpu_custom_call.1']
    #allocation10 [shape = 'u8[65536]{0}', space=vmem, size = 0x10000, scoped, tag = 'input window, operand 5, single buffered']
    #allocation11 [shape = 'u8[512]{0}', space=vmem, size = 0x400, scoped, tag = 'input window, operand 6, single buffered']
    #allocation12 [shape = 's32[1]{0}', space=sflag, size = 0x4, scoped, tag = 'scoped memory for tpu_custom_call.1']
    #allocation13 [shape = 'u8[65536]{0}', space=vmem, size = 0x10000, scoped, tag = 'input window, operand 7, single buffered']
    #allocation14 [shape = 'u8[262144]{0}', space=vmem, size = 0x40000, scoped, tag = 'input window, operand 9, single buffered']
    #allocation15 [shape = 's32[1]{0}', space=sflag, size = 0x4, scoped, tag = 'scoped memory for tpu_custom_call.1']
    #allocation16 [shape = 'u8[786432]{0}', space=vmem, size = 0xc0000, scoped, tag = 'input window, operand 11, single buffered']
    #allocation17 [shape = 'u8[32768]{0}', space=vmem, size = 0x8000, scoped, tag = 'input window, operand 13, single buffered']
    #allocation18 [shape = 's32[1]{0}', space=sflag, size = 0x4, scoped, tag = 'scoped memory for tpu_custom_call.1']
    #allocation19 [shape = 'u8[32768]{0}', space=vmem, size = 0x8000, scoped, tag = 'input window, operand 15, single buffered']
    #allocation20 [shape = 'u8[49152]{0}', space=vmem, size = 0xc000, scoped, tag = 'output window, operand 0']
    #allocation21 [shape = 'u8[8192]{0}', space=vmem, size = 0x2000, scoped, tag = 'output window, operand 1']
    #allocation22 [shape = 's32[2]{0}', space=sflag, size = 0x8, scoped, tag = 'scoped memory for tpu_custom_call.1']
    %24 = vsyncpa [#allocation3], 0
    %s25 = scalar_lea.sflag [#allocation3], 1
    %26 = vsyncpa %s25, 0
    %27 = vsyncpa [#allocation6], 0
    %28 = vsyncpa [#allocation9], 0
    %29 = vsyncpa [#allocation12], 0
    %30 = vsyncpa [#allocation15], 0
    %31 = vsyncpa [#allocation18], 0
    %32 = vsyncpa [#allocation4], 0
    %s33 = scalar_lea.sflag [#allocation4], 1
    %34 = vsyncpa %s33, 0
    %35 = vsyncpa [#allocation22], 0
    %s36 = scalar_lea.sflag [#allocation22], 1
    %37 = vsyncpa %s36, 0
    loop: start=0, step=1, limit=4
    $region2: #{tpu_custom_call.1} parent=1 // loop_pre_header
      _
    $region3: #{tpu_custom_call.1} parent=1 // loop_header
      %s39 = sphi 0, %s43
      %p40 = scmp.ge.s32.totalorder %s39, 4
      %s49 = sphi 0, %s51
      %s52 = sphi 0, %s49
      %s53 = sphi 0, %s52
      %s69 = sphi 0, %s53
      %s73 = sphi 0, %s73
      %s75 = sphi 0, %s73
      %s76 = sphi 0, %s75
      %s90 = sphi 0, %s76
      %s94 = sphi 0, %s94
      %s96 = sphi 0, %s94
      %s97 = sphi 0, %s96
      %s111 = sphi 0, %s97
      %s115 = sphi 0, %s115
      %s117 = sphi 0, %s115
      %s118 = sphi 0, %s117
      %s132 = sphi 0, %s118
      %s136 = sphi 0, %s136
      %s138 = sphi 0, %s136
      %s139 = sphi 0, %s138
      %s153 = sphi 0, %s139
      %s157 = sphi 0, %s157
      %s159 = sphi 0, %s157
      %s160 = sphi 0, %s159
      %s174 = sphi 0, %s160
      %s178 = sphi 0, %s178
      %s180 = sphi 0, %s178
      %s181 = sphi 0, %s180
      %s195 = sphi 0, %s181
      %s199 = sphi 0, %s199
      %s201 = sphi 0, %s199
      %s202 = sphi 0, %s201
      %s216 = sphi 0, %s202
      %s220 = sphi 0, %s220
      %s222 = sphi 0, %s220
      %s223 = sphi 0, %s222
      %s237 = sphi 0, %s223
      %s241 = sphi 0, %s241
      %s243 = sphi 0, %s241
      %s244 = sphi 0, %s243
      %s258 = sphi 0, %s244
      %s262 = sphi 0, %s262
      %s264 = sphi 0, %s262
      %s265 = sphi 0, %s264
      %s279 = sphi 0, %s265
      %s283 = sphi 0, %s283
      %s285 = sphi 0, %s283
      %s286 = sphi 0, %s285
      %s300 = sphi 0, %s286
      %s304 = sphi 0, %s304
      %s306 = sphi 0, %s304
      %s307 = sphi 0, %s306
      %s321 = sphi 0, %s307
      %s325 = sphi 0, %s325
      %s327 = sphi 0, %s325
      %s328 = sphi 0, %s327
      %s342 = sphi 0, %s328
      %s346 = sphi 0, %s346
      %s348 = sphi 0, %s346
      %s349 = sphi 0, %s348
      %s363 = sphi 0, %s349
      %s367 = sphi 0, %s367
      %s369 = sphi 0, %s367
      %s370 = sphi 0, %s369
      %s384 = sphi 0, %s370
      %s388 = sphi 0, %s388
      %s390 = sphi 0, %s388
      %s391 = sphi 0, %s390
      %s405 = sphi 0, %s391
      %s411 = sphi 0, %s413
      %s414 = sphi 0, %s411
      %s415 = sphi 0, %s414
      %s431 = sphi 0, %s415
      %s437 = sphi 0, %s439
      %s440 = sphi 0, %s437
      %s441 = sphi 0, %s440
      %s457 = sphi 0, %s441
    $region4: #{tpu_custom_call.1} parent=1 // loop_header_branch
      %42 = sbr.rel (%p40) target = $region8
    $region5: #{tpu_custom_call.1} parent=1 // loop_body
      %s44 = ssub.s32 %s39, 1
      %s45 = ssub.s32 %s39, 2
      %s46 = sadd.s32 %s39, 1
      %s47 = ssub.s32 %s39, %s46
      %p48 = scmp.eq.s32.totalorder %s47, 0
      %s50 = sadd.s32 %s49, 1
      %s51 = scalar_select %p48, %s49, %s50
      %p54 = pneg %p48
      %p55 = scmp.eq.s32.totalorder %s39, 1
      %p56 = por %p54, %p55
      %p57 = scmp.ne.s32.totalorder %s49, %s52
      %p58 = scmp.eq.s32.totalorder %s39, 0
      %p59 = por %p57, %p58
      %p60 = scmp.ne.s32.totalorder %s49, %s52
      %p61 = scmp.eq.s32.totalorder %s44, 1
      %p62 = por %p60, %p61
      %p63 = scmp.ne.s32.totalorder %s52, %s53
      %p64 = scmp.eq.s32.totalorder %s44, 0
      %p65 = por %p63, %p64
      %p66 = scmp.ne.s32.totalorder %s52, %s53
      %p67 = scmp.eq.s32.totalorder %s45, 1
      %p68 = por %p66, %p67
      %p70 = scmp.ne.s32.totalorder %s53, %s69
      %p71 = scmp.eq.s32.totalorder %s45, 0
      %p72 = por %p70, %p71
      %s74 = sadd.s32 %s73, 1
      %p77 = scmp.eq.s32.totalorder %s39, 1
      %p78 = scmp.ne.s32.totalorder %s73, %s75
      %p79 = scmp.eq.s32.totalorder %s39, 0
      %p80 = por %p78, %p79
      %p81 = scmp.ne.s32.totalorder %s73, %s75
      %p82 = scmp.eq.s32.totalorder %s44, 1
      %p83 = por %p81, %p82
      %p84 = scmp.ne.s32.totalorder %s75, %s76
      %p85 = scmp.eq.s32.totalorder %s44, 0
      %p86 = por %p84, %p85
      %p87 = scmp.ne.s32.totalorder %s75, %s76
      %p88 = scmp.eq.s32.totalorder %s45, 1
      %p89 = por %p87, %p88
      %p91 = scmp.ne.s32.totalorder %s76, %s90
      %p92 = scmp.eq.s32.totalorder %s45, 0
      %p93 = por %p91, %p92
      %s95 = sadd.s32 %s94, 1
      %p98 = scmp.eq.s32.totalorder %s39, 1
      %p99 = scmp.ne.s32.totalorder %s94, %s96
      %p100 = scmp.eq.s32.totalorder %s39, 0
      %p101 = por %p99, %p100
      %p102 = scmp.ne.s32.totalorder %s94, %s96
      %p103 = scmp.eq.s32.totalorder %s44, 1
      %p104 = por %p102, %p103
      %p105 = scmp.ne.s32.totalorder %s96, %s97
      %p106 = scmp.eq.s32.totalorder %s44, 0
      %p107 = por %p105, %p106
      %p108 = scmp.ne.s32.totalorder %s96, %s97
      %p109 = scmp.eq.s32.totalorder %s45, 1
      %p110 = por %p108, %p109
      %p112 = scmp.ne.s32.totalorder %s97, %s111
      %p113 = scmp.eq.s32.totalorder %s45, 0
      %p114 = por %p112, %p113
      %s116 = sadd.s32 %s115, 1
      %p119 = scmp.eq.s32.totalorder %s39, 1
      %p120 = scmp.ne.s32.totalorder %s115, %s117
      %p121 = scmp.eq.s32.totalorder %s39, 0
      %p122 = por %p120, %p121
      %p123 = scmp.ne.s32.totalorder %s115, %s117
      %p124 = scmp.eq.s32.totalorder %s44, 1
      %p125 = por %p123, %p124
      %p126 = scmp.ne.s32.totalorder %s117, %s118
      %p127 = scmp.eq.s32.totalorder %s44, 0
      %p128 = por %p126, %p127
      %p129 = scmp.ne.s32.totalorder %s117, %s118
      %p130 = scmp.eq.s32.totalorder %s45, 1
      %p131 = por %p129, %p130
      %p133 = scmp.ne.s32.totalorder %s118, %s132
      %p134 = scmp.eq.s32.totalorder %s45, 0
      %p135 = por %p133, %p134
      %s137 = sadd.s32 %s136, 1
      %p140 = scmp.eq.s32.totalorder %s39, 1
      %p141 = scmp.ne.s32.totalorder %s136, %s138
      %p142 = scmp.eq.s32.totalorder %s39, 0
      %p143 = por %p141, %p142
      %p144 = scmp.ne.s32.totalorder %s136, %s138
      %p145 = scmp.eq.s32.totalorder %s44, 1
      %p146 = por %p144, %p145
      %p147 = scmp.ne.s32.totalorder %s138, %s139
      %p148 = scmp.eq.s32.totalorder %s44, 0
      %p149 = por %p147, %p148
      %p150 = scmp.ne.s32.totalorder %s138, %s139
      %p151 = scmp.eq.s32.totalorder %s45, 1
      %p152 = por %p150, %p151
      %p154 = scmp.ne.s32.totalorder %s139, %s153
      %p155 = scmp.eq.s32.totalorder %s45, 0
      %p156 = por %p154, %p155
      %s158 = sadd.s32 %s157, 1
      %p161 = scmp.eq.s32.totalorder %s39, 1
      %p162 = scmp.ne.s32.totalorder %s157, %s159
      %p163 = scmp.eq.s32.totalorder %s39, 0
      %p164 = por %p162, %p163
      %p165 = scmp.ne.s32.totalorder %s157, %s159
      %p166 = scmp.eq.s32.totalorder %s44, 1
      %p167 = por %p165, %p166
      %p168 = scmp.ne.s32.totalorder %s159, %s160
      %p169 = scmp.eq.s32.totalorder %s44, 0
      %p170 = por %p168, %p169
      %p171 = scmp.ne.s32.totalorder %s159, %s160
      %p172 = scmp.eq.s32.totalorder %s45, 1
      %p173 = por %p171, %p172
      %p175 = scmp.ne.s32.totalorder %s160, %s174
      %p176 = scmp.eq.s32.totalorder %s45, 0
      %p177 = por %p175, %p176
      %s179 = sadd.s32 %s178, 1
      %p182 = scmp.eq.s32.totalorder %s39, 1
      %p183 = scmp.ne.s32.totalorder %s178, %s180
      %p184 = scmp.eq.s32.totalorder %s39, 0
      %p185 = por %p183, %p184
      %p186 = scmp.ne.s32.totalorder %s178, %s180
      %p187 = scmp.eq.s32.totalorder %s44, 1
      %p188 = por %p186, %p187
      %p189 = scmp.ne.s32.totalorder %s180, %s181
      %p190 = scmp.eq.s32.totalorder %s44, 0
      %p191 = por %p189, %p190
      %p192 = scmp.ne.s32.totalorder %s180, %s181
      %p193 = scmp.eq.s32.totalorder %s45, 1
      %p194 = por %p192, %p193
      %p196 = scmp.ne.s32.totalorder %s181, %s195
      %p197 = scmp.eq.s32.totalorder %s45, 0
      %p198 = por %p196, %p197
      %s200 = sadd.s32 %s199, 1
      %p203 = scmp.eq.s32.totalorder %s39, 1
      %p204 = scmp.ne.s32.totalorder %s199, %s201
      %p205 = scmp.eq.s32.totalorder %s39, 0
      %p206 = por %p204, %p205
      %p207 = scmp.ne.s32.totalorder %s199, %s201
      %p208 = scmp.eq.s32.totalorder %s44, 1
      %p209 = por %p207, %p208
      %p210 = scmp.ne.s32.totalorder %s201, %s202
      %p211 = scmp.eq.s32.totalorder %s44, 0
      %p212 = por %p210, %p211
      %p213 = scmp.ne.s32.totalorder %s201, %s202
      %p214 = scmp.eq.s32.totalorder %s45, 1
      %p215 = por %p213, %p214
      %p217 = scmp.ne.s32.totalorder %s202, %s216
      %p218 = scmp.eq.s32.totalorder %s45, 0
      %p219 = por %p217, %p218
      %s221 = sadd.s32 %s220, 1
      %p224 = scmp.eq.s32.totalorder %s39, 1
      %p225 = scmp.ne.s32.totalorder %s220, %s222
      %p226 = scmp.eq.s32.totalorder %s39, 0
      %p227 = por %p225, %p226
      %p228 = scmp.ne.s32.totalorder %s220, %s222
      %p229 = scmp.eq.s32.totalorder %s44, 1
      %p230 = por %p228, %p229
      %p231 = scmp.ne.s32.totalorder %s222, %s223
      %p232 = scmp.eq.s32.totalorder %s44, 0
      %p233 = por %p231, %p232
      %p234 = scmp.ne.s32.totalorder %s222, %s223
      %p235 = scmp.eq.s32.totalorder %s45, 1
      %p236 = por %p234, %p235
      %p238 = scmp.ne.s32.totalorder %s223, %s237
      %p239 = scmp.eq.s32.totalorder %s45, 0
      %p240 = por %p238, %p239
      %s242 = sadd.s32 %s241, 1
      %p245 = scmp.eq.s32.totalorder %s39, 1
      %p246 = scmp.ne.s32.totalorder %s241, %s243
      %p247 = scmp.eq.s32.totalorder %s39, 0
      %p248 = por %p246, %p247
      %p249 = scmp.ne.s32.totalorder %s241, %s243
      %p250 = scmp.eq.s32.totalorder %s44, 1
      %p251 = por %p249, %p250
      %p252 = scmp.ne.s32.totalorder %s243, %s244
      %p253 = scmp.eq.s32.totalorder %s44, 0
      %p254 = por %p252, %p253
      %p255 = scmp.ne.s32.totalorder %s243, %s244
      %p256 = scmp.eq.s32.totalorder %s45, 1
      %p257 = por %p255, %p256
      %p259 = scmp.ne.s32.totalorder %s244, %s258
      %p260 = scmp.eq.s32.totalorder %s45, 0
      %p261 = por %p259, %p260
      %s263 = sadd.s32 %s262, 1
      %p266 = scmp.eq.s32.totalorder %s39, 1
      %p267 = scmp.ne.s32.totalorder %s262, %s264
      %p268 = scmp.eq.s32.totalorder %s39, 0
      %p269 = por %p267, %p268
      %p270 = scmp.ne.s32.totalorder %s262, %s264
      %p271 = scmp.eq.s32.totalorder %s44, 1
      %p272 = por %p270, %p271
      %p273 = scmp.ne.s32.totalorder %s264, %s265
      %p274 = scmp.eq.s32.totalorder %s44, 0
      %p275 = por %p273, %p274
      %p276 = scmp.ne.s32.totalorder %s264, %s265
      %p277 = scmp.eq.s32.totalorder %s45, 1
      %p278 = por %p276, %p277
      %p280 = scmp.ne.s32.totalorder %s265, %s279
      %p281 = scmp.eq.s32.totalorder %s45, 0
      %p282 = por %p280, %p281
      %s284 = sadd.s32 %s283, 1
      %p287 = scmp.eq.s32.totalorder %s39, 1
      %p288 = scmp.ne.s32.totalorder %s283, %s285
      %p289 = scmp.eq.s32.totalorder %s39, 0
      %p290 = por %p288, %p289
      %p291 = scmp.ne.s32.totalorder %s283, %s285
      %p292 = scmp.eq.s32.totalorder %s44, 1
      %p293 = por %p291, %p292
      %p294 = scmp.ne.s32.totalorder %s285, %s286
      %p295 = scmp.eq.s32.totalorder %s44, 0
      %p296 = por %p294, %p295
      %p297 = scmp.ne.s32.totalorder %s285, %s286
      %p298 = scmp.eq.s32.totalorder %s45, 1
      %p299 = por %p297, %p298
      %p301 = scmp.ne.s32.totalorder %s286, %s300
      %p302 = scmp.eq.s32.totalorder %s45, 0
      %p303 = por %p301, %p302
      %s305 = sadd.s32 %s304, 1
      %p308 = scmp.eq.s32.totalorder %s39, 1
      %p309 = scmp.ne.s32.totalorder %s304, %s306
      %p310 = scmp.eq.s32.totalorder %s39, 0
      %p311 = por %p309, %p310
      %p312 = scmp.ne.s32.totalorder %s304, %s306
      %p313 = scmp.eq.s32.totalorder %s44, 1
      %p314 = por %p312, %p313
      %p315 = scmp.ne.s32.totalorder %s306, %s307
      %p316 = scmp.eq.s32.totalorder %s44, 0
      %p317 = por %p315, %p316
      %p318 = scmp.ne.s32.totalorder %s306, %s307
      %p319 = scmp.eq.s32.totalorder %s45, 1
      %p320 = por %p318, %p319
      %p322 = scmp.ne.s32.totalorder %s307, %s321
      %p323 = scmp.eq.s32.totalorder %s45, 0
      %p324 = por %p322, %p323
      %s326 = sadd.s32 %s325, 1
      %p329 = scmp.eq.s32.totalorder %s39, 1
      %p330 = scmp.ne.s32.totalorder %s325, %s327
      %p331 = scmp.eq.s32.totalorder %s39, 0
      %p332 = por %p330, %p331
      %p333 = scmp.ne.s32.totalorder %s325, %s327
      %p334 = scmp.eq.s32.totalorder %s44, 1
      %p335 = por %p333, %p334
      %p336 = scmp.ne.s32.totalorder %s327, %s328
      %p337 = scmp.eq.s32.totalorder %s44, 0
      %p338 = por %p336, %p337
      %p339 = scmp.ne.s32.totalorder %s327, %s328
      %p340 = scmp.eq.s32.totalorder %s45, 1
      %p341 = por %p339, %p340
      %p343 = scmp.ne.s32.totalorder %s328, %s342
      %p344 = scmp.eq.s32.totalorder %s45, 0
      %p345 = por %p343, %p344
      %s347 = sadd.s32 %s346, 1
      %p350 = scmp.eq.s32.totalorder %s39, 1
      %p351 = scmp.ne.s32.totalorder %s346, %s348
      %p352 = scmp.eq.s32.totalorder %s39, 0
      %p353 = por %p351, %p352
      %p354 = scmp.ne.s32.totalorder %s346, %s348
      %p355 = scmp.eq.s32.totalorder %s44, 1
      %p356 = por %p354, %p355
      %p357 = scmp.ne.s32.totalorder %s348, %s349
      %p358 = scmp.eq.s32.totalorder %s44, 0
      %p359 = por %p357, %p358
      %p360 = scmp.ne.s32.totalorder %s348, %s349
      %p361 = scmp.eq.s32.totalorder %s45, 1
      %p362 = por %p360, %p361
      %p364 = scmp.ne.s32.totalorder %s349, %s363
      %p365 = scmp.eq.s32.totalorder %s45, 0
      %p366 = por %p364, %p365
      %s368 = sadd.s32 %s367, 1
      %p371 = scmp.eq.s32.totalorder %s39, 1
      %p372 = scmp.ne.s32.totalorder %s367, %s369
      %p373 = scmp.eq.s32.totalorder %s39, 0
      %p374 = por %p372, %p373
      %p375 = scmp.ne.s32.totalorder %s367, %s369
      %p376 = scmp.eq.s32.totalorder %s44, 1
      %p377 = por %p375, %p376
      %p378 = scmp.ne.s32.totalorder %s369, %s370
      %p379 = scmp.eq.s32.totalorder %s44, 0
      %p380 = por %p378, %p379
      %p381 = scmp.ne.s32.totalorder %s369, %s370
      %p382 = scmp.eq.s32.totalorder %s45, 1
      %p383 = por %p381, %p382
      %p385 = scmp.ne.s32.totalorder %s370, %s384
      %p386 = scmp.eq.s32.totalorder %s45, 0
      %p387 = por %p385, %p386
      %s389 = sadd.s32 %s388, 1
      %p392 = scmp.eq.s32.totalorder %s39, 1
      %p393 = scmp.ne.s32.totalorder %s388, %s390
      %p394 = scmp.eq.s32.totalorder %s39, 0
      %p395 = por %p393, %p394
      %p396 = scmp.ne.s32.totalorder %s388, %s390
      %p397 = scmp.eq.s32.totalorder %s44, 1
      %p398 = por %p396, %p397
      %p399 = scmp.ne.s32.totalorder %s390, %s391
      %p400 = scmp.eq.s32.totalorder %s44, 0
      %p401 = por %p399, %p400
      %p402 = scmp.ne.s32.totalorder %s390, %s391
      %p403 = scmp.eq.s32.totalorder %s45, 1
      %p404 = por %p402, %p403
      %p406 = scmp.ne.s32.totalorder %s391, %s405
      %p407 = scmp.eq.s32.totalorder %s45, 0
      %p408 = por %p406, %p407
      %s409 = ssub.s32 %s39, %s46
      %p410 = scmp.eq.s32.totalorder %s409, 0
      %s412 = sadd.s32 %s411, 1
      %s413 = scalar_select %p410, %s411, %s412
      %p416 = pneg %p410
      %p417 = scmp.eq.s32.totalorder %s39, 1
      %p418 = por %p416, %p417
      %p419 = scmp.ne.s32.totalorder %s411, %s414
      %p420 = scmp.eq.s32.totalorder %s39, 0
      %p421 = por %p419, %p420
      %p422 = scmp.ne.s32.totalorder %s411, %s414
      %p423 = scmp.eq.s32.totalorder %s44, 1
      %p424 = por %p422, %p423
      %p425 = scmp.ne.s32.totalorder %s414, %s415
      %p426 = scmp.eq.s32.totalorder %s44, 0
      %p427 = por %p425, %p426
      %p428 = scmp.ne.s32.totalorder %s414, %s415
      %p429 = scmp.eq.s32.totalorder %s45, 1
      %p430 = por %p428, %p429
      %p432 = scmp.ne.s32.totalorder %s415, %s431
      %p433 = scmp.eq.s32.totalorder %s45, 0
      %p434 = por %p432, %p433
      %s435 = ssub.s32 %s39, %s46
      %p436 = scmp.eq.s32.totalorder %s435, 0
      %s438 = sadd.s32 %s437, 1
      %s439 = scalar_select %p436, %s437, %s438
      %p442 = pneg %p436
      %p443 = scmp.eq.s32.totalorder %s39, 1
      %p444 = por %p442, %p443
      %p445 = scmp.ne.s32.totalorder %s437, %s440
      %p446 = scmp.eq.s32.totalorder %s39, 0
      %p447 = por %p445, %p446
      %p448 = scmp.ne.s32.totalorder %s437, %s440
      %p449 = scmp.eq.s32.totalorder %s44, 1
      %p450 = por %p448, %p449
      %p451 = scmp.ne.s32.totalorder %s440, %s441
      %p452 = scmp.eq.s32.totalorder %s44, 0
      %p453 = por %p451, %p452
      %p454 = scmp.ne.s32.totalorder %s440, %s441
      %p455 = scmp.eq.s32.totalorder %s45, 1
      %p456 = por %p454, %p455
      %p458 = scmp.ne.s32.totalorder %s441, %s457
      %p459 = scmp.eq.s32.totalorder %s45, 0
      %p460 = por %p458, %p459
      %p461 = scmp.le.s32.totalorder 1, %s39
      %p462 = scmp.lt.s32.totalorder %s39, 3
      %p463 = pnand %p461, %p462
      %p464 = pneg %p463
      // Predicated region
      $region9: #{tpu_custom_call.1} parent=5 // pred_check
        _
      $region10: #{tpu_custom_call.1} parent=5 // pred_check_branch
        %466 = sbr.rel (%p463) target = $region12
      $region11: #{tpu_custom_call.1} parent=5 // pred_region
        %s467 = ssub.s32 %s39, 1
        // Predicated region
        $region13: #{tpu_custom_call.1} parent=11 // pred_check
          %p468 = pneg %p86
        $region14: #{tpu_custom_call.1} parent=11 // pred_check_branch
          %470 = sbr.rel (%p468) target = $region16
        $region15: #{tpu_custom_call.1} parent=11 // pred_region
          %s472 = ssub.s32 24576, 24576
          %473 = vsyncadd [#allocation6], %s472
          %s474 = sshll.u32 [#allocation5], 4
          %s475 = int_to_ptr.vmem [resolvable:$true] %s474
          %480 = dma.hbm_to_vmem [thread:$0]  %s1, 24576, %s475, [#allocation6], 256, 256, 16
        $region16: #{tpu_custom_call.1} parent=11 // pred_fallthru
          _
        // Predicated region
        $region17: #{tpu_custom_call.1} parent=11 // pred_check
          %p481 = pneg %p107
        $region18: #{tpu_custom_call.1} parent=11 // pred_check_branch
          %483 = sbr.rel (%p481) target = $region20
        $region19: #{tpu_custom_call.1} parent=11 // pred_region
          %s485 = ssub.s32 64, 64
          %486 = vsyncadd [#allocation6], %s485
          %s488 = sshll.u32 [#allocation7], 4
          %s489 = int_to_ptr.vmem [resolvable:$true] %s488
          %491 = dma.hbm_to_vmem [thread:$0]  %s2, 64, %s489, [#allocation6]
        $region20: #{tpu_custom_call.1} parent=11 // pred_fallthru
          _
        // Predicated region
        $region21: #{tpu_custom_call.1} parent=11 // pred_check
          %p492 = pneg %p128
        $region22: #{tpu_custom_call.1} parent=11 // pred_check_branch
          %494 = sbr.rel (%p492) target = $region24
        $region23: #{tpu_custom_call.1} parent=11 // pred_region
          %s496 = ssub.s32 8192, 8192
          %497 = vsyncadd [#allocation9], %s496
          %s498 = sshll.u32 [#allocation8], 4
          %s499 = int_to_ptr.vmem [resolvable:$true] %s498
          %504 = dma.hbm_to_vmem [thread:$0]  %s3, 8192, %s499, [#allocation9], 128, 128, 8
        $region24: #{tpu_custom_call.1} parent=11 // pred_fallthru
          _
        // Predicated region
        $region25: #{tpu_custom_call.1} parent=11 // pred_check
          %p505 = pneg %p149
        $region26: #{tpu_custom_call.1} parent=11 // pred_check_branch
          %507 = sbr.rel (%p505) target = $region28
        $region27: #{tpu_custom_call.1} parent=11 // pred_region
          _
        $region28: #{tpu_custom_call.1} parent=11 // pred_fallthru
          _
        // Predicated region
        $region29: #{tpu_custom_call.1} parent=11 // pred_check
          %p508 = pneg %p170
        $region30: #{tpu_custom_call.1} parent=11 // pred_check_branch
          %510 = sbr.rel (%p508) target = $region32
        $region31: #{tpu_custom_call.1} parent=11 // pred_region
          %s512 = ssub.s32 2048, 2048
          %513 = vsyncadd [#allocation9], %s512
          %s514 = sshll.u32 [#allocation10], 4
          %s515 = int_to_ptr.vmem [resolvable:$true] %s514
          %520 = dma.hbm_to_vmem [thread:$0]  %s5, 2048, %s515, [#allocation9], 64, 64, 4
        $region32: #{tpu_custom_call.1} parent=11 // pred_fallthru
          _
        // Predicated region
        $region33: #{tpu_custom_call.1} parent=11 // pred_check
          %p521 = pneg %p191
        $region34: #{tpu_custom_call.1} parent=11 // pred_check_branch
          %523 = sbr.rel (%p521) target = $region36
        $region35: #{tpu_custom_call.1} parent=11 // pred_region
          %s525 = ssub.s32 16, 16
          %526 = vsyncadd [#allocation12], %s525
          %s528 = sshll.u32 [#allocation11], 4
          %s529 = int_to_ptr.vmem [resolvable:$true] %s528
          %531 = dma.hbm_to_vmem [thread:$0]  %s6, 16, %s529, [#allocation12]
        $region36: #{tpu_custom_call.1} parent=11 // pred_fallthru
          _
        // Predicated region
        $region37: #{tpu_custom_call.1} parent=11 // pred_check
          %p532 = pneg %p212
        $region38: #{tpu_custom_call.1} parent=11 // pred_check_branch
          %534 = sbr.rel (%p532) target = $region40
        $region39: #{tpu_custom_call.1} parent=11 // pred_region
          %s536 = ssub.s32 2048, 2048
          %537 = vsyncadd [#allocation12], %s536
          %s538 = sshll.u32 [#allocation13], 4
          %s539 = int_to_ptr.vmem [resolvable:$true] %s538
          %544 = dma.hbm_to_vmem [thread:$0]  %s7, 2048, %s539, [#allocation12], 128, 128, 8
        $region40: #{tpu_custom_call.1} parent=11 // pred_fallthru
          _
        // Predicated region
        $region41: #{tpu_custom_call.1} parent=11 // pred_check
          %p545 = pneg %p233
        $region42: #{tpu_custom_call.1} parent=11 // pred_check_branch
          %547 = sbr.rel (%p545) target = $region44
        $region43: #{tpu_custom_call.1} parent=11 // pred_region
          _
        $region44: #{tpu_custom_call.1} parent=11 // pred_fallthru
          _
        // Predicated region
        $region45: #{tpu_custom_call.1} parent=11 // pred_check
          %p548 = pneg %p254
        $region46: #{tpu_custom_call.1} parent=11 // pred_check_branch
          %550 = sbr.rel (%p548) target = $region48
        $region47: #{tpu_custom_call.1} parent=11 // pred_region
          %s552 = ssub.s32 8192, 8192
          %553 = vsyncadd [#allocation15], %s552
          %s554 = sshll.u32 [#allocation14], 4
          %s555 = int_to_ptr.vmem [resolvable:$true] %s554
          %560 = dma.hbm_to_vmem [thread:$0]  %s9, 8192, %s555, [#allocation15], 256, 256, 16
        $region48: #{tpu_custom_call.1} parent=11 // pred_fallthru
          _
        // Predicated region
        $region49: #{tpu_custom_call.1} parent=11 // pred_check
          %p561 = pneg %p275
        $region50: #{tpu_custom_call.1} parent=11 // pred_check_branch
          %563 = sbr.rel (%p561) target = $region52
        $region51: #{tpu_custom_call.1} parent=11 // pred_region
          _
        $region52: #{tpu_custom_call.1} parent=11 // pred_fallthru
          _
        // Predicated region
        $region53: #{tpu_custom_call.1} parent=11 // pred_check
          %p564 = pneg %p296
        $region54: #{tpu_custom_call.1} parent=11 // pred_check_branch
          %566 = sbr.rel (%p564) target = $region56
        $region55: #{tpu_custom_call.1} parent=11 // pred_region
          %s568 = ssub.s32 24576, 24576
          %569 = vsyncadd [#allocation15], %s568
          %s570 = sshll.u32 [#allocation16], 4
          %s571 = int_to_ptr.vmem [resolvable:$true] %s570
          %576 = dma.hbm_to_vmem [thread:$0]  %s11, 24576, %s571, [#allocation15], 384, 384, 24
        $region56: #{tpu_custom_call.1} parent=11 // pred_fallthru
          _
        // Predicated region
        $region57: #{tpu_custom_call.1} parent=11 // pred_check
          %p577 = pneg %p317
        $region58: #{tpu_custom_call.1} parent=11 // pred_check_branch
          %579 = sbr.rel (%p577) target = $region60
        $region59: #{tpu_custom_call.1} parent=11 // pred_region
          _
        $region60: #{tpu_custom_call.1} parent=11 // pred_fallthru
          _
        // Predicated region
        $region61: #{tpu_custom_call.1} parent=11 // pred_check
          %p580 = pneg %p338
        $region62: #{tpu_custom_call.1} parent=11 // pred_check_branch
          %582 = sbr.rel (%p580) target = $region64
        $region63: #{tpu_custom_call.1} parent=11 // pred_region
          %s584 = ssub.s32 1024, 1024
          %585 = vsyncadd [#allocation18], %s584
          %s586 = sshll.u32 [#allocation17], 4
          %s587 = int_to_ptr.vmem [resolvable:$true] %s586
          %592 = dma.hbm_to_vmem [thread:$0]  %s13, 1024, %s587, [#allocation18], 64, 64, 4
        $region64: #{tpu_custom_call.1} parent=11 // pred_fallthru
          _
        // Predicated region
        $region65: #{tpu_custom_call.1} parent=11 // pred_check
          %p593 = pneg %p359
        $region66: #{tpu_custom_call.1} parent=11 // pred_check_branch
          %595 = sbr.rel (%p593) target = $region68
        $region67: #{tpu_custom_call.1} parent=11 // pred_region
          _
        $region68: #{tpu_custom_call.1} parent=11 // pred_fallthru
          _
        // Predicated region
        $region69: #{tpu_custom_call.1} parent=11 // pred_check
          %p596 = pneg %p380
        $region70: #{tpu_custom_call.1} parent=11 // pred_check_branch
          %598 = sbr.rel (%p596) target = $region72
        $region71: #{tpu_custom_call.1} parent=11 // pred_region
          %s600 = ssub.s32 1024, 1024
          %601 = vsyncadd [#allocation18], %s600
          %s602 = sshll.u32 [#allocation19], 4
          %s603 = int_to_ptr.vmem [resolvable:$true] %s602
          %608 = dma.hbm_to_vmem [thread:$0]  %s15, 1024, %s603, [#allocation18], 64, 64, 4
        $region72: #{tpu_custom_call.1} parent=11 // pred_fallthru
          _
        // Predicated region
        $region73: #{tpu_custom_call.1} parent=11 // pred_check
          %p609 = pneg %p401
        $region74: #{tpu_custom_call.1} parent=11 // pred_check_branch
          %611 = sbr.rel (%p609) target = $region76
        $region75: #{tpu_custom_call.1} parent=11 // pred_region
          _
        $region76: #{tpu_custom_call.1} parent=11 // pred_fallthru
          _
      $region12: #{tpu_custom_call.1} parent=5 // pred_fallthru
        _
      %p612 = scmp.lt.s32.totalorder %s39, 2
      // Predicated region
      $region77: #{tpu_custom_call.1} parent=5 // pred_check
        %p613 = pneg %p612
      $region78: #{tpu_custom_call.1} parent=5 // pred_check_branch
        %615 = sbr.rel (%p613) target = $region80
      $region79: #{tpu_custom_call.1} parent=5 // pred_region
        // Predicated region
        $region81: #{tpu_custom_call.1} parent=79 // pred_check
          %p616 = pneg %p59
        $region82: #{tpu_custom_call.1} parent=79 // pred_check_branch
          %618 = sbr.rel (%p616) target = $region84
        $region83: #{tpu_custom_call.1} parent=79 // pred_region
          %s619 = sand.u32 %s49, 1
          %s620 = scalar_lea.sflag [#allocation3], %s619
          %s621 = sand.u32 %s49, 1
          %s622 = smul.addr %s621, 96
          %s623 = scalar_lea.vmem [#allocation2], %s622
          %s624 = smul.u32 2, %s39
          %s625 = ssub.s32 3, %s624
          %p626 = scmp.lt.s32.totalorder %s625, 2
          %s627 = scalar_select %p626, %s625, 2
          %s628 = smul.u32 128, %s627
          %s629 = smul.u32 %s628, 6
          %s631 = ssub.s32 1536, %s629
          %632 = vsyncadd %s620, %s631
          %p633 = scmp.ne.s32.totalorder 0, %s629
          %s634 = smul.addr %s624, 6
          %s635 = smul.addr %s634, 128
          %s636 = scalar_lea.hbm %s0, %s635
          %s637 = smul.u32 48, %s627
          %s638 = sshll.u32 %s623, 4
          %s639 = int_to_ptr.vmem [resolvable:$true] %s638
          %s640 = sshll.u32 %s637, 4
          %644 = dma.hbm_to_vmem [thread:$0]  (%p633), %s636, %s640, %s639, %s620, 768, 768, 48
        $region84: #{tpu_custom_call.1} parent=79 // pred_fallthru
          _
      $region80: #{tpu_custom_call.1} parent=5 // pred_fallthru
        _
      %p645 = scmp.le.s32.totalorder 1, %s39
      %p646 = scmp.lt.s32.totalorder %s39, 3
      %p647 = pnand %p645, %p646
      %p648 = pneg %p647
      // Predicated region
      $region85: #{tpu_custom_call.1} parent=5 // pred_check
        _
      $region86: #{tpu_custom_call.1} parent=5 // pred_check_branch
        %650 = sbr.rel (%p647) target = $region88
      $region87: #{tpu_custom_call.1} parent=5 // pred_region
        %s651 = ssub.s32 %s39, 1
        %s652 = sand.u32 %s52, 1
        %s653 = scalar_lea.sflag [#allocation3], %s652
        %s654 = sand.u32 %s52, 1
        %s655 = smul.addr %s654, 96
        %s656 = scalar_lea.vmem [#allocation2], %s655
        // Predicated region
        $region89: #{tpu_custom_call.1} parent=87 // pred_check
          %p657 = pneg %p65
        $region90: #{tpu_custom_call.1} parent=87 // pred_check_branch
          %659 = sbr.rel (%p657) target = $region92
        $region91: #{tpu_custom_call.1} parent=87 // pred_region
          %660 = dma.done %s653, 1536
        $region92: #{tpu_custom_call.1} parent=87 // pred_fallthru
          _
        // Predicated region
        $region93: #{tpu_custom_call.1} parent=87 // pred_check
          %p661 = pneg %p86
        $region94: #{tpu_custom_call.1} parent=87 // pred_check_branch
          %663 = sbr.rel (%p661) target = $region96
        $region95: #{tpu_custom_call.1} parent=87 // pred_region
          %664 = dma.done [#allocation6], 24576
        $region96: #{tpu_custom_call.1} parent=87 // pred_fallthru
          _
        // Predicated region
        $region97: #{tpu_custom_call.1} parent=87 // pred_check
          %p665 = pneg %p107
        $region98: #{tpu_custom_call.1} parent=87 // pred_check_branch
          %667 = sbr.rel (%p665) target = $region100
        $region99: #{tpu_custom_call.1} parent=87 // pred_region
          %668 = dma.done [#allocation6], 64
        $region100: #{tpu_custom_call.1} parent=87 // pred_fallthru
          _
        // Predicated region
        $region101: #{tpu_custom_call.1} parent=87 // pred_check
          %p669 = pneg %p128
        $region102: #{tpu_custom_call.1} parent=87 // pred_check_branch
          %671 = sbr.rel (%p669) target = $region104
        $region103: #{tpu_custom_call.1} parent=87 // pred_region
          %672 = dma.done [#allocation9], 8192
        $region104: #{tpu_custom_call.1} parent=87 // pred_fallthru
          _
        // Predicated region
        $region105: #{tpu_custom_call.1} parent=87 // pred_check
          %p673 = pneg %p170
        $region106: #{tpu_custom_call.1} parent=87 // pred_check_branch
          %675 = sbr.rel (%p673) target = $region108
        $region107: #{tpu_custom_call.1} parent=87 // pred_region
          %676 = dma.done [#allocation9], 2048
        $region108: #{tpu_custom_call.1} parent=87 // pred_fallthru
          _
        // Predicated region
        $region109: #{tpu_custom_call.1} parent=87 // pred_check
          %p677 = pneg %p191
        $region110: #{tpu_custom_call.1} parent=87 // pred_check_branch
          %679 = sbr.rel (%p677) target = $region112
        $region111: #{tpu_custom_call.1} parent=87 // pred_region
          %680 = dma.done [#allocation12], 16
        $region112: #{tpu_custom_call.1} parent=87 // pred_fallthru
          _
        // Predicated region
        $region113: #{tpu_custom_call.1} parent=87 // pred_check
          %p681 = pneg %p212
        $region114: #{tpu_custom_call.1} parent=87 // pred_check_branch
          %683 = sbr.rel (%p681) target = $region116
        $region115: #{tpu_custom_call.1} parent=87 // pred_region
          %684 = dma.done [#allocation12], 2048
        $region116: #{tpu_custom_call.1} parent=87 // pred_fallthru
          _
        // Predicated region
        $region117: #{tpu_custom_call.1} parent=87 // pred_check
          %p685 = pneg %p254
        $region118: #{tpu_custom_call.1} parent=87 // pred_check_branch
          %687 = sbr.rel (%p685) target = $region120
        $region119: #{tpu_custom_call.1} parent=87 // pred_region
          %688 = dma.done [#allocation15], 8192
        $region120: #{tpu_custom_call.1} parent=87 // pred_fallthru
          _
        // Predicated region
        $region121: #{tpu_custom_call.1} parent=87 // pred_check
          %p689 = pneg %p296
        $region122: #{tpu_custom_call.1} parent=87 // pred_check_branch
          %691 = sbr.rel (%p689) target = $region124
        $region123: #{tpu_custom_call.1} parent=87 // pred_region
          %692 = dma.done [#allocation15], 24576
        $region124: #{tpu_custom_call.1} parent=87 // pred_fallthru
          _
        // Predicated region
        $region125: #{tpu_custom_call.1} parent=87 // pred_check
          %p693 = pneg %p338
        $region126: #{tpu_custom_call.1} parent=87 // pred_check_branch
          %695 = sbr.rel (%p693) target = $region128
        $region127: #{tpu_custom_call.1} parent=87 // pred_region
          %696 = dma.done [#allocation18], 1024
        $region128: #{tpu_custom_call.1} parent=87 // pred_fallthru
          _
        // Predicated region
        $region129: #{tpu_custom_call.1} parent=87 // pred_check
          %p697 = pneg %p380
        $region130: #{tpu_custom_call.1} parent=87 // pred_check_branch
          %699 = sbr.rel (%p697) target = $region132
        $region131: #{tpu_custom_call.1} parent=87 // pred_region
          %700 = dma.done [#allocation18], 1024
        $region132: #{tpu_custom_call.1} parent=87 // pred_fallthru
          _
        %s701 = sand.u32 %s52, 1
        %s702 = scalar_lea.sflag [#allocation3], %s701
        %s703 = sand.u32 %s52, 1
        %s704 = smul.addr %s703, 96
        %s705 = scalar_lea.vmem [#allocation2], %s704
        %p706 = pneg %p65
        %p707 = pneg %p62
        %p708 = pneg %p86
        %p709 = pneg %p83
        %p710 = pneg %p107
        %p711 = pneg %p104
        %p712 = pneg %p128
        %p713 = pneg %p125
        %p714 = pneg %p149
        %p715 = pneg %p146
        %p716 = pneg %p170
        %p717 = pneg %p167
        %p718 = pneg %p191
        %p719 = pneg %p188
        %p720 = pneg %p212
        %p721 = pneg %p209
        %p722 = pneg %p233
        %p723 = pneg %p230
        %p724 = pneg %p254
        %p725 = pneg %p251
        %p726 = pneg %p275
        %p727 = pneg %p272
        %p728 = pneg %p296
        %p729 = pneg %p293
        %p730 = pneg %p317
        %p731 = pneg %p314
        %p732 = pneg %p338
        %p733 = pneg %p335
        %p734 = pneg %p359
        %p735 = pneg %p356
        %p736 = pneg %p380
        %p737 = pneg %p377
        %p738 = pneg %p401
        %p739 = pneg %p398
        %p740 = pneg %p427
        %p741 = pneg %p424
        %s742 = sand.u32 %s414, 1
        %s743 = scalar_lea.sflag [#allocation4], %s742
        %s744 = sand.u32 %s414, 1
        %s745 = smul.addr %s744, 48
        %s746 = scalar_lea.vmem [#allocation20], %s745
        %p747 = pneg %p453
        %p748 = pneg %p450
        %s749 = sand.u32 %s440, 1
        %s750 = scalar_lea.sflag [#allocation22], %s749
        %s751 = sand.u32 %s440, 1
        %s752 = smul.addr %s751, 8
        %s753 = scalar_lea.vmem [#allocation21], %s752
        %s754 = smul.u32 2, %s44
        %s755 = ssub.s32 3, %s754
        %p756 = scmp.lt.s32.totalorder %s755, 2
        %s757 = scalar_select %p756, %s755, 2
        %s758 = smul.u32 128, %s757
        %s759 = smul.u32 %s758, 6
        %s760 = smul.u32 2, %s44
        %s761 = ssub.s32 3, %s760
        %p762 = scmp.lt.s32.totalorder %s761, 2
        %s763 = scalar_select %p762, %s761, 2
        %s764 = smul.u32 64, %s763
        %s765 = smul.u32 %s764, 6
        %s766 = smul.u32 2, %s44
        %s767 = ssub.s32 3, %s766
        %p768 = scmp.lt.s32.totalorder %s767, 2
        %s769 = scalar_select %p768, %s767, 2
        %s770 = smul.u32 64, %s769
        %v772 = vld [vmem:[%s656] sm:$0xff]
        %v773 = vld [vmem:[%s656 + $0x8] sm:$0xff]
        %v774 = vld [vmem:[%s656 + $0x10] sm:$0xff]
        %v775 = vld [vmem:[%s656 + $0x18] sm:$0xff]
        %v776 = vld [vmem:[%s656 + $0x20] sm:$0xff]
        %v777 = vld [vmem:[%s656 + $0x28] sm:$0xff]
        %v778 = vld [vmem:[%s656 + $0x30] sm:$0xff]
        %v779 = vld [vmem:[%s656 + $0x38] sm:$0xff]
        %v780 = vld [vmem:[%s656 + $0x40] sm:$0xff]
        %v781 = vld [vmem:[%s656 + $0x48] sm:$0xff]
        %v782 = vld [vmem:[%s656 + $0x50] sm:$0xff]
        %v783 = vld [vmem:[%s656 + $0x58] sm:$0xff]
        %v784 = vpack.c.bf16 %v778, %v772
        %v785 = vpack.c.bf16 %v779, %v773
        %v786 = vpack.c.bf16 %v780, %v774
        %v787 = vpack.c.bf16 %v781, %v775
        %v788 = vpack.c.bf16 %v782, %v776
        %v789 = vpack.c.bf16 %v783, %v777
        %v790 = vld [vmem:[#allocation5] sm:$0xff]
        %v791 = vld [vmem:[#allocation5 + $0x8] sm:$0xff]
        %v792 = vld [vmem:[#allocation5 + $0x10] sm:$0xff]
        %v793 = vld [vmem:[#allocation5 + $0x18] sm:$0xff]
        %v794 = vld [vmem:[#allocation5 + $0x20] sm:$0xff]
        %v795 = vld [vmem:[#allocation5 + $0x28] sm:$0xff]
        %v796 = vld [vmem:[#allocation5 + $0x30] sm:$0xff]
        %v797 = vld [vmem:[#allocation5 + $0x38] sm:$0xff]
        %v798 = vld [vmem:[#allocation5 + $0x40] sm:$0xff]
        %v799 = vld [vmem:[#allocation5 + $0x48] sm:$0xff]
        %v800 = vld [vmem:[#allocation5 + $0x50] sm:$0xff]
        %v801 = vld [vmem:[#allocation5 + $0x58] sm:$0xff]
        %v802 = vld [vmem:[#allocation5 + $0x60] sm:$0xff]
        %v803 = vld [vmem:[#allocation5 + $0x68] sm:$0xff]
        %v804 = vld [vmem:[#allocation5 + $0x70] sm:$0xff]
        %v805 = vld [vmem:[#allocation5 + $0x78] sm:$0xff]
        %v806 = vld [vmem:[#allocation5 + $0x80] sm:$0xff]
        %v807 = vld [vmem:[#allocation5 + $0x88] sm:$0xff]
        %v808 = vld [vmem:[#allocation5 + $0x90] sm:$0xff]
        %v809 = vld [vmem:[#allocation5 + $0x98] sm:$0xff]
        %v810 = vld [vmem:[#allocation5 + $0xa0] sm:$0xff]
        %v811 = vld [vmem:[#allocation5 + $0xa8] sm:$0xff]
        %v812 = vld [vmem:[#allocation5 + $0xb0] sm:$0xff]
        %v813 = vld [vmem:[#allocation5 + $0xb8] sm:$0xff]
        %v814 = vld [vmem:[#allocation5 + $0xc0] sm:$0xff]
        %v815 = vld [vmem:[#allocation5 + $0xc8] sm:$0xff]
        %v816 = vld [vmem:[#allocation5 + $0xd0] sm:$0xff]
        %v817 = vld [vmem:[#allocation5 + $0xd8] sm:$0xff]
        %v818 = vld [vmem:[#allocation5 + $0xe0] sm:$0xff]
        %v819 = vld [vmem:[#allocation5 + $0xe8] sm:$0xff]
        %v820 = vld [vmem:[#allocation5 + $0xf0] sm:$0xff]
        %v821 = vld [vmem:[#allocation5 + $0xf8] sm:$0xff]
        %v822 = vld [vmem:[#allocation5 + $0x100] sm:$0xff]
        %v823 = vld [vmem:[#allocation5 + $0x108] sm:$0xff]
        %v824 = vld [vmem:[#allocation5 + $0x110] sm:$0xff]
        %v825 = vld [vmem:[#allocation5 + $0x118] sm:$0xff]
        %v826 = vld [vmem:[#allocation5 + $0x120] sm:$0xff]
        %v827 = vld [vmem:[#allocation5 + $0x128] sm:$0xff]
        %v828 = vld [vmem:[#allocation5 + $0x130] sm:$0xff]
        %v829 = vld [vmem:[#allocation5 + $0x138] sm:$0xff]
        %v830 = vld [vmem:[#allocation5 + $0x140] sm:$0xff]
        %v831 = vld [vmem:[#allocation5 + $0x148] sm:$0xff]
        %v832 = vld [vmem:[#allocation5 + $0x150] sm:$0xff]
        %v833 = vld [vmem:[#allocation5 + $0x158] sm:$0xff]
        %v834 = vld [vmem:[#allocation5 + $0x160] sm:$0xff]
        %v835 = vld [vmem:[#allocation5 + $0x168] sm:$0xff]
        %v836 = vld [vmem:[#allocation5 + $0x170] sm:$0xff]
        %v837 = vld [vmem:[#allocation5 + $0x178] sm:$0xff]
        %v838 = vld [vmem:[#allocation5 + $0x180] sm:$0xff]
        %v839 = vld [vmem:[#allocation5 + $0x188] sm:$0xff]
        %v840 = vld [vmem:[#allocation5 + $0x190] sm:$0xff]
        %v841 = vld [vmem:[#allocation5 + $0x198] sm:$0xff]
        %v842 = vld [vmem:[#allocation5 + $0x1a0] sm:$0xff]
        %v843 = vld [vmem:[#allocation5 + $0x1a8] sm:$0xff]
        %v844 = vld [vmem:[#allocation5 + $0x1b0] sm:$0xff]
        %v845 = vld [vmem:[#allocation5 + $0x1b8] sm:$0xff]
        %v846 = vld [vmem:[#allocation5 + $0x1c0] sm:$0xff]
        %v847 = vld [vmem:[#allocation5 + $0x1c8] sm:$0xff]
        %v848 = vld [vmem:[#allocation5 + $0x1d0] sm:$0xff]
        %v849 = vld [vmem:[#allocation5 + $0x1d8] sm:$0xff]
        %v850 = vld [vmem:[#allocation5 + $0x1e0] sm:$0xff]
        %v851 = vld [vmem:[#allocation5 + $0x1e8] sm:$0xff]
        %v852 = vld [vmem:[#allocation5 + $0x1f0] sm:$0xff]
        %v853 = vld [vmem:[#allocation5 + $0x1f8] sm:$0xff]
        %v854 = vld [vmem:[#allocation5 + $0x200] sm:$0xff]
        %v855 = vld [vmem:[#allocation5 + $0x208] sm:$0xff]
        %v856 = vld [vmem:[#allocation5 + $0x210] sm:$0xff]
        %v857 = vld [vmem:[#allocation5 + $0x218] sm:$0xff]
        %v858 = vld [vmem:[#allocation5 + $0x220] sm:$0xff]
        %v859 = vld [vmem:[#allocation5 + $0x228] sm:$0xff]
        %v860 = vld [vmem:[#allocation5 + $0x230] sm:$0xff]
        %v861 = vld [vmem:[#allocation5 + $0x238] sm:$0xff]
        %v862 = vld [vmem:[#allocation5 + $0x240] sm:$0xff]
        %v863 = vld [vmem:[#allocation5 + $0x248] sm:$0xff]
        %v864 = vld [vmem:[#allocation5 + $0x250] sm:$0xff]
        %v865 = vld [vmem:[#allocation5 + $0x258] sm:$0xff]
        %v866 = vld [vmem:[#allocation5 + $0x260] sm:$0xff]
        %v867 = vld [vmem:[#allocation5 + $0x268] sm:$0xff]
        %v868 = vld [vmem:[#allocation5 + $0x270] sm:$0xff]
        %v869 = vld [vmem:[#allocation5 + $0x278] sm:$0xff]
        %v870 = vld [vmem:[#allocation5 + $0x280] sm:$0xff]
        %v871 = vld [vmem:[#allocation5 + $0x288] sm:$0xff]
        %v872 = vld [vmem:[#allocation5 + $0x290] sm:$0xff]
        %v873 = vld [vmem:[#allocation5 + $0x298] sm:$0xff]
        %v874 = vld [vmem:[#allocation5 + $0x2a0] sm:$0xff]
        %v875 = vld [vmem:[#allocation5 + $0x2a8] sm:$0xff]
        %v876 = vld [vmem:[#allocation5 + $0x2b0] sm:$0xff]
        %v877 = vld [vmem:[#allocation5 + $0x2b8] sm:$0xff]
        %v878 = vld [vmem:[#allocation5 + $0x2c0] sm:$0xff]
        %v879 = vld [vmem:[#allocation5 + $0x2c8] sm:$0xff]
        %v880 = vld [vmem:[#allocation5 + $0x2d0] sm:$0xff]
        %v881 = vld [vmem:[#allocation5 + $0x2d8] sm:$0xff]
        %v882 = vld [vmem:[#allocation5 + $0x2e0] sm:$0xff]
        %v883 = vld [vmem:[#allocation5 + $0x2e8] sm:$0xff]
        %v884 = vld [vmem:[#allocation5 + $0x2f0] sm:$0xff]
        %v885 = vld [vmem:[#allocation5 + $0x2f8] sm:$0xff]
        %v886 = vld [vmem:[#allocation5 + $0x300] sm:$0xff]
        %v887 = vld [vmem:[#allocation5 + $0x308] sm:$0xff]
        %v888 = vld [vmem:[#allocation5 + $0x310] sm:$0xff]
        %v889 = vld [vmem:[#allocation5 + $0x318] sm:$0xff]
        %v890 = vld [vmem:[#allocation5 + $0x320] sm:$0xff]
        %v891 = vld [vmem:[#allocation5 + $0x328] sm:$0xff]
        %v892 = vld [vmem:[#allocation5 + $0x330] sm:$0xff]
        %v893 = vld [vmem:[#allocation5 + $0x338] sm:$0xff]
        %v894 = vld [vmem:[#allocation5 + $0x340] sm:$0xff]
        %v895 = vld [vmem:[#allocation5 + $0x348] sm:$0xff]
        %v896 = vld [vmem:[#allocation5 + $0x350] sm:$0xff]
        %v897 = vld [vmem:[#allocation5 + $0x358] sm:$0xff]
        %v898 = vld [vmem:[#allocation5 + $0x360] sm:$0xff]
        %v899 = vld [vmem:[#allocation5 + $0x368] sm:$0xff]
        %v900 = vld [vmem:[#allocation5 + $0x370] sm:$0xff]
        %v901 = vld [vmem:[#allocation5 + $0x378] sm:$0xff]
        %v902 = vld [vmem:[#allocation5 + $0x380] sm:$0xff]
        %v903 = vld [vmem:[#allocation5 + $0x388] sm:$0xff]
        %v904 = vld [vmem:[#allocation5 + $0x390] sm:$0xff]
        %v905 = vld [vmem:[#allocation5 + $0x398] sm:$0xff]
        %v906 = vld [vmem:[#allocation5 + $0x3a0] sm:$0xff]
        %v907 = vld [vmem:[#allocation5 + $0x3a8] sm:$0xff]
        %v908 = vld [vmem:[#allocation5 + $0x3b0] sm:$0xff]
        %v909 = vld [vmem:[#allocation5 + $0x3b8] sm:$0xff]
        %v910 = vld [vmem:[#allocation5 + $0x3c0] sm:$0xff]
        %v911 = vld [vmem:[#allocation5 + $0x3c8] sm:$0xff]
        %v912 = vld [vmem:[#allocation5 + $0x3d0] sm:$0xff]
        %v913 = vld [vmem:[#allocation5 + $0x3d8] sm:$0xff]
        %v914 = vld [vmem:[#allocation5 + $0x3e0] sm:$0xff]
        %v915 = vld [vmem:[#allocation5 + $0x3e8] sm:$0xff]
        %v916 = vld [vmem:[#allocation5 + $0x3f0] sm:$0xff]
        %v917 = vld [vmem:[#allocation5 + $0x3f8] sm:$0xff]
        %v918 = vld [vmem:[#allocation5 + $0x400] sm:$0xff]
        %v919 = vld [vmem:[#allocation5 + $0x408] sm:$0xff]
        %v920 = vld [vmem:[#allocation5 + $0x410] sm:$0xff]
        %v921 = vld [vmem:[#allocation5 + $0x418] sm:$0xff]
        %v922 = vld [vmem:[#allocation5 + $0x420] sm:$0xff]
        %v923 = vld [vmem:[#allocation5 + $0x428] sm:$0xff]
        %v924 = vld [vmem:[#allocation5 + $0x430] sm:$0xff]
        %v925 = vld [vmem:[#allocation5 + $0x438] sm:$0xff]
        %v926 = vld [vmem:[#allocation5 + $0x440] sm:$0xff]
        %v927 = vld [vmem:[#allocation5 + $0x448] sm:$0xff]
        %v928 = vld [vmem:[#allocation5 + $0x450] sm:$0xff]
        %v929 = vld [vmem:[#allocation5 + $0x458] sm:$0xff]
        %v930 = vld [vmem:[#allocation5 + $0x460] sm:$0xff]
        %v931 = vld [vmem:[#allocation5 + $0x468] sm:$0xff]
        %v932 = vld [vmem:[#allocation5 + $0x470] sm:$0xff]
        %v933 = vld [vmem:[#allocation5 + $0x478] sm:$0xff]
        %v934 = vld [vmem:[#allocation5 + $0x480] sm:$0xff]
        %v935 = vld [vmem:[#allocation5 + $0x488] sm:$0xff]
        %v936 = vld [vmem:[#allocation5 + $0x490] sm:$0xff]
        %v937 = vld [vmem:[#allocation5 + $0x498] sm:$0xff]
        %v938 = vld [vmem:[#allocation5 + $0x4a0] sm:$0xff]
        %v939 = vld [vmem:[#allocation5 + $0x4a8] sm:$0xff]
        %v940 = vld [vmem:[#allocation5 + $0x4b0] sm:$0xff]
        %v941 = vld [vmem:[#allocation5 + $0x4b8] sm:$0xff]
        %v942 = vld [vmem:[#allocation5 + $0x4c0] sm:$0xff]
        %v943 = vld [vmem:[#allocation5 + $0x4c8] sm:$0xff]
        %v944 = vld [vmem:[#allocation5 + $0x4d0] sm:$0xff]
        %v945 = vld [vmem:[#allocation5 + $0x4d8] sm:$0xff]
        %v946 = vld [vmem:[#allocation5 + $0x4e0] sm:$0xff]
        %v947 = vld [vmem:[#allocation5 + $0x4e8] sm:$0xff]
        %v948 = vld [vmem:[#allocation5 + $0x4f0] sm:$0xff]
        %v949 = vld [vmem:[#allocation5 + $0x4f8] sm:$0xff]
        %v950 = vld [vmem:[#allocation5 + $0x500] sm:$0xff]
        %v951 = vld [vmem:[#allocation5 + $0x508] sm:$0xff]
        %v952 = vld [vmem:[#allocation5 + $0x510] sm:$0xff]
        %v953 = vld [vmem:[#allocation5 + $0x518] sm:$0xff]
        %v954 = vld [vmem:[#allocation5 + $0x520] sm:$0xff]
        %v955 = vld [vmem:[#allocation5 + $0x528] sm:$0xff]
        %v956 = vld [vmem:[#allocation5 + $0x530] sm:$0xff]
        %v957 = vld [vmem:[#allocation5 + $0x538] sm:$0xff]
        %v958 = vld [vmem:[#allocation5 + $0x540] sm:$0xff]
        %v959 = vld [vmem:[#allocation5 + $0x548] sm:$0xff]
        %v960 = vld [vmem:[#allocation5 + $0x550] sm:$0xff]
        %v961 = vld [vmem:[#allocation5 + $0x558] sm:$0xff]
        %v962 = vld [vmem:[#allocation5 + $0x560] sm:$0xff]
        %v963 = vld [vmem:[#allocation5 + $0x568] sm:$0xff]
        %v964 = vld [vmem:[#allocation5 + $0x570] sm:$0xff]
        %v965 = vld [vmem:[#allocation5 + $0x578] sm:$0xff]
        %v966 = vld [vmem:[#allocation5 + $0x580] sm:$0xff]
        %v967 = vld [vmem:[#allocation5 + $0x588] sm:$0xff]
        %v968 = vld [vmem:[#allocation5 + $0x590] sm:$0xff]
        %v969 = vld [vmem:[#allocation5 + $0x598] sm:$0xff]
        %v970 = vld [vmem:[#allocation5 + $0x5a0] sm:$0xff]
        %v971 = vld [vmem:[#allocation5 + $0x5a8] sm:$0xff]
        %v972 = vld [vmem:[#allocation5 + $0x5b0] sm:$0xff]
        %v973 = vld [vmem:[#allocation5 + $0x5b8] sm:$0xff]
        %v974 = vld [vmem:[#allocation5 + $0x5c0] sm:$0xff]
        %v975 = vld [vmem:[#allocation5 + $0x5c8] sm:$0xff]
        %v976 = vld [vmem:[#allocation5 + $0x5d0] sm:$0xff]
        %v977 = vld [vmem:[#allocation5 + $0x5d8] sm:$0xff]
        %v978 = vld [vmem:[#allocation5 + $0x5e0] sm:$0xff]
        %v979 = vld [vmem:[#allocation5 + $0x5e8] sm:$0xff]
        %v980 = vld [vmem:[#allocation5 + $0x5f0] sm:$0xff]
        %v981 = vld [vmem:[#allocation5 + $0x5f8] sm:$0xff]
        %v1174 = vunpack.c.l.b16 %v790
        %v1175 = vunpack.c.h.b16 %v790
        %v1176 = vunpack.c.l.b16 %v791
        %v1177 = vunpack.c.h.b16 %v791
        %v1178 = vunpack.c.l.b16 %v792
        %v1179 = vunpack.c.h.b16 %v792
        %v1180 = vunpack.c.l.b16 %v793
        %v1181 = vunpack.c.h.b16 %v793
        %v1182 = vunpack.c.l.b16 %v794
        %v1183 = vunpack.c.h.b16 %v794
        %v1184 = vunpack.c.l.b16 %v795
        %v1185 = vunpack.c.h.b16 %v795
        %v1186 = vunpack.c.l.b16 %v796
        %v1187 = vunpack.c.h.b16 %v796
        %v1188 = vunpack.c.l.b16 %v797
        %v1189 = vunpack.c.h.b16 %v797
        %v1190 = vunpack.c.l.b16 %v798
        %v1191 = vunpack.c.h.b16 %v798
        %v1192 = vunpack.c.l.b16 %v799
        %v1193 = vunpack.c.h.b16 %v799
        %v1194 = vunpack.c.l.b16 %v800
        %v1195 = vunpack.c.h.b16 %v800
        %v1196 = vunpack.c.l.b16 %v801
        %v1197 = vunpack.c.h.b16 %v801
        %v1198 = vunpack.c.l.b16 %v802
        %v1199 = vunpack.c.h.b16 %v802
        %v1200 = vunpack.c.l.b16 %v803
        %v1201 = vunpack.c.h.b16 %v803
        %v1202 = vunpack.c.l.b16 %v804
        %v1203 = vunpack.c.h.b16 %v804
        %v1204 = vunpack.c.l.b16 %v805
        %v1205 = vunpack.c.h.b16 %v805
        %v1206 = vunpack.c.l.b16 %v806
        %v1207 = vunpack.c.h.b16 %v806
        %v1208 = vunpack.c.l.b16 %v807
        %v1209 = vunpack.c.h.b16 %v807
        %v1210 = vunpack.c.l.b16 %v808
        %v1211 = vunpack.c.h.b16 %v808
        %v1212 = vunpack.c.l.b16 %v809
        %v1213 = vunpack.c.h.b16 %v809
        %v1214 = vunpack.c.l.b16 %v810
        %v1215 = vunpack.c.h.b16 %v810
        %v1216 = vunpack.c.l.b16 %v811
        %v1217 = vunpack.c.h.b16 %v811
        %v1218 = vunpack.c.l.b16 %v812
        %v1219 = vunpack.c.h.b16 %v812
        %v1220 = vunpack.c.l.b16 %v813
        %v1221 = vunpack.c.h.b16 %v813
        %v1222 = vunpack.c.l.b16 %v814
        %v1223 = vunpack.c.h.b16 %v814
        %v1224 = vunpack.c.l.b16 %v815
        %v1225 = vunpack.c.h.b16 %v815
        %v1226 = vunpack.c.l.b16 %v816
        %v1227 = vunpack.c.h.b16 %v816
        %v1228 = vunpack.c.l.b16 %v817
        %v1229 = vunpack.c.h.b16 %v817
        %v1230 = vunpack.c.l.b16 %v818
        %v1231 = vunpack.c.h.b16 %v818
        %v1232 = vunpack.c.l.b16 %v819
        %v1233 = vunpack.c.h.b16 %v819
        %v1234 = vunpack.c.l.b16 %v820
        %v1235 = vunpack.c.h.b16 %v820
        %v1236 = vunpack.c.l.b16 %v821
        %v1237 = vunpack.c.h.b16 %v821
        %v1238 = vunpack.c.l.b16 %v822
        %v1239 = vunpack.c.h.b16 %v822
        %v1240 = vunpack.c.l.b16 %v823
        %v1241 = vunpack.c.h.b16 %v823
        %v1242 = vunpack.c.l.b16 %v824
        %v1243 = vunpack.c.h.b16 %v824
        %v1244 = vunpack.c.l.b16 %v825
        %v1245 = vunpack.c.h.b16 %v825
        %v1246 = vunpack.c.l.b16 %v826
        %v1247 = vunpack.c.h.b16 %v826
        %v1248 = vunpack.c.l.b16 %v827
        %v1249 = vunpack.c.h.b16 %v827
        %v1250 = vunpack.c.l.b16 %v828
        %v1251 = vunpack.c.h.b16 %v828
        %v1252 = vunpack.c.l.b16 %v829
        %v1253 = vunpack.c.h.b16 %v829
        %v1254 = vunpack.c.l.b16 %v830
        %v1255 = vunpack.c.h.b16 %v830
        %v1256 = vunpack.c.l.b16 %v831
        %v1257 = vunpack.c.h.b16 %v831
        %v1258 = vunpack.c.l.b16 %v832
        %v1259 = vunpack.c.h.b16 %v832
        %v1260 = vunpack.c.l.b16 %v833
        %v1261 = vunpack.c.h.b16 %v833
        %v1262 = vunpack.c.l.b16 %v834
        %v1263 = vunpack.c.h.b16 %v834
        %v1264 = vunpack.c.l.b16 %v835
        %v1265 = vunpack.c.h.b16 %v835
        %v1266 = vunpack.c.l.b16 %v836
        %v1267 = vunpack.c.h.b16 %v836
        %v1268 = vunpack.c.l.b16 %v837
        %v1269 = vunpack.c.h.b16 %v837
        %v1270 = vunpack.c.l.b16 %v838
        %v1271 = vunpack.c.h.b16 %v838
        %v1272 = vunpack.c.l.b16 %v839
        %v1273 = vunpack.c.h.b16 %v839
        %v1274 = vunpack.c.l.b16 %v840
        %v1275 = vunpack.c.h.b16 %v840
        %v1276 = vunpack.c.l.b16 %v841
        %v1277 = vunpack.c.h.b16 %v841
        %v1278 = vunpack.c.l.b16 %v842
        %v1279 = vunpack.c.h.b16 %v842
        %v1280 = vunpack.c.l.b16 %v843
        %v1281 = vunpack.c.h.b16 %v843
        %v1282 = vunpack.c.l.b16 %v844
        %v1283 = vunpack.c.h.b16 %v844
        %v1284 = vunpack.c.l.b16 %v845
        %v1285 = vunpack.c.h.b16 %v845
        %v1286 = vunpack.c.l.b16 %v846
        %v1287 = vunpack.c.h.b16 %v846
        %v1288 = vunpack.c.l.b16 %v847
        %v1289 = vunpack.c.h.b16 %v847
        %v1290 = vunpack.c.l.b16 %v848
        %v1291 = vunpack.c.h.b16 %v848
        %v1292 = vunpack.c.l.b16 %v849
        %v1293 = vunpack.c.h.b16 %v849
        %v1294 = vunpack.c.l.b16 %v850
        %v1295 = vunpack.c.h.b16 %v850
        %v1296 = vunpack.c.l.b16 %v851
        %v1297 = vunpack.c.h.b16 %v851
        %v1298 = vunpack.c.l.b16 %v852
        %v1299 = vunpack.c.h.b16 %v852
        %v1300 = vunpack.c.l.b16 %v853
        %v1301 = vunpack.c.h.b16 %v853
        %v1302 = vunpack.c.l.b16 %v854
        %v1303 = vunpack.c.h.b16 %v854
        %v1304 = vunpack.c.l.b16 %v855
        %v1305 = vunpack.c.h.b16 %v855
        %v1306 = vunpack.c.l.b16 %v856
        %v1307 = vunpack.c.h.b16 %v856
        %v1308 = vunpack.c.l.b16 %v857
        %v1309 = vunpack.c.h.b16 %v857
        %v1310 = vunpack.c.l.b16 %v858
        %v1311 = vunpack.c.h.b16 %v858
        %v1312 = vunpack.c.l.b16 %v859
        %v1313 = vunpack.c.h.b16 %v859
        %v1314 = vunpack.c.l.b16 %v860
        %v1315 = vunpack.c.h.b16 %v860
        %v1316 = vunpack.c.l.b16 %v861
        %v1317 = vunpack.c.h.b16 %v861
        %v1318 = vunpack.c.l.b16 %v862
        %v1319 = vunpack.c.h.b16 %v862
        %v1320 = vunpack.c.l.b16 %v863
        %v1321 = vunpack.c.h.b16 %v863
        %v1322 = vunpack.c.l.b16 %v864
        %v1323 = vunpack.c.h.b16 %v864
        %v1324 = vunpack.c.l.b16 %v865
        %v1325 = vunpack.c.h.b16 %v865
        %v1326 = vunpack.c.l.b16 %v866
        %v1327 = vunpack.c.h.b16 %v866
        %v1328 = vunpack.c.l.b16 %v867
        %v1329 = vunpack.c.h.b16 %v867
        %v1330 = vunpack.c.l.b16 %v868
        %v1331 = vunpack.c.h.b16 %v868
        %v1332 = vunpack.c.l.b16 %v869
        %v1333 = vunpack.c.h.b16 %v869
        %v1334 = vunpack.c.l.b16 %v870
        %v1335 = vunpack.c.h.b16 %v870
        %v1336 = vunpack.c.l.b16 %v871
        %v1337 = vunpack.c.h.b16 %v871
        %v1338 = vunpack.c.l.b16 %v872
        %v1339 = vunpack.c.h.b16 %v872
        %v1340 = vunpack.c.l.b16 %v873
        %v1341 = vunpack.c.h.b16 %v873
        %v1342 = vunpack.c.l.b16 %v874
        %v1343 = vunpack.c.h.b16 %v874
        %v1344 = vunpack.c.l.b16 %v875
        %v1345 = vunpack.c.h.b16 %v875
        %v1346 = vunpack.c.l.b16 %v876
        %v1347 = vunpack.c.h.b16 %v876
        %v1348 = vunpack.c.l.b16 %v877
        %v1349 = vunpack.c.h.b16 %v877
        %v1350 = vunpack.c.l.b16 %v878
        %v1351 = vunpack.c.h.b16 %v878
        %v1352 = vunpack.c.l.b16 %v879
        %v1353 = vunpack.c.h.b16 %v879
        %v1354 = vunpack.c.l.b16 %v880
        %v1355 = vunpack.c.h.b16 %v880
        %v1356 = vunpack.c.l.b16 %v881
        %v1357 = vunpack.c.h.b16 %v881
        %v1358 = vunpack.c.l.b16 %v882
        %v1359 = vunpack.c.h.b16 %v882
        %v1360 = vunpack.c.l.b16 %v883
        %v1361 = vunpack.c.h.b16 %v883
        %v1362 = vunpack.c.l.b16 %v884
        %v1363 = vunpack.c.h.b16 %v884
        %v1364 = vunpack.c.l.b16 %v885
        %v1365 = vunpack.c.h.b16 %v885
        %v1366 = vunpack.c.l.b16 %v886
        %v1367 = vunpack.c.h.b16 %v886
        %v1368 = vunpack.c.l.b16 %v887
        %v1369 = vunpack.c.h.b16 %v887
        %v1370 = vunpack.c.l.b16 %v888
        %v1371 = vunpack.c.h.b16 %v888
        %v1372 = vunpack.c.l.b16 %v889
        %v1373 = vunpack.c.h.b16 %v889
        %v1374 = vunpack.c.l.b16 %v890
        %v1375 = vunpack.c.h.b16 %v890
        %v1376 = vunpack.c.l.b16 %v891
        %v1377 = vunpack.c.h.b16 %v891
        %v1378 = vunpack.c.l.b16 %v892
        %v1379 = vunpack.c.h.b16 %v892
        %v1380 = vunpack.c.l.b16 %v893
        %v1381 = vunpack.c.h.b16 %v893
        %v1382 = vunpack.c.l.b16 %v894
        %v1383 = vunpack.c.h.b16 %v894
        %v1384 = vunpack.c.l.b16 %v895
        %v1385 = vunpack.c.h.b16 %v895
        %v1386 = vunpack.c.l.b16 %v896
        %v1387 = vunpack.c.h.b16 %v896
        %v1388 = vunpack.c.l.b16 %v897
        %v1389 = vunpack.c.h.b16 %v897
        %v1390 = vunpack.c.l.b16 %v898
        %v1391 = vunpack.c.h.b16 %v898
        %v1392 = vunpack.c.l.b16 %v899
        %v1393 = vunpack.c.h.b16 %v899
        %v1394 = vunpack.c.l.b16 %v900
        %v1395 = vunpack.c.h.b16 %v900
        %v1396 = vunpack.c.l.b16 %v901
        %v1397 = vunpack.c.h.b16 %v901
        %v1398 = vunpack.c.l.b16 %v902
        %v1399 = vunpack.c.h.b16 %v902
        %v1400 = vunpack.c.l.b16 %v903
        %v1401 = vunpack.c.h.b16 %v903
        %v1402 = vunpack.c.l.b16 %v904
        %v1403 = vunpack.c.h.b16 %v904
        %v1404 = vunpack.c.l.b16 %v905
        %v1405 = vunpack.c.h.b16 %v905
        %v1406 = vunpack.c.l.b16 %v906
        %v1407 = vunpack.c.h.b16 %v906
        %v1408 = vunpack.c.l.b16 %v907
        %v1409 = vunpack.c.h.b16 %v907
        %v1410 = vunpack.c.l.b16 %v908
        %v1411 = vunpack.c.h.b16 %v908
        %v1412 = vunpack.c.l.b16 %v909
        %v1413 = vunpack.c.h.b16 %v909
        %v1414 = vunpack.c.l.b16 %v910
        %v1415 = vunpack.c.h.b16 %v910
        %v1416 = vunpack.c.l.b16 %v911
        %v1417 = vunpack.c.h.b16 %v911
        %v1418 = vunpack.c.l.b16 %v912
        %v1419 = vunpack.c.h.b16 %v912
        %v1420 = vunpack.c.l.b16 %v913
        %v1421 = vunpack.c.h.b16 %v913
        %v1422 = vunpack.c.l.b16 %v914
        %v1423 = vunpack.c.h.b16 %v914
        %v1424 = vunpack.c.l.b16 %v915
        %v1425 = vunpack.c.h.b16 %v915
        %v1426 = vunpack.c.l.b16 %v916
        %v1427 = vunpack.c.h.b16 %v916
        %v1428 = vunpack.c.l.b16 %v917
        %v1429 = vunpack.c.h.b16 %v917
        %v1430 = vunpack.c.l.b16 %v918
        %v1431 = vunpack.c.h.b16 %v918
        %v1432 = vunpack.c.l.b16 %v919
        %v1433 = vunpack.c.h.b16 %v919
        %v1434 = vunpack.c.l.b16 %v920
        %v1435 = vunpack.c.h.b16 %v920
        %v1436 = vunpack.c.l.b16 %v921
        %v1437 = vunpack.c.h.b16 %v921
        %v1438 = vunpack.c.l.b16 %v922
        %v1439 = vunpack.c.h.b16 %v922
        %v1440 = vunpack.c.l.b16 %v923
        %v1441 = vunpack.c.h.b16 %v923
        %v1442 = vunpack.c.l.b16 %v924
        %v1443 = vunpack.c.h.b16 %v924
        %v1444 = vunpack.c.l.b16 %v925
        %v1445 = vunpack.c.h.b16 %v925
        %v1446 = vunpack.c.l.b16 %v926
        %v1447 = vunpack.c.h.b16 %v926
        %v1448 = vunpack.c.l.b16 %v927
        %v1449 = vunpack.c.h.b16 %v927
        %v1450 = vunpack.c.l.b16 %v928
        %v1451 = vunpack.c.h.b16 %v928
        %v1452 = vunpack.c.l.b16 %v929
        %v1453 = vunpack.c.h.b16 %v929
        %v1454 = vunpack.c.l.b16 %v930
        %v1455 = vunpack.c.h.b16 %v930
        %v1456 = vunpack.c.l.b16 %v931
        %v1457 = vunpack.c.h.b16 %v931
        %v1458 = vunpack.c.l.b16 %v932
        %v1459 = vunpack.c.h.b16 %v932
        %v1460 = vunpack.c.l.b16 %v933
        %v1461 = vunpack.c.h.b16 %v933
        %v1462 = vunpack.c.l.b16 %v934
        %v1463 = vunpack.c.h.b16 %v934
        %v1464 = vunpack.c.l.b16 %v935
        %v1465 = vunpack.c.h.b16 %v935
        %v1466 = vunpack.c.l.b16 %v936
        %v1467 = vunpack.c.h.b16 %v936
        %v1468 = vunpack.c.l.b16 %v937
        %v1469 = vunpack.c.h.b16 %v937
        %v1470 = vunpack.c.l.b16 %v938
        %v1471 = vunpack.c.h.b16 %v938
        %v1472 = vunpack.c.l.b16 %v939
        %v1473 = vunpack.c.h.b16 %v939
        %v1474 = vunpack.c.l.b16 %v940
        %v1475 = vunpack.c.h.b16 %v940
        %v1476 = vunpack.c.l.b16 %v941
        %v1477 = vunpack.c.h.b16 %v941
        %v1478 = vunpack.c.l.b16 %v942
        %v1479 = vunpack.c.h.b16 %v942
        %v1480 = vunpack.c.l.b16 %v943
        %v1481 = vunpack.c.h.b16 %v943
        %v1482 = vunpack.c.l.b16 %v944
        %v1483 = vunpack.c.h.b16 %v944
        %v1484 = vunpack.c.l.b16 %v945
        %v1485 = vunpack.c.h.b16 %v945
        %v1486 = vunpack.c.l.b16 %v946
        %v1487 = vunpack.c.h.b16 %v946
        %v1488 = vunpack.c.l.b16 %v947
        %v1489 = vunpack.c.h.b16 %v947
        %v1490 = vunpack.c.l.b16 %v948
        %v1491 = vunpack.c.h.b16 %v948
        %v1492 = vunpack.c.l.b16 %v949
        %v1493 = vunpack.c.h.b16 %v949
        %v1494 = vunpack.c.l.b16 %v950
        %v1495 = vunpack.c.h.b16 %v950
        %v1496 = vunpack.c.l.b16 %v951
        %v1497 = vunpack.c.h.b16 %v951
        %v1498 = vunpack.c.l.b16 %v952
        %v1499 = vunpack.c.h.b16 %v952
        %v1500 = vunpack.c.l.b16 %v953
        %v1501 = vunpack.c.h.b16 %v953
        %v1502 = vunpack.c.l.b16 %v954
        %v1503 = vunpack.c.h.b16 %v954
        %v1504 = vunpack.c.l.b16 %v955
        %v1505 = vunpack.c.h.b16 %v955
        %v1506 = vunpack.c.l.b16 %v956
        %v1507 = vunpack.c.h.b16 %v956
        %v1508 = vunpack.c.l.b16 %v957
        %v1509 = vunpack.c.h.b16 %v957
        %v1510 = vunpack.c.l.b16 %v958
        %v1511 = vunpack.c.h.b16 %v958
        %v1512 = vunpack.c.l.b16 %v959
        %v1513 = vunpack.c.h.b16 %v959
        %v1514 = vunpack.c.l.b16 %v960
        %v1515 = vunpack.c.h.b16 %v960
        %v1516 = vunpack.c.l.b16 %v961
        %v1517 = vunpack.c.h.b16 %v961
        %v1518 = vunpack.c.l.b16 %v962
        %v1519 = vunpack.c.h.b16 %v962
        %v1520 = vunpack.c.l.b16 %v963
        %v1521 = vunpack.c.h.b16 %v963
        %v1522 = vunpack.c.l.b16 %v964
        %v1523 = vunpack.c.h.b16 %v964
        %v1524 = vunpack.c.l.b16 %v965
        %v1525 = vunpack.c.h.b16 %v965
        %v1526 = vunpack.c.l.b16 %v966
        %v1527 = vunpack.c.h.b16 %v966
        %v1528 = vunpack.c.l.b16 %v967
        %v1529 = vunpack.c.h.b16 %v967
        %v1530 = vunpack.c.l.b16 %v968
        %v1531 = vunpack.c.h.b16 %v968
        %v1532 = vunpack.c.l.b16 %v969
        %v1533 = vunpack.c.h.b16 %v969
        %v1534 = vunpack.c.l.b16 %v970
        %v1535 = vunpack.c.h.b16 %v970
        %v1536 = vunpack.c.l.b16 %v971
        %v1537 = vunpack.c.h.b16 %v971
        %v1538 = vunpack.c.l.b16 %v972
        %v1539 = vunpack.c.h.b16 %v972
        %v1540 = vunpack.c.l.b16 %v973
        %v1541 = vunpack.c.h.b16 %v973
        %v1542 = vunpack.c.l.b16 %v974
        %v1543 = vunpack.c.h.b16 %v974
        %v1544 = vunpack.c.l.b16 %v975
        %v1545 = vunpack.c.h.b16 %v975
        %v1546 = vunpack.c.l.b16 %v976
        %v1547 = vunpack.c.h.b16 %v976
        %v1548 = vunpack.c.l.b16 %v977
        %v1549 = vunpack.c.h.b16 %v977
        %v1550 = vunpack.c.l.b16 %v978
        %v1551 = vunpack.c.h.b16 %v978
        %v1552 = vunpack.c.l.b16 %v979
        %v1553 = vunpack.c.h.b16 %v979
        %v1554 = vunpack.c.l.b16 %v980
        %v1555 = vunpack.c.h.b16 %v980
        %v1556 = vunpack.c.l.b16 %v981
        %v1557 = vunpack.c.h.b16 %v981
        %v1558 = vpack.c.b16 %v1178, %v1174
        %v1559 = vpack.c.b16 %v1179, %v1175
        %v1560 = vpack.c.b16 %v1180, %v1176
        %v1561 = vpack.c.b16 %v1181, %v1177
        %v1562 = vpack.c.b16 %v1186, %v1182
        %v1563 = vpack.c.b16 %v1187, %v1183
        %v1564 = vpack.c.b16 %v1188, %v1184
        %v1565 = vpack.c.b16 %v1189, %v1185
        %v1566 = vpack.c.b16 %v1194, %v1190
        %v1567 = vpack.c.b16 %v1195, %v1191
        %v1568 = vpack.c.b16 %v1196, %v1192
        %v1569 = vpack.c.b16 %v1197, %v1193
        %v1570 = vpack.c.b16 %v1202, %v1198
        %v1571 = vpack.c.b16 %v1203, %v1199
        %v1572 = vpack.c.b16 %v1204, %v1200
        %v1573 = vpack.c.b16 %v1205, %v1201
        %v1574 = vpack.c.b16 %v1210, %v1206
        %v1575 = vpack.c.b16 %v1211, %v1207
        %v1576 = vpack.c.b16 %v1212, %v1208
        %v1577 = vpack.c.b16 %v1213, %v1209
        %v1578 = vpack.c.b16 %v1218, %v1214
        %v1579 = vpack.c.b16 %v1219, %v1215
        %v1580 = vpack.c.b16 %v1220, %v1216
        %v1581 = vpack.c.b16 %v1221, %v1217
        %v1582 = vpack.c.b16 %v1226, %v1222
        %v1583 = vpack.c.b16 %v1227, %v1223
        %v1584 = vpack.c.b16 %v1228, %v1224
        %v1585 = vpack.c.b16 %v1229, %v1225
        %v1586 = vpack.c.b16 %v1234, %v1230
        %v1587 = vpack.c.b16 %v1235, %v1231
        %v1588 = vpack.c.b16 %v1236, %v1232
        %v1589 = vpack.c.b16 %v1237, %v1233
        %v1590 = vpack.c.b16 %v1242, %v1238
        %v1591 = vpack.c.b16 %v1243, %v1239
        %v1592 = vpack.c.b16 %v1244, %v1240
        %v1593 = vpack.c.b16 %v1245, %v1241
        %v1594 = vpack.c.b16 %v1250, %v1246
        %v1595 = vpack.c.b16 %v1251, %v1247
        %v1596 = vpack.c.b16 %v1252, %v1248
        %v1597 = vpack.c.b16 %v1253, %v1249
        %v1598 = vpack.c.b16 %v1258, %v1254
        %v1599 = vpack.c.b16 %v1259, %v1255
        %v1600 = vpack.c.b16 %v1260, %v1256
        %v1601 = vpack.c.b16 %v1261, %v1257
        %v1602 = vpack.c.b16 %v1266, %v1262
        %v1603 = vpack.c.b16 %v1267, %v1263
        %v1604 = vpack.c.b16 %v1268, %v1264
        %v1605 = vpack.c.b16 %v1269, %v1265
        %v1606 = vpack.c.b16 %v1274, %v1270
        %v1607 = vpack.c.b16 %v1275, %v1271
        %v1608 = vpack.c.b16 %v1276, %v1272
        %v1609 = vpack.c.b16 %v1277, %v1273
        %v1610 = vpack.c.b16 %v1282, %v1278
        %v1611 = vpack.c.b16 %v1283, %v1279
        %v1612 = vpack.c.b16 %v1284, %v1280
        %v1613 = vpack.c.b16 %v1285, %v1281
        %v1614 = vpack.c.b16 %v1290, %v1286
        %v1615 = vpack.c.b16 %v1291, %v1287
        %v1616 = vpack.c.b16 %v1292, %v1288
        %v1617 = vpack.c.b16 %v1293, %v1289
        %v1618 = vpack.c.b16 %v1298, %v1294
        %v1619 = vpack.c.b16 %v1299, %v1295
        %v1620 = vpack.c.b16 %v1300, %v1296
        %v1621 = vpack.c.b16 %v1301, %v1297
        %v1622 = vpack.c.b16 %v1306, %v1302
        %v1623 = vpack.c.b16 %v1307, %v1303
        %v1624 = vpack.c.b16 %v1308, %v1304
        %v1625 = vpack.c.b16 %v1309, %v1305
        %v1626 = vpack.c.b16 %v1314, %v1310
        %v1627 = vpack.c.b16 %v1315, %v1311
        %v1628 = vpack.c.b16 %v1316, %v1312
        %v1629 = vpack.c.b16 %v1317, %v1313
        %v1630 = vpack.c.b16 %v1322, %v1318
        %v1631 = vpack.c.b16 %v1323, %v1319
        %v1632 = vpack.c.b16 %v1324, %v1320
        %v1633 = vpack.c.b16 %v1325, %v1321
        %v1634 = vpack.c.b16 %v1330, %v1326
        %v1635 = vpack.c.b16 %v1331, %v1327
        %v1636 = vpack.c.b16 %v1332, %v1328
        %v1637 = vpack.c.b16 %v1333, %v1329
        %v1638 = vpack.c.b16 %v1338, %v1334
        %v1639 = vpack.c.b16 %v1339, %v1335
        %v1640 = vpack.c.b16 %v1340, %v1336
        %v1641 = vpack.c.b16 %v1341, %v1337
        %v1642 = vpack.c.b16 %v1346, %v1342
        %v1643 = vpack.c.b16 %v1347, %v1343
        %v1644 = vpack.c.b16 %v1348, %v1344
        %v1645 = vpack.c.b16 %v1349, %v1345
        %v1646 = vpack.c.b16 %v1354, %v1350
        %v1647 = vpack.c.b16 %v1355, %v1351
        %v1648 = vpack.c.b16 %v1356, %v1352
        %v1649 = vpack.c.b16 %v1357, %v1353
        %v1650 = vpack.c.b16 %v1362, %v1358
        %v1651 = vpack.c.b16 %v1363, %v1359
        %v1652 = vpack.c.b16 %v1364, %v1360
        %v1653 = vpack.c.b16 %v1365, %v1361
        %v1654 = vpack.c.b16 %v1370, %v1366
        %v1655 = vpack.c.b16 %v1371, %v1367
        %v1656 = vpack.c.b16 %v1372, %v1368
        %v1657 = vpack.c.b16 %v1373, %v1369
        %v1658 = vpack.c.b16 %v1378, %v1374
        %v1659 = vpack.c.b16 %v1379, %v1375
        %v1660 = vpack.c.b16 %v1380, %v1376
        %v1661 = vpack.c.b16 %v1381, %v1377
        %v1662 = vpack.c.b16 %v1386, %v1382
        %v1663 = vpack.c.b16 %v1387, %v1383
        %v1664 = vpack.c.b16 %v1388, %v1384
        %v1665 = vpack.c.b16 %v1389, %v1385
        %v1666 = vpack.c.b16 %v1394, %v1390
        %v1667 = vpack.c.b16 %v1395, %v1391
        %v1668 = vpack.c.b16 %v1396, %v1392
        %v1669 = vpack.c.b16 %v1397, %v1393
        %v1670 = vpack.c.b16 %v1402, %v1398
        %v1671 = vpack.c.b16 %v1403, %v1399
        %v1672 = vpack.c.b16 %v1404, %v1400
        %v1673 = vpack.c.b16 %v1405, %v1401
        %v1674 = vpack.c.b16 %v1410, %v1406
        %v1675 = vpack.c.b16 %v1411, %v1407
        %v1676 = vpack.c.b16 %v1412, %v1408
        %v1677 = vpack.c.b16 %v1413, %v1409
        %v1678 = vpack.c.b16 %v1418, %v1414
        %v1679 = vpack.c.b16 %v1419, %v1415
        %v1680 = vpack.c.b16 %v1420, %v1416
        %v1681 = vpack.c.b16 %v1421, %v1417
        %v1682 = vpack.c.b16 %v1426, %v1422
        %v1683 = vpack.c.b16 %v1427, %v1423
        %v1684 = vpack.c.b16 %v1428, %v1424
        %v1685 = vpack.c.b16 %v1429, %v1425
        %v1686 = vpack.c.b16 %v1434, %v1430
        %v1687 = vpack.c.b16 %v1435, %v1431
        %v1688 = vpack.c.b16 %v1436, %v1432
        %v1689 = vpack.c.b16 %v1437, %v1433
        %v1690 = vpack.c.b16 %v1442, %v1438
        %v1691 = vpack.c.b16 %v1443, %v1439
        %v1692 = vpack.c.b16 %v1444, %v1440
        %v1693 = vpack.c.b16 %v1445, %v1441
        %v1694 = vpack.c.b16 %v1450, %v1446
        %v1695 = vpack.c.b16 %v1451, %v1447
        %v1696 = vpack.c.b16 %v1452, %v1448
        %v1697 = vpack.c.b16 %v1453, %v1449
        %v1698 = vpack.c.b16 %v1458, %v1454
        %v1699 = vpack.c.b16 %v1459, %v1455
        %v1700 = vpack.c.b16 %v1460, %v1456
        %v1701 = vpack.c.b16 %v1461, %v1457
        %v1702 = vpack.c.b16 %v1466, %v1462
        %v1703 = vpack.c.b16 %v1467, %v1463
        %v1704 = vpack.c.b16 %v1468, %v1464
        %v1705 = vpack.c.b16 %v1469, %v1465
        %v1706 = vpack.c.b16 %v1474, %v1470
        %v1707 = vpack.c.b16 %v1475, %v1471
        %v1708 = vpack.c.b16 %v1476, %v1472
        %v1709 = vpack.c.b16 %v1477, %v1473
        %v1710 = vpack.c.b16 %v1482, %v1478
        %v1711 = vpack.c.b16 %v1483, %v1479
        %v1712 = vpack.c.b16 %v1484, %v1480
        %v1713 = vpack.c.b16 %v1485, %v1481
        %v1714 = vpack.c.b16 %v1490, %v1486
        %v1715 = vpack.c.b16 %v1491, %v1487
        %v1716 = vpack.c.b16 %v1492, %v1488
        %v1717 = vpack.c.b16 %v1493, %v1489
        %v1718 = vpack.c.b16 %v1498, %v1494
        %v1719 = vpack.c.b16 %v1499, %v1495
        %v1720 = vpack.c.b16 %v1500, %v1496
        %v1721 = vpack.c.b16 %v1501, %v1497
        %v1722 = vpack.c.b16 %v1506, %v1502
        %v1723 = vpack.c.b16 %v1507, %v1503
        %v1724 = vpack.c.b16 %v1508, %v1504
        %v1725 = vpack.c.b16 %v1509, %v1505
        %v1726 = vpack.c.b16 %v1514, %v1510
        %v1727 = vpack.c.b16 %v1515, %v1511
        %v1728 = vpack.c.b16 %v1516, %v1512
        %v1729 = vpack.c.b16 %v1517, %v1513
        %v1730 = vpack.c.b16 %v1522, %v1518
        %v1731 = vpack.c.b16 %v1523, %v1519
        %v1732 = vpack.c.b16 %v1524, %v1520
        %v1733 = vpack.c.b16 %v1525, %v1521
        %v1734 = vpack.c.b16 %v1530, %v1526
        %v1735 = vpack.c.b16 %v1531, %v1527
        %v1736 = vpack.c.b16 %v1532, %v1528
        %v1737 = vpack.c.b16 %v1533, %v1529
        %v1738 = vpack.c.b16 %v1538, %v1534
        %v1739 = vpack.c.b16 %v1539, %v1535
        %v1740 = vpack.c.b16 %v1540, %v1536
        %v1741 = vpack.c.b16 %v1541, %v1537
        %v1742 = vpack.c.b16 %v1546, %v1542
        %v1743 = vpack.c.b16 %v1547, %v1543
        %v1744 = vpack.c.b16 %v1548, %v1544
        %v1745 = vpack.c.b16 %v1549, %v1545
        %v1746 = vpack.c.b16 %v1554, %v1550
        %v1747 = vpack.c.b16 %v1555, %v1551
        %v1748 = vpack.c.b16 %v1556, %v1552
        %v1749 = vpack.c.b16 %v1557, %v1553
        %1942 = vmatprep.subr.bf16.mxu0 %v1587
        %1943 = vmatpush1.bf16.msra.mxu0 %v1586
        %1944 = vmatprep.subr.bf16.mxu0 %v1583
        %1945 = vmatpush1.bf16.msra.mxu0 %v1582
        %1946 = vmatprep.subr.bf16.mxu0 %v1579
        %1947 = vmatpush1.bf16.msra.mxu0 %v1578
        %1948 = vmatprep.subr.bf16.mxu0 %v1575
        %1949 = vmatpush1.bf16.msra.mxu0 %v1574
        %1950 = vmatprep.subr.bf16.mxu0 %v1571
        %1951 = vmatpush1.bf16.msra.mxu0 %v1570
        %1952 = vmatprep.subr.bf16.mxu0 %v1567
        %1953 = vmatpush1.bf16.msra.mxu0 %v1566
        %1954 = vmatprep.subr.bf16.mxu0 %v1563
        %1955 = vmatpush1.bf16.msra.mxu0 %v1562
        %1956 = vmatprep.subr.bf16.mxu0 %v1559
        %1957 = vmatpush1.bf16.msra.mxu0 %v1558
        %1958 = vmatprep.subr.bf16.mxu0 %v1619
        %1959 = vmatpush2.bf16.msra.mxu0 %v1618
        %1960 = vmatprep.subr.bf16.mxu0 %v1615
        %1961 = vmatpush2.bf16.msra.mxu0 %v1614
        %1962 = vmatprep.subr.bf16.mxu0 %v1611
        %1963 = vmatpush2.bf16.msra.mxu0 %v1610
        %1964 = vmatprep.subr.bf16.mxu0 %v1607
        %1965 = vmatpush2.bf16.msra.mxu0 %v1606
        %1966 = vmatprep.subr.bf16.mxu0 %v1603
        %1967 = vmatpush2.bf16.msra.mxu0 %v1602
        %1968 = vmatprep.subr.bf16.mxu0 %v1599
        %1969 = vmatpush2.bf16.msra.mxu0 %v1598
        %1970 = vmatprep.subr.bf16.mxu0 %v1595
        %1971 = vmatpush2.bf16.msra.mxu0 %v1594
        %1972 = vmatprep.subr.bf16.mxu0 %v1591
        %1973 = vmatpush2.bf16.msra.mxu0 %v1590
        %1974 = vmatprep.mubr.bf16.mxu0 %v785
        %1975 = vmatmul.mubr.bf16.gmra.mxu0 %v784
        %v1976 = vpop.f32.mrf.mxu0
        %v1977 = vadd.f32 0.0, %v1976
        %v1978 = vpop.f32.mrf.mxu0
        %v1979 = vadd.f32 0.0, %v1978
        %v1980 = vpop.f32.mrf.mxu0
        %v1981 = vadd.f32 0.0, %v1980
        %v1982 = vpop.f32.mrf.mxu0
        %v1983 = vadd.f32 0.0, %v1982
        %1984 = vdwg.mxu0
        %1985 = vmatprep.subr.bf16.mxu0 %v1651
        %1986 = vmatpush1.bf16.msra.mxu0 %v1650
        %1987 = vmatprep.subr.bf16.mxu0 %v1647
        %1988 = vmatpush1.bf16.msra.mxu0 %v1646
        %1989 = vmatprep.subr.bf16.mxu0 %v1643
        %1990 = vmatpush1.bf16.msra.mxu0 %v1642
        %1991 = vmatprep.subr.bf16.mxu0 %v1639
        %1992 = vmatpush1.bf16.msra.mxu0 %v1638
        %1993 = vmatprep.subr.bf16.mxu0 %v1635
        %1994 = vmatpush1.bf16.msra.mxu0 %v1634
        %1995 = vmatprep.subr.bf16.mxu0 %v1631
        %1996 = vmatpush1.bf16.msra.mxu0 %v1630
        %1997 = vmatprep.subr.bf16.mxu0 %v1627
        %1998 = vmatpush1.bf16.msra.mxu0 %v1626
        %1999 = vmatprep.subr.bf16.mxu0 %v1623
        %2000 = vmatpush1.bf16.msra.mxu0 %v1622
        %2001 = vmatprep.subr.bf16.mxu0 %v1683
        %2002 = vmatpush2.bf16.msra.mxu0 %v1682
        %2003 = vmatprep.subr.bf16.mxu0 %v1679
        %2004 = vmatpush2.bf16.msra.mxu0 %v1678
        %2005 = vmatprep.subr.bf16.mxu0 %v1675
        %2006 = vmatpush2.bf16.msra.mxu0 %v1674
        %2007 = vmatprep.subr.bf16.mxu0 %v1671
        %2008 = vmatpush2.bf16.msra.mxu0 %v1670
        %2009 = vmatprep.subr.bf16.mxu0 %v1667
        %2010 = vmatpush2.bf16.msra.mxu0 %v1666
        %2011 = vmatprep.subr.bf16.mxu0 %v1663
        %2012 = vmatpush2.bf16.msra.mxu0 %v1662
        %2013 = vmatprep.subr.bf16.mxu0 %v1659
        %2014 = vmatpush2.bf16.msra.mxu0 %v1658
        %2015 = vmatprep.subr.bf16.mxu0 %v1655
        %2016 = vmatpush2.bf16.msra.mxu0 %v1654
        %2017 = vmatprep.mubr.bf16.mxu0 %v787
        %2018 = vmatmul.mubr.bf16.gmra.mxu0 %v786
        %v2019 = vpop.f32.mrf.mxu0
        %v2020 = vadd.f32 %v1977, %v2019
        %v2021 = vpop.f32.mrf.mxu0
        %v2022 = vadd.f32 %v1979, %v2021
        %v2023 = vpop.f32.mrf.mxu0
        %v2024 = vadd.f32 %v1981, %v2023
        %v2025 = vpop.f32.mrf.mxu0
        %v2026 = vadd.f32 %v1983, %v2025
        %2027 = vdwg.mxu0
        %2028 = vmatprep.subr.bf16.mxu0 %v1715
        %2029 = vmatpush1.bf16.msra.mxu0 %v1714
        %2030 = vmatprep.subr.bf16.mxu0 %v1711
        %2031 = vmatpush1.bf16.msra.mxu0 %v1710
        %2032 = vmatprep.subr.bf16.mxu0 %v1707
        %2033 = vmatpush1.bf16.msra.mxu0 %v1706
        %2034 = vmatprep.subr.bf16.mxu0 %v1703
        %2035 = vmatpush1.bf16.msra.mxu0 %v1702
        %2036 = vmatprep.subr.bf16.mxu0 %v1699
        %2037 = vmatpush1.bf16.msra.mxu0 %v1698
        %2038 = vmatprep.subr.bf16.mxu0 %v1695
        %2039 = vmatpush1.bf16.msra.mxu0 %v1694
        %2040 = vmatprep.subr.bf16.mxu0 %v1691
        %2041 = vmatpush1.bf16.msra.mxu0 %v1690
        %2042 = vmatprep.subr.bf16.mxu0 %v1687
        %2043 = vmatpush1.bf16.msra.mxu0 %v1686
        %2044 = vmatprep.subr.bf16.mxu0 %v1747
        %2045 = vmatpush2.bf16.msra.mxu0 %v1746
        %2046 = vmatprep.subr.bf16.mxu0 %v1743
        %2047 = vmatpush2.bf16.msra.mxu0 %v1742
        %2048 = vmatprep.subr.bf16.mxu0 %v1739
        %2049 = vmatpush2.bf16.msra.mxu0 %v1738
        %2050 = vmatprep.subr.bf16.mxu0 %v1735
        %2051 = vmatpush2.bf16.msra.mxu0 %v1734
        %2052 = vmatprep.subr.bf16.mxu0 %v1731
        %2053 = vmatpush2.bf16.msra.mxu0 %v1730
        %2054 = vmatprep.subr.bf16.mxu0 %v1727
        %2055 = vmatpush2.bf16.msra.mxu0 %v1726
        %2056 = vmatprep.subr.bf16.mxu0 %v1723
        %2057 = vmatpush2.bf16.msra.mxu0 %v1722
        %2058 = vmatprep.subr.bf16.mxu0 %v1719
        %2059 = vmatpush2.bf16.msra.mxu0 %v1718
        %2060 = vmatprep.mubr.bf16.mxu0 %v789
        %2061 = vmatmul.mubr.bf16.gmra.mxu0 %v788
        %v2062 = vpop.f32.mrf.mxu0
        %v2063 = vadd.f32 %v2020, %v2062
        %v2064 = vpop.f32.mrf.mxu0
        %v2065 = vadd.f32 %v2022, %v2064
        %v2066 = vpop.f32.mrf.mxu0
        %v2067 = vadd.f32 %v2024, %v2066
        %v2068 = vpop.f32.mrf.mxu0
        %v2069 = vadd.f32 %v2026, %v2068
        %2070 = vdwg.mxu0
        %2071 = vmatprep.subr.bf16.mxu0 %v1589
        %2072 = vmatpush1.bf16.msra.mxu0 %v1588
        %2073 = vmatprep.subr.bf16.mxu0 %v1585
        %2074 = vmatpush1.bf16.msra.mxu0 %v1584
        %2075 = vmatprep.subr.bf16.mxu0 %v1581
        %2076 = vmatpush1.bf16.msra.mxu0 %v1580
        %2077 = vmatprep.subr.bf16.mxu0 %v1577
        %2078 = vmatpush1.bf16.msra.mxu0 %v1576
        %2079 = vmatprep.subr.bf16.mxu0 %v1573
        %2080 = vmatpush1.bf16.msra.mxu0 %v1572
        %2081 = vmatprep.subr.bf16.mxu0 %v1569
        %2082 = vmatpush1.bf16.msra.mxu0 %v1568
        %2083 = vmatprep.subr.bf16.mxu0 %v1565
        %2084 = vmatpush1.bf16.msra.mxu0 %v1564
        %2085 = vmatprep.subr.bf16.mxu0 %v1561
        %2086 = vmatpush1.bf16.msra.mxu0 %v1560
        %2087 = vmatprep.subr.bf16.mxu0 %v1621
        %2088 = vmatpush2.bf16.msra.mxu0 %v1620
        %2089 = vmatprep.subr.bf16.mxu0 %v1617
        %2090 = vmatpush2.bf16.msra.mxu0 %v1616
        %2091 = vmatprep.subr.bf16.mxu0 %v1613
        %2092 = vmatpush2.bf16.msra.mxu0 %v1612
        %2093 = vmatprep.subr.bf16.mxu0 %v1609
        %2094 = vmatpush2.bf16.msra.mxu0 %v1608
        %2095 = vmatprep.subr.bf16.mxu0 %v1605
        %2096 = vmatpush2.bf16.msra.mxu0 %v1604
        %2097 = vmatprep.subr.bf16.mxu0 %v1601
        %2098 = vmatpush2.bf16.msra.mxu0 %v1600
        %2099 = vmatprep.subr.bf16.mxu0 %v1597
        %2100 = vmatpush2.bf16.msra.mxu0 %v1596
        %2101 = vmatprep.subr.bf16.mxu0 %v1593
        %2102 = vmatpush2.bf16.msra.mxu0 %v1592
        %2103 = vmatprep.mubr.bf16.mxu0 %v785
        %2104 = vmatmul.mubr.bf16.gmra.mxu0 %v784
        %v2105 = vpop.f32.mrf.mxu0
        %v2106 = vadd.f32 0.0, %v2105
        %v2107 = vpop.f32.mrf.mxu0
        %v2108 = vadd.f32 0.0, %v2107
        %v2109 = vpop.f32.mrf.mxu0
        %v2110 = vadd.f32 0.0, %v2109
        %v2111 = vpop.f32.mrf.mxu0
        %v2112 = vadd.f32 0.0, %v2111
        %2113 = vdwg.mxu0
        %2114 = vmatprep.subr.bf16.mxu0 %v1653
        %2115 = vmatpush1.bf16.msra.mxu0 %v1652
        %2116 = vmatprep.subr.bf16.mxu0 %v1649
        %2117 = vmatpush1.bf16.msra.mxu0 %v1648
        %2118 = vmatprep.subr.bf16.mxu0 %v1645
        %2119 = vmatpush1.bf16.msra.mxu0 %v1644
        %2120 = vmatprep.subr.bf16.mxu0 %v1641
        %2121 = vmatpush1.bf16.msra.mxu0 %v1640
        %2122 = vmatprep.subr.bf16.mxu0 %v1637
        %2123 = vmatpush1.bf16.msra.mxu0 %v1636
        %2124 = vmatprep.subr.bf16.mxu0 %v1633
        %2125 = vmatpush1.bf16.msra.mxu0 %v1632
        %2126 = vmatprep.subr.bf16.mxu0 %v1629
        %2127 = vmatpush1.bf16.msra.mxu0 %v1628
        %2128 = vmatprep.subr.bf16.mxu0 %v1625
        %2129 = vmatpush1.bf16.msra.mxu0 %v1624
        %2130 = vmatprep.subr.bf16.mxu0 %v1685
        %2131 = vmatpush2.bf16.msra.mxu0 %v1684
        %2132 = vmatprep.subr.bf16.mxu0 %v1681
        %2133 = vmatpush2.bf16.msra.mxu0 %v1680
        %2134 = vmatprep.subr.bf16.mxu0 %v1677
        %2135 = vmatpush2.bf16.msra.mxu0 %v1676
        %2136 = vmatprep.subr.bf16.mxu0 %v1673
        %2137 = vmatpush2.bf16.msra.mxu0 %v1672
        %2138 = vmatprep.subr.bf16.mxu0 %v1669
        %2139 = vmatpush2.bf16.msra.mxu0 %v1668
        %2140 = vmatprep.subr.bf16.mxu0 %v1665
        %2141 = vmatpush2.bf16.msra.mxu0 %v1664
        %2142 = vmatprep.subr.bf16.mxu0 %v1661
        %2143 = vmatpush2.bf16.msra.mxu0 %v1660
        %2144 = vmatprep.subr.bf16.mxu0 %v1657
        %2145 = vmatpush2.bf16.msra.mxu0 %v1656
        %2146 = vmatprep.mubr.bf16.mxu0 %v787
        %2147 = vmatmul.mubr.bf16.gmra.mxu0 %v786
        %v2148 = vpop.f32.mrf.mxu0
        %v2149 = vadd.f32 %v2106, %v2148
        %v2150 = vpop.f32.mrf.mxu0
        %v2151 = vadd.f32 %v2108, %v2150
        %v2152 = vpop.f32.mrf.mxu0
        %v2153 = vadd.f32 %v2110, %v2152
        %v2154 = vpop.f32.mrf.mxu0
        %v2155 = vadd.f32 %v2112, %v2154
        %2156 = vdwg.mxu0
        %2157 = vmatprep.subr.bf16.mxu0 %v1717
        %2158 = vmatpush1.bf16.msra.mxu0 %v1716
        %2159 = vmatprep.subr.bf16.mxu0 %v1713
        %2160 = vmatpush1.bf16.msra.mxu0 %v1712
        %2161 = vmatprep.subr.bf16.mxu0 %v1709
        %2162 = vmatpush1.bf16.msra.mxu0 %v1708
        %2163 = vmatprep.subr.bf16.mxu0 %v1705
        %2164 = vmatpush1.bf16.msra.mxu0 %v1704
        %2165 = vmatprep.subr.bf16.mxu0 %v1701
        %2166 = vmatpush1.bf16.msra.mxu0 %v1700
        %2167 = vmatprep.subr.bf16.mxu0 %v1697
        %2168 = vmatpush1.bf16.msra.mxu0 %v1696
        %2169 = vmatprep.subr.bf16.mxu0 %v1693
        %2170 = vmatpush1.bf16.msra.mxu0 %v1692
        %2171 = vmatprep.subr.bf16.mxu0 %v1689
        %2172 = vmatpush1.bf16.msra.mxu0 %v1688
        %2173 = vmatprep.subr.bf16.mxu0 %v1749
        %2174 = vmatpush2.bf16.msra.mxu0 %v1748
        %2175 = vmatprep.subr.bf16.mxu0 %v1745
        %2176 = vmatpush2.bf16.msra.mxu0 %v1744
        %2177 = vmatprep.subr.bf16.mxu0 %v1741
        %2178 = vmatpush2.bf16.msra.mxu0 %v1740
        %2179 = vmatprep.subr.bf16.mxu0 %v1737
        %2180 = vmatpush2.bf16.msra.mxu0 %v1736
        %2181 = vmatprep.subr.bf16.mxu0 %v1733
        %2182 = vmatpush2.bf16.msra.mxu0 %v1732
        %2183 = vmatprep.subr.bf16.mxu0 %v1729
        %2184 = vmatpush2.bf16.msra.mxu0 %v1728
        %2185 = vmatprep.subr.bf16.mxu0 %v1725
        %2186 = vmatpush2.bf16.msra.mxu0 %v1724
        %2187 = vmatprep.subr.bf16.mxu0 %v1721
        %2188 = vmatpush2.bf16.msra.mxu0 %v1720
        %2189 = vmatprep.mubr.bf16.mxu0 %v789
        %2190 = vmatmul.mubr.bf16.gmra.mxu0 %v788
        %v2191 = vpop.f32.mrf.mxu0
        %v2192 = vadd.f32 %v2149, %v2191
        %v2193 = vpop.f32.mrf.mxu0
        %v2194 = vadd.f32 %v2151, %v2193
        %v2195 = vpop.f32.mrf.mxu0
        %v2196 = vadd.f32 %v2153, %v2195
        %v2197 = vpop.f32.mrf.mxu0
        %v2198 = vadd.f32 %v2155, %v2197
        %2199 = vdwg.mxu0
        %v2200 = vpack.c.bf16 %v2067, %v2063
        %v2201 = vpack.c.bf16 %v2069, %v2065
        %v2202 = vpack.c.bf16 %v2196, %v2192
        %v2203 = vpack.c.bf16 %v2198, %v2194
        %v2204 = vld [vmem:[#allocation7] sm:$0xf]
        %v2206 = vlaneseq
        %v2207 = vshrl.u32 %v2206, 7
        %v2208 = vsub.s32 0, %v2207
        %v2209 = vrot.slane %v2204, %v2208
        %v2210 = vlaneseq
        %v2211 = vshrl.u32 %v2210, 7
        %v2212 = vsub.s32 1, %v2211
        %v2213 = vrot.slane %v2204, %v2212
        %v2214 = vlaneseq
        %v2215 = vshrl.u32 %v2214, 7
        %v2216 = vsub.s32 2, %v2215
        %v2217 = vrot.slane %v2204, %v2216
        %v2218 = vlaneseq
        %v2219 = vshrl.u32 %v2218, 7
        %v2220 = vsub.s32 3, %v2219
        %v2221 = vrot.slane %v2204, %v2220
        %v2226 = vpack.c.bf16 %v2209, %v2209
        %v2227 = vpack.c.bf16 %v2213, %v2213
        %v2228 = vpack.c.bf16 %v2217, %v2217
        %v2229 = vpack.c.bf16 %v2221, %v2221
        %v2231 = vpack.i.b16 %v2226, %v2226
        %v2233 = vlaneseq
        %v2234 = vshrl.u32 %v2233, 7
        %v2235 = vsub.s32 0, %v2234
        %v2236 = vrot.slane %v2231, %v2235
        %v2238 = vpack.i.b16 %v2227, %v2227
        %v2240 = vlaneseq
        %v2241 = vshrl.u32 %v2240, 7
        %v2242 = vsub.s32 0, %v2241
        %v2243 = vrot.slane %v2238, %v2242
        %v2245 = vpack.i.b16 %v2228, %v2228
        %v2247 = vlaneseq
        %v2248 = vshrl.u32 %v2247, 7
        %v2249 = vsub.s32 0, %v2248
        %v2250 = vrot.slane %v2245, %v2249
        %v2252 = vpack.i.b16 %v2229, %v2229
        %v2254 = vlaneseq
        %v2255 = vshrl.u32 %v2254, 7
        %v2256 = vsub.s32 0, %v2255
        %v2257 = vrot.slane %v2252, %v2256
        %v2258 = vadd.bf16 %v2200, %v2236
        %v2259 = vadd.bf16 %v2201, %v2243
        %v2260 = vadd.bf16 %v2202, %v2250
        %v2261 = vadd.bf16 %v2203, %v2257
        %v2262 = vmax.bf16 %v2258, 0
        %v2263 = vmax.bf16 %v2259, 0
        %v2264 = vmax.bf16 %v2260, 0
        %v2265 = vmax.bf16 %v2261, 0
        %v2266 = vld [vmem:[#allocation8] sm:$0xff]
        %v2267 = vld [vmem:[#allocation8 + $0x8] sm:$0xff]
        %v2268 = vld [vmem:[#allocation8 + $0x10] sm:$0xff]
        %v2269 = vld [vmem:[#allocation8 + $0x18] sm:$0xff]
        %v2270 = vld [vmem:[#allocation8 + $0x20] sm:$0xff]
        %v2271 = vld [vmem:[#allocation8 + $0x28] sm:$0xff]
        %v2272 = vld [vmem:[#allocation8 + $0x30] sm:$0xff]
        %v2273 = vld [vmem:[#allocation8 + $0x38] sm:$0xff]
        %v2274 = vld [vmem:[#allocation8 + $0x40] sm:$0xff]
        %v2275 = vld [vmem:[#allocation8 + $0x48] sm:$0xff]
        %v2276 = vld [vmem:[#allocation8 + $0x50] sm:$0xff]
        %v2277 = vld [vmem:[#allocation8 + $0x58] sm:$0xff]
        %v2278 = vld [vmem:[#allocation8 + $0x60] sm:$0xff]
        %v2279 = vld [vmem:[#allocation8 + $0x68] sm:$0xff]
        %v2280 = vld [vmem:[#allocation8 + $0x70] sm:$0xff]
        %v2281 = vld [vmem:[#allocation8 + $0x78] sm:$0xff]
        %v2282 = vld [vmem:[#allocation8 + $0x80] sm:$0xff]
        %v2283 = vld [vmem:[#allocation8 + $0x88] sm:$0xff]
        %v2284 = vld [vmem:[#allocation8 + $0x90] sm:$0xff]
        %v2285 = vld [vmem:[#allocation8 + $0x98] sm:$0xff]
        %v2286 = vld [vmem:[#allocation8 + $0xa0] sm:$0xff]
        %v2287 = vld [vmem:[#allocation8 + $0xa8] sm:$0xff]
        %v2288 = vld [vmem:[#allocation8 + $0xb0] sm:$0xff]
        %v2289 = vld [vmem:[#allocation8 + $0xb8] sm:$0xff]
        %v2290 = vld [vmem:[#allocation8 + $0xc0] sm:$0xff]
        %v2291 = vld [vmem:[#allocation8 + $0xc8] sm:$0xff]
        %v2292 = vld [vmem:[#allocation8 + $0xd0] sm:$0xff]
        %v2293 = vld [vmem:[#allocation8 + $0xd8] sm:$0xff]
        %v2294 = vld [vmem:[#allocation8 + $0xe0] sm:$0xff]
        %v2295 = vld [vmem:[#allocation8 + $0xe8] sm:$0xff]
        %v2296 = vld [vmem:[#allocation8 + $0xf0] sm:$0xff]
        %v2297 = vld [vmem:[#allocation8 + $0xf8] sm:$0xff]
        %v2298 = vld [vmem:[#allocation8 + $0x100] sm:$0xff]
        %v2299 = vld [vmem:[#allocation8 + $0x108] sm:$0xff]
        %v2300 = vld [vmem:[#allocation8 + $0x110] sm:$0xff]
        %v2301 = vld [vmem:[#allocation8 + $0x118] sm:$0xff]
        %v2302 = vld [vmem:[#allocation8 + $0x120] sm:$0xff]
        %v2303 = vld [vmem:[#allocation8 + $0x128] sm:$0xff]
        %v2304 = vld [vmem:[#allocation8 + $0x130] sm:$0xff]
        %v2305 = vld [vmem:[#allocation8 + $0x138] sm:$0xff]
        %v2306 = vld [vmem:[#allocation8 + $0x140] sm:$0xff]
        %v2307 = vld [vmem:[#allocation8 + $0x148] sm:$0xff]
        %v2308 = vld [vmem:[#allocation8 + $0x150] sm:$0xff]
        %v2309 = vld [vmem:[#allocation8 + $0x158] sm:$0xff]
        %v2310 = vld [vmem:[#allocation8 + $0x160] sm:$0xff]
        %v2311 = vld [vmem:[#allocation8 + $0x168] sm:$0xff]
        %v2312 = vld [vmem:[#allocation8 + $0x170] sm:$0xff]
        %v2313 = vld [vmem:[#allocation8 + $0x178] sm:$0xff]
        %v2314 = vld [vmem:[#allocation8 + $0x180] sm:$0xff]
        %v2315 = vld [vmem:[#allocation8 + $0x188] sm:$0xff]
        %v2316 = vld [vmem:[#allocation8 + $0x190] sm:$0xff]
        %v2317 = vld [vmem:[#allocation8 + $0x198] sm:$0xff]
        %v2318 = vld [vmem:[#allocation8 + $0x1a0] sm:$0xff]
        %v2319 = vld [vmem:[#allocation8 + $0x1a8] sm:$0xff]
        %v2320 = vld [vmem:[#allocation8 + $0x1b0] sm:$0xff]
        %v2321 = vld [vmem:[#allocation8 + $0x1b8] sm:$0xff]
        %v2322 = vld [vmem:[#allocation8 + $0x1c0] sm:$0xff]
        %v2323 = vld [vmem:[#allocation8 + $0x1c8] sm:$0xff]
        %v2324 = vld [vmem:[#allocation8 + $0x1d0] sm:$0xff]
        %v2325 = vld [vmem:[#allocation8 + $0x1d8] sm:$0xff]
        %v2326 = vld [vmem:[#allocation8 + $0x1e0] sm:$0xff]
        %v2327 = vld [vmem:[#allocation8 + $0x1e8] sm:$0xff]
        %v2328 = vld [vmem:[#allocation8 + $0x1f0] sm:$0xff]
        %v2329 = vld [vmem:[#allocation8 + $0x1f8] sm:$0xff]
        %v2394 = vunpack.c.l.b16 %v2266
        %v2395 = vunpack.c.h.b16 %v2266
        %v2396 = vunpack.c.l.b16 %v2267
        %v2397 = vunpack.c.h.b16 %v2267
        %v2398 = vunpack.c.l.b16 %v2268
        %v2399 = vunpack.c.h.b16 %v2268
        %v2400 = vunpack.c.l.b16 %v2269
        %v2401 = vunpack.c.h.b16 %v2269
        %v2402 = vunpack.c.l.b16 %v2270
        %v2403 = vunpack.c.h.b16 %v2270
        %v2404 = vunpack.c.l.b16 %v2271
        %v2405 = vunpack.c.h.b16 %v2271
        %v2406 = vunpack.c.l.b16 %v2272
        %v2407 = vunpack.c.h.b16 %v2272
        %v2408 = vunpack.c.l.b16 %v2273
        %v2409 = vunpack.c.h.b16 %v2273
        %v2410 = vunpack.c.l.b16 %v2274
        %v2411 = vunpack.c.h.b16 %v2274
        %v2412 = vunpack.c.l.b16 %v2275
        %v2413 = vunpack.c.h.b16 %v2275
        %v2414 = vunpack.c.l.b16 %v2276
        %v2415 = vunpack.c.h.b16 %v2276
        %v2416 = vunpack.c.l.b16 %v2277
        %v2417 = vunpack.c.h.b16 %v2277
        %v2418 = vunpack.c.l.b16 %v2278
        %v2419 = vunpack.c.h.b16 %v2278
        %v2420 = vunpack.c.l.b16 %v2279
        %v2421 = vunpack.c.h.b16 %v2279
        %v2422 = vunpack.c.l.b16 %v2280
        %v2423 = vunpack.c.h.b16 %v2280
        %v2424 = vunpack.c.l.b16 %v2281
        %v2425 = vunpack.c.h.b16 %v2281
        %v2426 = vunpack.c.l.b16 %v2282
        %v2427 = vunpack.c.h.b16 %v2282
        %v2428 = vunpack.c.l.b16 %v2283
        %v2429 = vunpack.c.h.b16 %v2283
        %v2430 = vunpack.c.l.b16 %v2284
        %v2431 = vunpack.c.h.b16 %v2284
        %v2432 = vunpack.c.l.b16 %v2285
        %v2433 = vunpack.c.h.b16 %v2285
        %v2434 = vunpack.c.l.b16 %v2286
        %v2435 = vunpack.c.h.b16 %v2286
        %v2436 = vunpack.c.l.b16 %v2287
        %v2437 = vunpack.c.h.b16 %v2287
        %v2438 = vunpack.c.l.b16 %v2288
        %v2439 = vunpack.c.h.b16 %v2288
        %v2440 = vunpack.c.l.b16 %v2289
        %v2441 = vunpack.c.h.b16 %v2289
        %v2442 = vunpack.c.l.b16 %v2290
        %v2443 = vunpack.c.h.b16 %v2290
        %v2444 = vunpack.c.l.b16 %v2291
        %v2445 = vunpack.c.h.b16 %v2291
        %v2446 = vunpack.c.l.b16 %v2292
        %v2447 = vunpack.c.h.b16 %v2292
        %v2448 = vunpack.c.l.b16 %v2293
        %v2449 = vunpack.c.h.b16 %v2293
        %v2450 = vunpack.c.l.b16 %v2294
        %v2451 = vunpack.c.h.b16 %v2294
        %v2452 = vunpack.c.l.b16 %v2295
        %v2453 = vunpack.c.h.b16 %v2295
        %v2454 = vunpack.c.l.b16 %v2296
        %v2455 = vunpack.c.h.b16 %v2296
        %v2456 = vunpack.c.l.b16 %v2297
        %v2457 = vunpack.c.h.b16 %v2297
        %v2458 = vunpack.c.l.b16 %v2298
        %v2459 = vunpack.c.h.b16 %v2298
        %v2460 = vunpack.c.l.b16 %v2299
        %v2461 = vunpack.c.h.b16 %v2299
        %v2462 = vunpack.c.l.b16 %v2300
        %v2463 = vunpack.c.h.b16 %v2300
        %v2464 = vunpack.c.l.b16 %v2301
        %v2465 = vunpack.c.h.b16 %v2301
        %v2466 = vunpack.c.l.b16 %v2302
        %v2467 = vunpack.c.h.b16 %v2302
        %v2468 = vunpack.c.l.b16 %v2303
        %v2469 = vunpack.c.h.b16 %v2303
        %v2470 = vunpack.c.l.b16 %v2304
        %v2471 = vunpack.c.h.b16 %v2304
        %v2472 = vunpack.c.l.b16 %v2305
        %v2473 = vunpack.c.h.b16 %v2305
        %v2474 = vunpack.c.l.b16 %v2306
        %v2475 = vunpack.c.h.b16 %v2306
        %v2476 = vunpack.c.l.b16 %v2307
        %v2477 = vunpack.c.h.b16 %v2307
        %v2478 = vunpack.c.l.b16 %v2308
        %v2479 = vunpack.c.h.b16 %v2308
        %v2480 = vunpack.c.l.b16 %v2309
        %v2481 = vunpack.c.h.b16 %v2309
        %v2482 = vunpack.c.l.b16 %v2310
        %v2483 = vunpack.c.h.b16 %v2310
        %v2484 = vunpack.c.l.b16 %v2311
        %v2485 = vunpack.c.h.b16 %v2311
        %v2486 = vunpack.c.l.b16 %v2312
        %v2487 = vunpack.c.h.b16 %v2312
        %v2488 = vunpack.c.l.b16 %v2313
        %v2489 = vunpack.c.h.b16 %v2313
        %v2490 = vunpack.c.l.b16 %v2314
        %v2491 = vunpack.c.h.b16 %v2314
        %v2492 = vunpack.c.l.b16 %v2315
        %v2493 = vunpack.c.h.b16 %v2315
        %v2494 = vunpack.c.l.b16 %v2316
        %v2495 = vunpack.c.h.b16 %v2316
        %v2496 = vunpack.c.l.b16 %v2317
        %v2497 = vunpack.c.h.b16 %v2317
        %v2498 = vunpack.c.l.b16 %v2318
        %v2499 = vunpack.c.h.b16 %v2318
        %v2500 = vunpack.c.l.b16 %v2319
        %v2501 = vunpack.c.h.b16 %v2319
        %v2502 = vunpack.c.l.b16 %v2320
        %v2503 = vunpack.c.h.b16 %v2320
        %v2504 = vunpack.c.l.b16 %v2321
        %v2505 = vunpack.c.h.b16 %v2321
        %v2506 = vunpack.c.l.b16 %v2322
        %v2507 = vunpack.c.h.b16 %v2322
        %v2508 = vunpack.c.l.b16 %v2323
        %v2509 = vunpack.c.h.b16 %v2323
        %v2510 = vunpack.c.l.b16 %v2324
        %v2511 = vunpack.c.h.b16 %v2324
        %v2512 = vunpack.c.l.b16 %v2325
        %v2513 = vunpack.c.h.b16 %v2325
        %v2514 = vunpack.c.l.b16 %v2326
        %v2515 = vunpack.c.h.b16 %v2326
        %v2516 = vunpack.c.l.b16 %v2327
        %v2517 = vunpack.c.h.b16 %v2327
        %v2518 = vunpack.c.l.b16 %v2328
        %v2519 = vunpack.c.h.b16 %v2328
        %v2520 = vunpack.c.l.b16 %v2329
        %v2521 = vunpack.c.h.b16 %v2329
        %v2522 = vpack.c.b16 %v2396, %v2394
        %v2523 = vpack.c.b16 %v2397, %v2395
        %v2524 = vpack.c.b16 %v2400, %v2398
        %v2525 = vpack.c.b16 %v2401, %v2399
        %v2526 = vpack.c.b16 %v2404, %v2402
        %v2527 = vpack.c.b16 %v2405, %v2403
        %v2528 = vpack.c.b16 %v2408, %v2406
        %v2529 = vpack.c.b16 %v2409, %v2407
        %v2530 = vpack.c.b16 %v2412, %v2410
        %v2531 = vpack.c.b16 %v2413, %v2411
        %v2532 = vpack.c.b16 %v2416, %v2414
        %v2533 = vpack.c.b16 %v2417, %v2415
        %v2534 = vpack.c.b16 %v2420, %v2418
        %v2535 = vpack.c.b16 %v2421, %v2419
        %v2536 = vpack.c.b16 %v2424, %v2422
        %v2537 = vpack.c.b16 %v2425, %v2423
        %v2538 = vpack.c.b16 %v2428, %v2426
        %v2539 = vpack.c.b16 %v2429, %v2427
        %v2540 = vpack.c.b16 %v2432, %v2430
        %v2541 = vpack.c.b16 %v2433, %v2431
        %v2542 = vpack.c.b16 %v2436, %v2434
        %v2543 = vpack.c.b16 %v2437, %v2435
        %v2544 = vpack.c.b16 %v2440, %v2438
        %v2545 = vpack.c.b16 %v2441, %v2439
        %v2546 = vpack.c.b16 %v2444, %v2442
        %v2547 = vpack.c.b16 %v2445, %v2443
        %v2548 = vpack.c.b16 %v2448, %v2446
        %v2549 = vpack.c.b16 %v2449, %v2447
        %v2550 = vpack.c.b16 %v2452, %v2450
        %v2551 = vpack.c.b16 %v2453, %v2451
        %v2552 = vpack.c.b16 %v2456, %v2454
        %v2553 = vpack.c.b16 %v2457, %v2455
        %v2554 = vpack.c.b16 %v2460, %v2458
        %v2555 = vpack.c.b16 %v2461, %v2459
        %v2556 = vpack.c.b16 %v2464, %v2462
        %v2557 = vpack.c.b16 %v2465, %v2463
        %v2558 = vpack.c.b16 %v2468, %v2466
        %v2559 = vpack.c.b16 %v2469, %v2467
        %v2560 = vpack.c.b16 %v2472, %v2470
        %v2561 = vpack.c.b16 %v2473, %v2471
        %v2562 = vpack.c.b16 %v2476, %v2474
        %v2563 = vpack.c.b16 %v2477, %v2475
        %v2564 = vpack.c.b16 %v2480, %v2478
        %v2565 = vpack.c.b16 %v2481, %v2479
        %v2566 = vpack.c.b16 %v2484, %v2482
        %v2567 = vpack.c.b16 %v2485, %v2483
        %v2568 = vpack.c.b16 %v2488, %v2486
        %v2569 = vpack.c.b16 %v2489, %v2487
        %v2570 = vpack.c.b16 %v2492, %v2490
        %v2571 = vpack.c.b16 %v2493, %v2491
        %v2572 = vpack.c.b16 %v2496, %v2494
        %v2573 = vpack.c.b16 %v2497, %v2495
        %v2574 = vpack.c.b16 %v2500, %v2498
        %v2575 = vpack.c.b16 %v2501, %v2499
        %v2576 = vpack.c.b16 %v2504, %v2502
        %v2577 = vpack.c.b16 %v2505, %v2503
        %v2578 = vpack.c.b16 %v2508, %v2506
        %v2579 = vpack.c.b16 %v2509, %v2507
        %v2580 = vpack.c.b16 %v2512, %v2510
        %v2581 = vpack.c.b16 %v2513, %v2511
        %v2582 = vpack.c.b16 %v2516, %v2514
        %v2583 = vpack.c.b16 %v2517, %v2515
        %v2584 = vpack.c.b16 %v2520, %v2518
        %v2585 = vpack.c.b16 %v2521, %v2519
        %2650 = vmatprep.subr.bf16.mxu0 %v2537
        %2651 = vmatpush1.bf16.msra.mxu0 %v2536
        %2652 = vmatprep.subr.bf16.mxu0 %v2535
        %2653 = vmatpush1.bf16.msra.mxu0 %v2534
        %2654 = vmatprep.subr.bf16.mxu0 %v2533
        %2655 = vmatpush1.bf16.msra.mxu0 %v2532
        %2656 = vmatprep.subr.bf16.mxu0 %v2531
        %2657 = vmatpush1.bf16.msra.mxu0 %v2530
        %2658 = vmatprep.subr.bf16.mxu0 %v2529
        %2659 = vmatpush1.bf16.msra.mxu0 %v2528
        %2660 = vmatprep.subr.bf16.mxu0 %v2527
        %2661 = vmatpush1.bf16.msra.mxu0 %v2526
        %2662 = vmatprep.subr.bf16.mxu0 %v2525
        %2663 = vmatpush1.bf16.msra.mxu0 %v2524
        %2664 = vmatprep.subr.bf16.mxu0 %v2523
        %2665 = vmatpush1.bf16.msra.mxu0 %v2522
        %2666 = vmatprep.subr.bf16.mxu0 %v2553
        %2667 = vmatpush2.bf16.msra.mxu0 %v2552
        %2668 = vmatprep.subr.bf16.mxu0 %v2551
        %2669 = vmatpush2.bf16.msra.mxu0 %v2550
        %2670 = vmatprep.subr.bf16.mxu0 %v2549
        %2671 = vmatpush2.bf16.msra.mxu0 %v2548
        %2672 = vmatprep.subr.bf16.mxu0 %v2547
        %2673 = vmatpush2.bf16.msra.mxu0 %v2546
        %2674 = vmatprep.subr.bf16.mxu0 %v2545
        %2675 = vmatpush2.bf16.msra.mxu0 %v2544
        %2676 = vmatprep.subr.bf16.mxu0 %v2543
        %2677 = vmatpush2.bf16.msra.mxu0 %v2542
        %2678 = vmatprep.subr.bf16.mxu0 %v2541
        %2679 = vmatpush2.bf16.msra.mxu0 %v2540
        %2680 = vmatprep.subr.bf16.mxu0 %v2539
        %2681 = vmatpush2.bf16.msra.mxu0 %v2538
        %2682 = vmatprep.mubr.bf16.mxu0 %v2263
        %2683 = vmatmul.mubr.bf16.gmra.mxu0 %v2262
        %v2684 = vpop.f32.mrf.mxu0
        %v2685 = vadd.f32 0.0, %v2684
        %v2686 = vpop.f32.mrf.mxu0
        %v2687 = vadd.f32 0.0, %v2686
        %v2688 = vpop.f32.mrf.mxu0
        %v2689 = vadd.f32 0.0, %v2688
        %v2690 = vpop.f32.mrf.mxu0
        %v2691 = vadd.f32 0.0, %v2690
        %2692 = vdwg.mxu0
        %2693 = vmatprep.subr.bf16.mxu0 %v2569
        %2694 = vmatpush1.bf16.msra.mxu0 %v2568
        %2695 = vmatprep.subr.bf16.mxu0 %v2567
        %2696 = vmatpush1.bf16.msra.mxu0 %v2566
        %2697 = vmatprep.subr.bf16.mxu0 %v2565
        %2698 = vmatpush1.bf16.msra.mxu0 %v2564
        %2699 = vmatprep.subr.bf16.mxu0 %v2563
        %2700 = vmatpush1.bf16.msra.mxu0 %v2562
        %2701 = vmatprep.subr.bf16.mxu0 %v2561
        %2702 = vmatpush1.bf16.msra.mxu0 %v2560
        %2703 = vmatprep.subr.bf16.mxu0 %v2559
        %2704 = vmatpush1.bf16.msra.mxu0 %v2558
        %2705 = vmatprep.subr.bf16.mxu0 %v2557
        %2706 = vmatpush1.bf16.msra.mxu0 %v2556
        %2707 = vmatprep.subr.bf16.mxu0 %v2555
        %2708 = vmatpush1.bf16.msra.mxu0 %v2554
        %2709 = vmatprep.subr.bf16.mxu0 %v2585
        %2710 = vmatpush2.bf16.msra.mxu0 %v2584
        %2711 = vmatprep.subr.bf16.mxu0 %v2583
        %2712 = vmatpush2.bf16.msra.mxu0 %v2582
        %2713 = vmatprep.subr.bf16.mxu0 %v2581
        %2714 = vmatpush2.bf16.msra.mxu0 %v2580
        %2715 = vmatprep.subr.bf16.mxu0 %v2579
        %2716 = vmatpush2.bf16.msra.mxu0 %v2578
        %2717 = vmatprep.subr.bf16.mxu0 %v2577
        %2718 = vmatpush2.bf16.msra.mxu0 %v2576
        %2719 = vmatprep.subr.bf16.mxu0 %v2575
        %2720 = vmatpush2.bf16.msra.mxu0 %v2574
        %2721 = vmatprep.subr.bf16.mxu0 %v2573
        %2722 = vmatpush2.bf16.msra.mxu0 %v2572
        %2723 = vmatprep.subr.bf16.mxu0 %v2571
        %2724 = vmatpush2.bf16.msra.mxu0 %v2570
        %2725 = vmatprep.mubr.bf16.mxu0 %v2265
        %2726 = vmatmul.mubr.bf16.gmra.mxu0 %v2264
        %v2727 = vpop.f32.mrf.mxu0
        %v2728 = vadd.f32 %v2685, %v2727
        %v2729 = vpop.f32.mrf.mxu0
        %v2730 = vadd.f32 %v2687, %v2729
        %v2731 = vpop.f32.mrf.mxu0
        %v2732 = vadd.f32 %v2689, %v2731
        %v2733 = vpop.f32.mrf.mxu0
        %v2734 = vadd.f32 %v2691, %v2733
        %2735 = vdwg.mxu0
        %v2736 = vpack.c.bf16 %v2732, %v2728
        %v2737 = vpack.c.bf16 %v2734, %v2730
        %v2738 = vld [vmem:[%s4] sm:$0x3]
        %v2740 = vlaneseq
        %v2741 = vshrl.u32 %v2740, 7
        %v2742 = vsub.s32 0, %v2741
        %v2743 = vrot.slane %v2738, %v2742
        %v2744 = vlaneseq
        %v2745 = vshrl.u32 %v2744, 7
        %v2746 = vsub.s32 1, %v2745
        %v2747 = vrot.slane %v2738, %v2746
        %v2750 = vpack.c.bf16 %v2743, %v2743
        %v2751 = vpack.c.bf16 %v2747, %v2747
        %v2753 = vpack.i.b16 %v2750, %v2750
        %v2755 = vlaneseq
        %v2756 = vshrl.u32 %v2755, 7
        %v2757 = vsub.s32 0, %v2756
        %v2758 = vrot.slane %v2753, %v2757
        %v2760 = vpack.i.b16 %v2751, %v2751
        %v2762 = vlaneseq
        %v2763 = vshrl.u32 %v2762, 7
        %v2764 = vsub.s32 0, %v2763
        %v2765 = vrot.slane %v2760, %v2764
        %v2766 = vadd.bf16 %v2736, %v2758
        %v2767 = vadd.bf16 %v2737, %v2765
        %v2768 = vmax.bf16 %v2766, 0
        %v2769 = vmax.bf16 %v2767, 0
        %v2770 = vld [vmem:[#allocation10] sm:$0xf]
        %v2771 = vld [vmem:[#allocation10 + $0x4] sm:$0xf]
        %v2772 = vld [vmem:[#allocation10 + $0x8] sm:$0xf]
        %v2773 = vld [vmem:[#allocation10 + $0xc] sm:$0xf]
        %v2774 = vld [vmem:[#allocation10 + $0x10] sm:$0xf]
        %v2775 = vld [vmem:[#allocation10 + $0x14] sm:$0xf]
        %v2776 = vld [vmem:[#allocation10 + $0x18] sm:$0xf]
        %v2777 = vld [vmem:[#allocation10 + $0x1c] sm:$0xf]
        %v2778 = vld [vmem:[#allocation10 + $0x20] sm:$0xf]
        %v2779 = vld [vmem:[#allocation10 + $0x24] sm:$0xf]
        %v2780 = vld [vmem:[#allocation10 + $0x28] sm:$0xf]
        %v2781 = vld [vmem:[#allocation10 + $0x2c] sm:$0xf]
        %v2782 = vld [vmem:[#allocation10 + $0x30] sm:$0xf]
        %v2783 = vld [vmem:[#allocation10 + $0x34] sm:$0xf]
        %v2784 = vld [vmem:[#allocation10 + $0x38] sm:$0xf]
        %v2785 = vld [vmem:[#allocation10 + $0x3c] sm:$0xf]
        %v2786 = vld [vmem:[#allocation10 + $0x40] sm:$0xf]
        %v2787 = vld [vmem:[#allocation10 + $0x44] sm:$0xf]
        %v2788 = vld [vmem:[#allocation10 + $0x48] sm:$0xf]
        %v2789 = vld [vmem:[#allocation10 + $0x4c] sm:$0xf]
        %v2790 = vld [vmem:[#allocation10 + $0x50] sm:$0xf]
        %v2791 = vld [vmem:[#allocation10 + $0x54] sm:$0xf]
        %v2792 = vld [vmem:[#allocation10 + $0x58] sm:$0xf]
        %v2793 = vld [vmem:[#allocation10 + $0x5c] sm:$0xf]
        %v2794 = vld [vmem:[#allocation10 + $0x60] sm:$0xf]
        %v2795 = vld [vmem:[#allocation10 + $0x64] sm:$0xf]
        %v2796 = vld [vmem:[#allocation10 + $0x68] sm:$0xf]
        %v2797 = vld [vmem:[#allocation10 + $0x6c] sm:$0xf]
        %v2798 = vld [vmem:[#allocation10 + $0x70] sm:$0xf]
        %v2799 = vld [vmem:[#allocation10 + $0x74] sm:$0xf]
        %v2800 = vld [vmem:[#allocation10 + $0x78] sm:$0xf]
        %v2801 = vld [vmem:[#allocation10 + $0x7c] sm:$0xf]
        %v2802 = vld [vmem:[#allocation11] sm:$0x1]
        %v2804 = vlaneseq
        %v2805 = vshrl.u32 %v2804, 7
        %v2806 = vsub.s32 0, %v2805
        %v2807 = vrot.slane %v2802, %v2806
        %v2841 = vunpack.c.l.b16 %v2770
        %v2842 = vunpack.c.l.b16 %v2771
        %v2843 = vunpack.c.l.b16 %v2772
        %v2844 = vunpack.c.l.b16 %v2773
        %v2845 = vunpack.c.l.b16 %v2774
        %v2846 = vunpack.c.l.b16 %v2775
        %v2847 = vunpack.c.l.b16 %v2776
        %v2848 = vunpack.c.l.b16 %v2777
        %v2849 = vunpack.c.l.b16 %v2778
        %v2850 = vunpack.c.l.b16 %v2779
        %v2851 = vunpack.c.l.b16 %v2780
        %v2852 = vunpack.c.l.b16 %v2781
        %v2853 = vunpack.c.l.b16 %v2782
        %v2854 = vunpack.c.l.b16 %v2783
        %v2855 = vunpack.c.l.b16 %v2784
        %v2856 = vunpack.c.l.b16 %v2785
        %v2857 = vunpack.c.l.b16 %v2786
        %v2858 = vunpack.c.l.b16 %v2787
        %v2859 = vunpack.c.l.b16 %v2788
        %v2860 = vunpack.c.l.b16 %v2789
        %v2861 = vunpack.c.l.b16 %v2790
        %v2862 = vunpack.c.l.b16 %v2791
        %v2863 = vunpack.c.l.b16 %v2792
        %v2864 = vunpack.c.l.b16 %v2793
        %v2865 = vunpack.c.l.b16 %v2794
        %v2866 = vunpack.c.l.b16 %v2795
        %v2867 = vunpack.c.l.b16 %v2796
        %v2868 = vunpack.c.l.b16 %v2797
        %v2869 = vunpack.c.l.b16 %v2798
        %v2870 = vunpack.c.l.b16 %v2799
        %v2871 = vunpack.c.l.b16 %v2800
        %v2872 = vunpack.c.l.b16 %v2801
        %v2873 = vpack.c.b16 %v2842, %v2841
        %v2874 = vpack.c.b16 %v2844, %v2843
        %v2875 = vpack.c.b16 %v2846, %v2845
        %v2876 = vpack.c.b16 %v2848, %v2847
        %v2877 = vpack.c.b16 %v2850, %v2849
        %v2878 = vpack.c.b16 %v2852, %v2851
        %v2879 = vpack.c.b16 %v2854, %v2853
        %v2880 = vpack.c.b16 %v2856, %v2855
        %v2881 = vpack.c.b16 %v2858, %v2857
        %v2882 = vpack.c.b16 %v2860, %v2859
        %v2883 = vpack.c.b16 %v2862, %v2861
        %v2884 = vpack.c.b16 %v2864, %v2863
        %v2885 = vpack.c.b16 %v2866, %v2865
        %v2886 = vpack.c.b16 %v2868, %v2867
        %v2887 = vpack.c.b16 %v2870, %v2869
        %v2888 = vpack.c.b16 %v2872, %v2871
        %2905 = vmatprep.subr.bf16.mxu0 0
        %2906 = vmatpush1.bf16.msra.mxu0 %v2880
        %2907 = vmatprep.subr.bf16.mxu0 0
        %2908 = vmatpush1.bf16.msra.mxu0 %v2879
        %2909 = vmatprep.subr.bf16.mxu0 0
        %2910 = vmatpush1.bf16.msra.mxu0 %v2878
        %2911 = vmatprep.subr.bf16.mxu0 0
        %2912 = vmatpush1.bf16.msra.mxu0 %v2877
        %2913 = vmatprep.subr.bf16.mxu0 0
        %2914 = vmatpush1.bf16.msra.mxu0 %v2876
        %2915 = vmatprep.subr.bf16.mxu0 0
        %2916 = vmatpush1.bf16.msra.mxu0 %v2875
        %2917 = vmatprep.subr.bf16.mxu0 0
        %2918 = vmatpush1.bf16.msra.mxu0 %v2874
        %2919 = vmatprep.subr.bf16.mxu0 0
        %2920 = vmatpush1.bf16.msra.mxu0 %v2873
        %2921 = vmatprep.subr.bf16.mxu0 0
        %2922 = vmatpush2.bf16.msra.mxu0 %v2888
        %2923 = vmatprep.subr.bf16.mxu0 0
        %2924 = vmatpush2.bf16.msra.mxu0 %v2887
        %2925 = vmatprep.subr.bf16.mxu0 0
        %2926 = vmatpush2.bf16.msra.mxu0 %v2886
        %2927 = vmatprep.subr.bf16.mxu0 0
        %2928 = vmatpush2.bf16.msra.mxu0 %v2885
        %2929 = vmatprep.subr.bf16.mxu0 0
        %2930 = vmatpush2.bf16.msra.mxu0 %v2884
        %2931 = vmatprep.subr.bf16.mxu0 0
        %2932 = vmatpush2.bf16.msra.mxu0 %v2883
        %2933 = vmatprep.subr.bf16.mxu0 0
        %2934 = vmatpush2.bf16.msra.mxu0 %v2882
        %2935 = vmatprep.subr.bf16.mxu0 0
        %2936 = vmatpush2.bf16.msra.mxu0 %v2881
        %2937 = vmatprep.mubr.bf16.mxu0 %v2769
        %2938 = vmatmul.mubr.bf16.gmra.mxu0 %v2768
        %v2939 = vpop.f32.mrf.mxu0
        %v2940 = vadd.f32 %v2807, %v2939
        %v2941 = vpop.f32.mrf.mxu0
        %v2942 = vpop.f32.mrf.mxu0
        %v2943 = vadd.f32 %v2807, %v2942
        %v2944 = vpop.f32.mrf.mxu0
        %2945 = vdwg.mxu0
        %v2946 = vpack.c.bf16 %v2943, %v2940
        %v2947 = vld [vmem:[#allocation13] sm:$0xff]
        %v2948 = vld [vmem:[#allocation13 + $0x8] sm:$0xff]
        %v2949 = vld [vmem:[#allocation13 + $0x10] sm:$0xff]
        %v2950 = vld [vmem:[#allocation13 + $0x18] sm:$0xff]
        %v2951 = vld [vmem:[#allocation13 + $0x20] sm:$0xff]
        %v2952 = vld [vmem:[#allocation13 + $0x28] sm:$0xff]
        %v2953 = vld [vmem:[#allocation13 + $0x30] sm:$0xff]
        %v2954 = vld [vmem:[#allocation13 + $0x38] sm:$0xff]
        %v2955 = vld [vmem:[#allocation13 + $0x40] sm:$0xff]
        %v2956 = vld [vmem:[#allocation13 + $0x48] sm:$0xff]
        %v2957 = vld [vmem:[#allocation13 + $0x50] sm:$0xff]
        %v2958 = vld [vmem:[#allocation13 + $0x58] sm:$0xff]
        %v2959 = vld [vmem:[#allocation13 + $0x60] sm:$0xff]
        %v2960 = vld [vmem:[#allocation13 + $0x68] sm:$0xff]
        %v2961 = vld [vmem:[#allocation13 + $0x70] sm:$0xff]
        %v2962 = vld [vmem:[#allocation13 + $0x78] sm:$0xff]
        %v2979 = vunpack.c.l.b16 %v2947
        %v2980 = vunpack.c.h.b16 %v2947
        %v2981 = vunpack.c.l.b16 %v2948
        %v2982 = vunpack.c.h.b16 %v2948
        %v2983 = vunpack.c.l.b16 %v2949
        %v2984 = vunpack.c.h.b16 %v2949
        %v2985 = vunpack.c.l.b16 %v2950
        %v2986 = vunpack.c.h.b16 %v2950
        %v2987 = vunpack.c.l.b16 %v2951
        %v2988 = vunpack.c.h.b16 %v2951
        %v2989 = vunpack.c.l.b16 %v2952
        %v2990 = vunpack.c.h.b16 %v2952
        %v2991 = vunpack.c.l.b16 %v2953
        %v2992 = vunpack.c.h.b16 %v2953
        %v2993 = vunpack.c.l.b16 %v2954
        %v2994 = vunpack.c.h.b16 %v2954
        %v2995 = vunpack.c.l.b16 %v2955
        %v2996 = vunpack.c.h.b16 %v2955
        %v2997 = vunpack.c.l.b16 %v2956
        %v2998 = vunpack.c.h.b16 %v2956
        %v2999 = vunpack.c.l.b16 %v2957
        %v3000 = vunpack.c.h.b16 %v2957
        %v3001 = vunpack.c.l.b16 %v2958
        %v3002 = vunpack.c.h.b16 %v2958
        %v3003 = vunpack.c.l.b16 %v2959
        %v3004 = vunpack.c.h.b16 %v2959
        %v3005 = vunpack.c.l.b16 %v2960
        %v3006 = vunpack.c.h.b16 %v2960
        %v3007 = vunpack.c.l.b16 %v2961
        %v3008 = vunpack.c.h.b16 %v2961
        %v3009 = vunpack.c.l.b16 %v2962
        %v3010 = vunpack.c.h.b16 %v2962
        %v3011 = vpack.c.b16 %v2981, %v2979
        %v3012 = vpack.c.b16 %v2982, %v2980
        %v3013 = vpack.c.b16 %v2985, %v2983
        %v3014 = vpack.c.b16 %v2986, %v2984
        %v3015 = vpack.c.b16 %v2989, %v2987
        %v3016 = vpack.c.b16 %v2990, %v2988
        %v3017 = vpack.c.b16 %v2993, %v2991
        %v3018 = vpack.c.b16 %v2994, %v2992
        %v3019 = vpack.c.b16 %v2997, %v2995
        %v3020 = vpack.c.b16 %v2998, %v2996
        %v3021 = vpack.c.b16 %v3001, %v2999
        %v3022 = vpack.c.b16 %v3002, %v3000
        %v3023 = vpack.c.b16 %v3005, %v3003
        %v3024 = vpack.c.b16 %v3006, %v3004
        %v3025 = vpack.c.b16 %v3009, %v3007
        %v3026 = vpack.c.b16 %v3010, %v3008
        %3043 = vmatprep.subr.bf16.mxu0 %v3026
        %3044 = vmatpush1.bf16.msra.mxu0 %v3025
        %3045 = vmatprep.subr.bf16.mxu0 %v3024
        %3046 = vmatpush1.bf16.msra.mxu0 %v3023
        %3047 = vmatprep.subr.bf16.mxu0 %v3022
        %3048 = vmatpush1.bf16.msra.mxu0 %v3021
        %3049 = vmatprep.subr.bf16.mxu0 %v3020
        %3050 = vmatpush1.bf16.msra.mxu0 %v3019
        %3051 = vmatprep.subr.bf16.mxu0 %v3018
        %3052 = vmatpush1.bf16.msra.mxu0 %v3017
        %3053 = vmatprep.subr.bf16.mxu0 %v3016
        %3054 = vmatpush1.bf16.msra.mxu0 %v3015
        %3055 = vmatprep.subr.bf16.mxu0 %v3014
        %3056 = vmatpush1.bf16.msra.mxu0 %v3013
        %3057 = vmatprep.subr.bf16.mxu0 %v3012
        %3058 = vmatpush1.bf16.msra.mxu0 %v3011
        %3059 = vmatprep.subr.bf16.mxu0 0
        %3060 = vmatpush2.bf16.msra.mxu0 0
        %3061 = vmatprep.subr.bf16.mxu0 0
        %3062 = vmatpush2.bf16.msra.mxu0 0
        %3063 = vmatprep.subr.bf16.mxu0 0
        %3064 = vmatpush2.bf16.msra.mxu0 0
        %3065 = vmatprep.subr.bf16.mxu0 0
        %3066 = vmatpush2.bf16.msra.mxu0 0
        %3067 = vmatprep.subr.bf16.mxu0 0
        %3068 = vmatpush2.bf16.msra.mxu0 0
        %3069 = vmatprep.subr.bf16.mxu0 0
        %3070 = vmatpush2.bf16.msra.mxu0 0
        %3071 = vmatprep.subr.bf16.mxu0 0
        %3072 = vmatpush2.bf16.msra.mxu0 0
        %3073 = vmatprep.subr.bf16.mxu0 0
        %3074 = vmatpush2.bf16.msra.mxu0 0
        %3075 = vmatprep.mubr.bf16.mxu0 0
        %3076 = vmatmul.mubr.bf16.gmra.mxu0 %v2946
        %v3077 = vpop.f32.mrf.mxu0
        %v3078 = vadd.f32 0.0, %v3077
        %v3079 = vpop.f32.mrf.mxu0
        %v3080 = vadd.f32 0.0, %v3079
        %v3081 = vpop.f32.mrf.mxu0
        %v3082 = vadd.f32 0.0, %v3081
        %v3083 = vpop.f32.mrf.mxu0
        %v3084 = vadd.f32 0.0, %v3083
        %3085 = vdwg.mxu0
        %v3086 = vpack.c.bf16 %v3082, %v3078
        %v3087 = vpack.c.bf16 %v3084, %v3080
        %v3088 = vld [vmem:[%s8] sm:$0x3]
        %v3090 = vlaneseq
        %v3091 = vshrl.u32 %v3090, 7
        %v3092 = vsub.s32 0, %v3091
        %v3093 = vrot.slane %v3088, %v3092
        %v3094 = vlaneseq
        %v3095 = vshrl.u32 %v3094, 7
        %v3096 = vsub.s32 1, %v3095
        %v3097 = vrot.slane %v3088, %v3096
        %v3100 = vpack.c.bf16 %v3093, %v3093
        %v3101 = vpack.c.bf16 %v3097, %v3097
        %v3103 = vpack.i.b16 %v3100, %v3100
        %v3105 = vlaneseq
        %v3106 = vshrl.u32 %v3105, 7
        %v3107 = vsub.s32 0, %v3106
        %v3108 = vrot.slane %v3103, %v3107
        %v3110 = vpack.i.b16 %v3101, %v3101
        %v3112 = vlaneseq
        %v3113 = vshrl.u32 %v3112, 7
        %v3114 = vsub.s32 0, %v3113
        %v3115 = vrot.slane %v3110, %v3114
        %v3116 = vadd.bf16 %v3086, %v3108
        %v3117 = vadd.bf16 %v3087, %v3115
        %v3118 = vmax.bf16 %v3116, 0
        %v3119 = vmax.bf16 %v3117, 0
        %v3120 = vld [vmem:[#allocation14] sm:$0xff]
        %v3121 = vld [vmem:[#allocation14 + $0x8] sm:$0xff]
        %v3122 = vld [vmem:[#allocation14 + $0x10] sm:$0xff]
        %v3123 = vld [vmem:[#allocation14 + $0x18] sm:$0xff]
        %v3124 = vld [vmem:[#allocation14 + $0x20] sm:$0xff]
        %v3125 = vld [vmem:[#allocation14 + $0x28] sm:$0xff]
        %v3126 = vld [vmem:[#allocation14 + $0x30] sm:$0xff]
        %v3127 = vld [vmem:[#allocation14 + $0x38] sm:$0xff]
        %v3128 = vld [vmem:[#allocation14 + $0x40] sm:$0xff]
        %v3129 = vld [vmem:[#allocation14 + $0x48] sm:$0xff]
        %v3130 = vld [vmem:[#allocation14 + $0x50] sm:$0xff]
        %v3131 = vld [vmem:[#allocation14 + $0x58] sm:$0xff]
        %v3132 = vld [vmem:[#allocation14 + $0x60] sm:$0xff]
        %v3133 = vld [vmem:[#allocation14 + $0x68] sm:$0xff]
        %v3134 = vld [vmem:[#allocation14 + $0x70] sm:$0xff]
        %v3135 = vld [vmem:[#allocation14 + $0x78] sm:$0xff]
        %v3136 = vld [vmem:[#allocation14 + $0x80] sm:$0xff]
        %v3137 = vld [vmem:[#allocation14 + $0x88] sm:$0xff]
        %v3138 = vld [vmem:[#allocation14 + $0x90] sm:$0xff]
        %v3139 = vld [vmem:[#allocation14 + $0x98] sm:$0xff]
        %v3140 = vld [vmem:[#allocation14 + $0xa0] sm:$0xff]
        %v3141 = vld [vmem:[#allocation14 + $0xa8] sm:$0xff]
        %v3142 = vld [vmem:[#allocation14 + $0xb0] sm:$0xff]
        %v3143 = vld [vmem:[#allocation14 + $0xb8] sm:$0xff]
        %v3144 = vld [vmem:[#allocation14 + $0xc0] sm:$0xff]
        %v3145 = vld [vmem:[#allocation14 + $0xc8] sm:$0xff]
        %v3146 = vld [vmem:[#allocation14 + $0xd0] sm:$0xff]
        %v3147 = vld [vmem:[#allocation14 + $0xd8] sm:$0xff]
        %v3148 = vld [vmem:[#allocation14 + $0xe0] sm:$0xff]
        %v3149 = vld [vmem:[#allocation14 + $0xe8] sm:$0xff]
        %v3150 = vld [vmem:[#allocation14 + $0xf0] sm:$0xff]
        %v3151 = vld [vmem:[#allocation14 + $0xf8] sm:$0xff]
        %v3152 = vld [vmem:[#allocation14 + $0x100] sm:$0xff]
        %v3153 = vld [vmem:[#allocation14 + $0x108] sm:$0xff]
        %v3154 = vld [vmem:[#allocation14 + $0x110] sm:$0xff]
        %v3155 = vld [vmem:[#allocation14 + $0x118] sm:$0xff]
        %v3156 = vld [vmem:[#allocation14 + $0x120] sm:$0xff]
        %v3157 = vld [vmem:[#allocation14 + $0x128] sm:$0xff]
        %v3158 = vld [vmem:[#allocation14 + $0x130] sm:$0xff]
        %v3159 = vld [vmem:[#allocation14 + $0x138] sm:$0xff]
        %v3160 = vld [vmem:[#allocation14 + $0x140] sm:$0xff]
        %v3161 = vld [vmem:[#allocation14 + $0x148] sm:$0xff]
        %v3162 = vld [vmem:[#allocation14 + $0x150] sm:$0xff]
        %v3163 = vld [vmem:[#allocation14 + $0x158] sm:$0xff]
        %v3164 = vld [vmem:[#allocation14 + $0x160] sm:$0xff]
        %v3165 = vld [vmem:[#allocation14 + $0x168] sm:$0xff]
        %v3166 = vld [vmem:[#allocation14 + $0x170] sm:$0xff]
        %v3167 = vld [vmem:[#allocation14 + $0x178] sm:$0xff]
        %v3168 = vld [vmem:[#allocation14 + $0x180] sm:$0xff]
        %v3169 = vld [vmem:[#allocation14 + $0x188] sm:$0xff]
        %v3170 = vld [vmem:[#allocation14 + $0x190] sm:$0xff]
        %v3171 = vld [vmem:[#allocation14 + $0x198] sm:$0xff]
        %v3172 = vld [vmem:[#allocation14 + $0x1a0] sm:$0xff]
        %v3173 = vld [vmem:[#allocation14 + $0x1a8] sm:$0xff]
        %v3174 = vld [vmem:[#allocation14 + $0x1b0] sm:$0xff]
        %v3175 = vld [vmem:[#allocation14 + $0x1b8] sm:$0xff]
        %v3176 = vld [vmem:[#allocation14 + $0x1c0] sm:$0xff]
        %v3177 = vld [vmem:[#allocation14 + $0x1c8] sm:$0xff]
        %v3178 = vld [vmem:[#allocation14 + $0x1d0] sm:$0xff]
        %v3179 = vld [vmem:[#allocation14 + $0x1d8] sm:$0xff]
        %v3180 = vld [vmem:[#allocation14 + $0x1e0] sm:$0xff]
        %v3181 = vld [vmem:[#allocation14 + $0x1e8] sm:$0xff]
        %v3182 = vld [vmem:[#allocation14 + $0x1f0] sm:$0xff]
        %v3183 = vld [vmem:[#allocation14 + $0x1f8] sm:$0xff]
        %v3248 = vunpack.c.l.b16 %v3120
        %v3249 = vunpack.c.h.b16 %v3120
        %v3250 = vunpack.c.l.b16 %v3121
        %v3251 = vunpack.c.h.b16 %v3121
        %v3252 = vunpack.c.l.b16 %v3122
        %v3253 = vunpack.c.h.b16 %v3122
        %v3254 = vunpack.c.l.b16 %v3123
        %v3255 = vunpack.c.h.b16 %v3123
        %v3256 = vunpack.c.l.b16 %v3124
        %v3257 = vunpack.c.h.b16 %v3124
        %v3258 = vunpack.c.l.b16 %v3125
        %v3259 = vunpack.c.h.b16 %v3125
        %v3260 = vunpack.c.l.b16 %v3126
        %v3261 = vunpack.c.h.b16 %v3126
        %v3262 = vunpack.c.l.b16 %v3127
        %v3263 = vunpack.c.h.b16 %v3127
        %v3264 = vunpack.c.l.b16 %v3128
        %v3265 = vunpack.c.h.b16 %v3128
        %v3266 = vunpack.c.l.b16 %v3129
        %v3267 = vunpack.c.h.b16 %v3129
        %v3268 = vunpack.c.l.b16 %v3130
        %v3269 = vunpack.c.h.b16 %v3130
        %v3270 = vunpack.c.l.b16 %v3131
        %v3271 = vunpack.c.h.b16 %v3131
        %v3272 = vunpack.c.l.b16 %v3132
        %v3273 = vunpack.c.h.b16 %v3132
        %v3274 = vunpack.c.l.b16 %v3133
        %v3275 = vunpack.c.h.b16 %v3133
        %v3276 = vunpack.c.l.b16 %v3134
        %v3277 = vunpack.c.h.b16 %v3134
        %v3278 = vunpack.c.l.b16 %v3135
        %v3279 = vunpack.c.h.b16 %v3135
        %v3280 = vunpack.c.l.b16 %v3136
        %v3281 = vunpack.c.h.b16 %v3136
        %v3282 = vunpack.c.l.b16 %v3137
        %v3283 = vunpack.c.h.b16 %v3137
        %v3284 = vunpack.c.l.b16 %v3138
        %v3285 = vunpack.c.h.b16 %v3138
        %v3286 = vunpack.c.l.b16 %v3139
        %v3287 = vunpack.c.h.b16 %v3139
        %v3288 = vunpack.c.l.b16 %v3140
        %v3289 = vunpack.c.h.b16 %v3140
        %v3290 = vunpack.c.l.b16 %v3141
        %v3291 = vunpack.c.h.b16 %v3141
        %v3292 = vunpack.c.l.b16 %v3142
        %v3293 = vunpack.c.h.b16 %v3142
        %v3294 = vunpack.c.l.b16 %v3143
        %v3295 = vunpack.c.h.b16 %v3143
        %v3296 = vunpack.c.l.b16 %v3144
        %v3297 = vunpack.c.h.b16 %v3144
        %v3298 = vunpack.c.l.b16 %v3145
        %v3299 = vunpack.c.h.b16 %v3145
        %v3300 = vunpack.c.l.b16 %v3146
        %v3301 = vunpack.c.h.b16 %v3146
        %v3302 = vunpack.c.l.b16 %v3147
        %v3303 = vunpack.c.h.b16 %v3147
        %v3304 = vunpack.c.l.b16 %v3148
        %v3305 = vunpack.c.h.b16 %v3148
        %v3306 = vunpack.c.l.b16 %v3149
        %v3307 = vunpack.c.h.b16 %v3149
        %v3308 = vunpack.c.l.b16 %v3150
        %v3309 = vunpack.c.h.b16 %v3150
        %v3310 = vunpack.c.l.b16 %v3151
        %v3311 = vunpack.c.h.b16 %v3151
        %v3312 = vunpack.c.l.b16 %v3152
        %v3313 = vunpack.c.h.b16 %v3152
        %v3314 = vunpack.c.l.b16 %v3153
        %v3315 = vunpack.c.h.b16 %v3153
        %v3316 = vunpack.c.l.b16 %v3154
        %v3317 = vunpack.c.h.b16 %v3154
        %v3318 = vunpack.c.l.b16 %v3155
        %v3319 = vunpack.c.h.b16 %v3155
        %v3320 = vunpack.c.l.b16 %v3156
        %v3321 = vunpack.c.h.b16 %v3156
        %v3322 = vunpack.c.l.b16 %v3157
        %v3323 = vunpack.c.h.b16 %v3157
        %v3324 = vunpack.c.l.b16 %v3158
        %v3325 = vunpack.c.h.b16 %v3158
        %v3326 = vunpack.c.l.b16 %v3159
        %v3327 = vunpack.c.h.b16 %v3159
        %v3328 = vunpack.c.l.b16 %v3160
        %v3329 = vunpack.c.h.b16 %v3160
        %v3330 = vunpack.c.l.b16 %v3161
        %v3331 = vunpack.c.h.b16 %v3161
        %v3332 = vunpack.c.l.b16 %v3162
        %v3333 = vunpack.c.h.b16 %v3162
        %v3334 = vunpack.c.l.b16 %v3163
        %v3335 = vunpack.c.h.b16 %v3163
        %v3336 = vunpack.c.l.b16 %v3164
        %v3337 = vunpack.c.h.b16 %v3164
        %v3338 = vunpack.c.l.b16 %v3165
        %v3339 = vunpack.c.h.b16 %v3165
        %v3340 = vunpack.c.l.b16 %v3166
        %v3341 = vunpack.c.h.b16 %v3166
        %v3342 = vunpack.c.l.b16 %v3167
        %v3343 = vunpack.c.h.b16 %v3167
        %v3344 = vunpack.c.l.b16 %v3168
        %v3345 = vunpack.c.h.b16 %v3168
        %v3346 = vunpack.c.l.b16 %v3169
        %v3347 = vunpack.c.h.b16 %v3169
        %v3348 = vunpack.c.l.b16 %v3170
        %v3349 = vunpack.c.h.b16 %v3170
        %v3350 = vunpack.c.l.b16 %v3171
        %v3351 = vunpack.c.h.b16 %v3171
        %v3352 = vunpack.c.l.b16 %v3172
        %v3353 = vunpack.c.h.b16 %v3172
        %v3354 = vunpack.c.l.b16 %v3173
        %v3355 = vunpack.c.h.b16 %v3173
        %v3356 = vunpack.c.l.b16 %v3174
        %v3357 = vunpack.c.h.b16 %v3174
        %v3358 = vunpack.c.l.b16 %v3175
        %v3359 = vunpack.c.h.b16 %v3175
        %v3360 = vunpack.c.l.b16 %v3176
        %v3361 = vunpack.c.h.b16 %v3176
        %v3362 = vunpack.c.l.b16 %v3177
        %v3363 = vunpack.c.h.b16 %v3177
        %v3364 = vunpack.c.l.b16 %v3178
        %v3365 = vunpack.c.h.b16 %v3178
        %v3366 = vunpack.c.l.b16 %v3179
        %v3367 = vunpack.c.h.b16 %v3179
        %v3368 = vunpack.c.l.b16 %v3180
        %v3369 = vunpack.c.h.b16 %v3180
        %v3370 = vunpack.c.l.b16 %v3181
        %v3371 = vunpack.c.h.b16 %v3181
        %v3372 = vunpack.c.l.b16 %v3182
        %v3373 = vunpack.c.h.b16 %v3182
        %v3374 = vunpack.c.l.b16 %v3183
        %v3375 = vunpack.c.h.b16 %v3183
        %v3376 = vpack.c.b16 %v3252, %v3248
        %v3377 = vpack.c.b16 %v3253, %v3249
        %v3378 = vpack.c.b16 %v3254, %v3250
        %v3379 = vpack.c.b16 %v3255, %v3251
        %v3380 = vpack.c.b16 %v3260, %v3256
        %v3381 = vpack.c.b16 %v3261, %v3257
        %v3382 = vpack.c.b16 %v3262, %v3258
        %v3383 = vpack.c.b16 %v3263, %v3259
        %v3384 = vpack.c.b16 %v3268, %v3264
        %v3385 = vpack.c.b16 %v3269, %v3265
        %v3386 = vpack.c.b16 %v3270, %v3266
        %v3387 = vpack.c.b16 %v3271, %v3267
        %v3388 = vpack.c.b16 %v3276, %v3272
        %v3389 = vpack.c.b16 %v3277, %v3273
        %v3390 = vpack.c.b16 %v3278, %v3274
        %v3391 = vpack.c.b16 %v3279, %v3275
        %v3392 = vpack.c.b16 %v3284, %v3280
        %v3393 = vpack.c.b16 %v3285, %v3281
        %v3394 = vpack.c.b16 %v3286, %v3282
        %v3395 = vpack.c.b16 %v3287, %v3283
        %v3396 = vpack.c.b16 %v3292, %v3288
        %v3397 = vpack.c.b16 %v3293, %v3289
        %v3398 = vpack.c.b16 %v3294, %v3290
        %v3399 = vpack.c.b16 %v3295, %v3291
        %v3400 = vpack.c.b16 %v3300, %v3296
        %v3401 = vpack.c.b16 %v3301, %v3297
        %v3402 = vpack.c.b16 %v3302, %v3298
        %v3403 = vpack.c.b16 %v3303, %v3299
        %v3404 = vpack.c.b16 %v3308, %v3304
        %v3405 = vpack.c.b16 %v3309, %v3305
        %v3406 = vpack.c.b16 %v3310, %v3306
        %v3407 = vpack.c.b16 %v3311, %v3307
        %v3408 = vpack.c.b16 %v3316, %v3312
        %v3409 = vpack.c.b16 %v3317, %v3313
        %v3410 = vpack.c.b16 %v3318, %v3314
        %v3411 = vpack.c.b16 %v3319, %v3315
        %v3412 = vpack.c.b16 %v3324, %v3320
        %v3413 = vpack.c.b16 %v3325, %v3321
        %v3414 = vpack.c.b16 %v3326, %v3322
        %v3415 = vpack.c.b16 %v3327, %v3323
        %v3416 = vpack.c.b16 %v3332, %v3328
        %v3417 = vpack.c.b16 %v3333, %v3329
        %v3418 = vpack.c.b16 %v3334, %v3330
        %v3419 = vpack.c.b16 %v3335, %v3331
        %v3420 = vpack.c.b16 %v3340, %v3336
        %v3421 = vpack.c.b16 %v3341, %v3337
        %v3422 = vpack.c.b16 %v3342, %v3338
        %v3423 = vpack.c.b16 %v3343, %v3339
        %v3424 = vpack.c.b16 %v3348, %v3344
        %v3425 = vpack.c.b16 %v3349, %v3345
        %v3426 = vpack.c.b16 %v3350, %v3346
        %v3427 = vpack.c.b16 %v3351, %v3347
        %v3428 = vpack.c.b16 %v3356, %v3352
        %v3429 = vpack.c.b16 %v3357, %v3353
        %v3430 = vpack.c.b16 %v3358, %v3354
        %v3431 = vpack.c.b16 %v3359, %v3355
        %v3432 = vpack.c.b16 %v3364, %v3360
        %v3433 = vpack.c.b16 %v3365, %v3361
        %v3434 = vpack.c.b16 %v3366, %v3362
        %v3435 = vpack.c.b16 %v3367, %v3363
        %v3436 = vpack.c.b16 %v3372, %v3368
        %v3437 = vpack.c.b16 %v3373, %v3369
        %v3438 = vpack.c.b16 %v3374, %v3370
        %v3439 = vpack.c.b16 %v3375, %v3371
        %3504 = vmatprep.subr.bf16.mxu0 %v3405
        %3505 = vmatpush1.bf16.msra.mxu0 %v3404
        %3506 = vmatprep.subr.bf16.mxu0 %v3401
        %3507 = vmatpush1.bf16.msra.mxu0 %v3400
        %3508 = vmatprep.subr.bf16.mxu0 %v3397
        %3509 = vmatpush1.bf16.msra.mxu0 %v3396
        %3510 = vmatprep.subr.bf16.mxu0 %v3393
        %3511 = vmatpush1.bf16.msra.mxu0 %v3392
        %3512 = vmatprep.subr.bf16.mxu0 %v3389
        %3513 = vmatpush1.bf16.msra.mxu0 %v3388
        %3514 = vmatprep.subr.bf16.mxu0 %v3385
        %3515 = vmatpush1.bf16.msra.mxu0 %v3384
        %3516 = vmatprep.subr.bf16.mxu0 %v3381
        %3517 = vmatpush1.bf16.msra.mxu0 %v3380
        %3518 = vmatprep.subr.bf16.mxu0 %v3377
        %3519 = vmatpush1.bf16.msra.mxu0 %v3376
        %3520 = vmatprep.subr.bf16.mxu0 %v3437
        %3521 = vmatpush2.bf16.msra.mxu0 %v3436
        %3522 = vmatprep.subr.bf16.mxu0 %v3433
        %3523 = vmatpush2.bf16.msra.mxu0 %v3432
        %3524 = vmatprep.subr.bf16.mxu0 %v3429
        %3525 = vmatpush2.bf16.msra.mxu0 %v3428
        %3526 = vmatprep.subr.bf16.mxu0 %v3425
        %3527 = vmatpush2.bf16.msra.mxu0 %v3424
        %3528 = vmatprep.subr.bf16.mxu0 %v3421
        %3529 = vmatpush2.bf16.msra.mxu0 %v3420
        %3530 = vmatprep.subr.bf16.mxu0 %v3417
        %3531 = vmatpush2.bf16.msra.mxu0 %v3416
        %3532 = vmatprep.subr.bf16.mxu0 %v3413
        %3533 = vmatpush2.bf16.msra.mxu0 %v3412
        %3534 = vmatprep.subr.bf16.mxu0 %v3409
        %3535 = vmatpush2.bf16.msra.mxu0 %v3408
        %3536 = vmatprep.mubr.bf16.mxu0 %v3119
        %3537 = vmatmul.mubr.bf16.gmra.mxu0 %v3118
        %v3538 = vpop.f32.mrf.mxu0
        %v3539 = vadd.f32 0.0, %v3538
        %v3540 = vpop.f32.mrf.mxu0
        %v3541 = vadd.f32 0.0, %v3540
        %v3542 = vpop.f32.mrf.mxu0
        %v3543 = vadd.f32 0.0, %v3542
        %v3544 = vpop.f32.mrf.mxu0
        %v3545 = vadd.f32 0.0, %v3544
        %3546 = vdwg.mxu0
        %3547 = vmatprep.subr.bf16.mxu0 %v3407
        %3548 = vmatpush1.bf16.msra.mxu0 %v3406
        %3549 = vmatprep.subr.bf16.mxu0 %v3403
        %3550 = vmatpush1.bf16.msra.mxu0 %v3402
        %3551 = vmatprep.subr.bf16.mxu0 %v3399
        %3552 = vmatpush1.bf16.msra.mxu0 %v3398
        %3553 = vmatprep.subr.bf16.mxu0 %v3395
        %3554 = vmatpush1.bf16.msra.mxu0 %v3394
        %3555 = vmatprep.subr.bf16.mxu0 %v3391
        %3556 = vmatpush1.bf16.msra.mxu0 %v3390
        %3557 = vmatprep.subr.bf16.mxu0 %v3387
        %3558 = vmatpush1.bf16.msra.mxu0 %v3386
        %3559 = vmatprep.subr.bf16.mxu0 %v3383
        %3560 = vmatpush1.bf16.msra.mxu0 %v3382
        %3561 = vmatprep.subr.bf16.mxu0 %v3379
        %3562 = vmatpush1.bf16.msra.mxu0 %v3378
        %3563 = vmatprep.subr.bf16.mxu0 %v3439
        %3564 = vmatpush2.bf16.msra.mxu0 %v3438
        %3565 = vmatprep.subr.bf16.mxu0 %v3435
        %3566 = vmatpush2.bf16.msra.mxu0 %v3434
        %3567 = vmatprep.subr.bf16.mxu0 %v3431
        %3568 = vmatpush2.bf16.msra.mxu0 %v3430
        %3569 = vmatprep.subr.bf16.mxu0 %v3427
        %3570 = vmatpush2.bf16.msra.mxu0 %v3426
        %3571 = vmatprep.subr.bf16.mxu0 %v3423
        %3572 = vmatpush2.bf16.msra.mxu0 %v3422
        %3573 = vmatprep.subr.bf16.mxu0 %v3419
        %3574 = vmatpush2.bf16.msra.mxu0 %v3418
        %3575 = vmatprep.subr.bf16.mxu0 %v3415
        %3576 = vmatpush2.bf16.msra.mxu0 %v3414
        %3577 = vmatprep.subr.bf16.mxu0 %v3411
        %3578 = vmatpush2.bf16.msra.mxu0 %v3410
        %3579 = vmatprep.mubr.bf16.mxu0 %v3119
        %3580 = vmatmul.mubr.bf16.gmra.mxu0 %v3118
        %v3581 = vpop.f32.mrf.mxu0
        %v3582 = vadd.f32 0.0, %v3581
        %v3583 = vpop.f32.mrf.mxu0
        %v3584 = vadd.f32 0.0, %v3583
        %v3585 = vpop.f32.mrf.mxu0
        %v3586 = vadd.f32 0.0, %v3585
        %v3587 = vpop.f32.mrf.mxu0
        %v3588 = vadd.f32 0.0, %v3587
        %3589 = vdwg.mxu0
        %v3590 = vpack.c.bf16 %v3543, %v3539
        %v3591 = vpack.c.bf16 %v3545, %v3541
        %v3592 = vpack.c.bf16 %v3586, %v3582
        %v3593 = vpack.c.bf16 %v3588, %v3584
        %v3594 = vld [vmem:[%s10] sm:$0xf]
        %v3596 = vlaneseq
        %v3597 = vshrl.u32 %v3596, 7
        %v3598 = vsub.s32 0, %v3597
        %v3599 = vrot.slane %v3594, %v3598
        %v3600 = vlaneseq
        %v3601 = vshrl.u32 %v3600, 7
        %v3602 = vsub.s32 1, %v3601
        %v3603 = vrot.slane %v3594, %v3602
        %v3604 = vlaneseq
        %v3605 = vshrl.u32 %v3604, 7
        %v3606 = vsub.s32 2, %v3605
        %v3607 = vrot.slane %v3594, %v3606
        %v3608 = vlaneseq
        %v3609 = vshrl.u32 %v3608, 7
        %v3610 = vsub.s32 3, %v3609
        %v3611 = vrot.slane %v3594, %v3610
        %v3616 = vpack.c.bf16 %v3599, %v3599
        %v3617 = vpack.c.bf16 %v3603, %v3603
        %v3618 = vpack.c.bf16 %v3607, %v3607
        %v3619 = vpack.c.bf16 %v3611, %v3611
        %v3621 = vpack.i.b16 %v3616, %v3616
        %v3623 = vlaneseq
        %v3624 = vshrl.u32 %v3623, 7
        %v3625 = vsub.s32 0, %v3624
        %v3626 = vrot.slane %v3621, %v3625
        %v3628 = vpack.i.b16 %v3617, %v3617
        %v3630 = vlaneseq
        %v3631 = vshrl.u32 %v3630, 7
        %v3632 = vsub.s32 0, %v3631
        %v3633 = vrot.slane %v3628, %v3632
        %v3635 = vpack.i.b16 %v3618, %v3618
        %v3637 = vlaneseq
        %v3638 = vshrl.u32 %v3637, 7
        %v3639 = vsub.s32 0, %v3638
        %v3640 = vrot.slane %v3635, %v3639
        %v3642 = vpack.i.b16 %v3619, %v3619
        %v3644 = vlaneseq
        %v3645 = vshrl.u32 %v3644, 7
        %v3646 = vsub.s32 0, %v3645
        %v3647 = vrot.slane %v3642, %v3646
        %v3648 = vadd.bf16 %v3590, %v3626
        %v3649 = vadd.bf16 %v3591, %v3633
        %v3650 = vadd.bf16 %v3592, %v3640
        %v3651 = vadd.bf16 %v3593, %v3647
        %v3652 = vmax.bf16 %v3648, 0
        %v3653 = vmax.bf16 %v3649, 0
        %v3654 = vmax.bf16 %v3650, 0
        %v3655 = vmax.bf16 %v3651, 0
        %v3656 = vld [vmem:[#allocation16] sm:$0xff]
        %v3657 = vld [vmem:[#allocation16 + $0x8] sm:$0xff]
        %v3658 = vld [vmem:[#allocation16 + $0x10] sm:$0xff]
        %v3659 = vld [vmem:[#allocation16 + $0x18] sm:$0xff]
        %v3660 = vld [vmem:[#allocation16 + $0x20] sm:$0xff]
        %v3661 = vld [vmem:[#allocation16 + $0x28] sm:$0xff]
        %v3662 = vld [vmem:[#allocation16 + $0x30] sm:$0xff]
        %v3663 = vld [vmem:[#allocation16 + $0x38] sm:$0xff]
        %v3664 = vld [vmem:[#allocation16 + $0x40] sm:$0xff]
        %v3665 = vld [vmem:[#allocation16 + $0x48] sm:$0xff]
        %v3666 = vld [vmem:[#allocation16 + $0x50] sm:$0xff]
        %v3667 = vld [vmem:[#allocation16 + $0x58] sm:$0xff]
        %v3668 = vld [vmem:[#allocation16 + $0x60] sm:$0xff]
        %v3669 = vld [vmem:[#allocation16 + $0x68] sm:$0xff]
        %v3670 = vld [vmem:[#allocation16 + $0x70] sm:$0xff]
        %v3671 = vld [vmem:[#allocation16 + $0x78] sm:$0xff]
        %v3672 = vld [vmem:[#allocation16 + $0x80] sm:$0xff]
        %v3673 = vld [vmem:[#allocation16 + $0x88] sm:$0xff]
        %v3674 = vld [vmem:[#allocation16 + $0x90] sm:$0xff]
        %v3675 = vld [vmem:[#allocation16 + $0x98] sm:$0xff]
        %v3676 = vld [vmem:[#allocation16 + $0xa0] sm:$0xff]
        %v3677 = vld [vmem:[#allocation16 + $0xa8] sm:$0xff]
        %v3678 = vld [vmem:[#allocation16 + $0xb0] sm:$0xff]
        %v3679 = vld [vmem:[#allocation16 + $0xb8] sm:$0xff]
        %v3680 = vld [vmem:[#allocation16 + $0xc0] sm:$0xff]
        %v3681 = vld [vmem:[#allocation16 + $0xc8] sm:$0xff]
        %v3682 = vld [vmem:[#allocation16 + $0xd0] sm:$0xff]
        %v3683 = vld [vmem:[#allocation16 + $0xd8] sm:$0xff]
        %v3684 = vld [vmem:[#allocation16 + $0xe0] sm:$0xff]
        %v3685 = vld [vmem:[#allocation16 + $0xe8] sm:$0xff]
        %v3686 = vld [vmem:[#allocation16 + $0xf0] sm:$0xff]
        %v3687 = vld [vmem:[#allocation16 + $0xf8] sm:$0xff]
        %v3688 = vld [vmem:[#allocation16 + $0x100] sm:$0xff]
        %v3689 = vld [vmem:[#allocation16 + $0x108] sm:$0xff]
        %v3690 = vld [vmem:[#allocation16 + $0x110] sm:$0xff]
        %v3691 = vld [vmem:[#allocation16 + $0x118] sm:$0xff]
        %v3692 = vld [vmem:[#allocation16 + $0x120] sm:$0xff]
        %v3693 = vld [vmem:[#allocation16 + $0x128] sm:$0xff]
        %v3694 = vld [vmem:[#allocation16 + $0x130] sm:$0xff]
        %v3695 = vld [vmem:[#allocation16 + $0x138] sm:$0xff]
        %v3696 = vld [vmem:[#allocation16 + $0x140] sm:$0xff]
        %v3697 = vld [vmem:[#allocation16 + $0x148] sm:$0xff]
        %v3698 = vld [vmem:[#allocation16 + $0x150] sm:$0xff]
        %v3699 = vld [vmem:[#allocation16 + $0x158] sm:$0xff]
        %v3700 = vld [vmem:[#allocation16 + $0x160] sm:$0xff]
        %v3701 = vld [vmem:[#allocation16 + $0x168] sm:$0xff]
        %v3702 = vld [vmem:[#allocation16 + $0x170] sm:$0xff]
        %v3703 = vld [vmem:[#allocation16 + $0x178] sm:$0xff]
        %v3704 = vld [vmem:[#allocation16 + $0x180] sm:$0xff]
        %v3705 = vld [vmem:[#allocation16 + $0x188] sm:$0xff]
        %v3706 = vld [vmem:[#allocation16 + $0x190] sm:$0xff]
        %v3707 = vld [vmem:[#allocation16 + $0x198] sm:$0xff]
        %v3708 = vld [vmem:[#allocation16 + $0x1a0] sm:$0xff]
        %v3709 = vld [vmem:[#allocation16 + $0x1a8] sm:$0xff]
        %v3710 = vld [vmem:[#allocation16 + $0x1b0] sm:$0xff]
        %v3711 = vld [vmem:[#allocation16 + $0x1b8] sm:$0xff]
        %v3712 = vld [vmem:[#allocation16 + $0x1c0] sm:$0xff]
        %v3713 = vld [vmem:[#allocation16 + $0x1c8] sm:$0xff]
        %v3714 = vld [vmem:[#allocation16 + $0x1d0] sm:$0xff]
        %v3715 = vld [vmem:[#allocation16 + $0x1d8] sm:$0xff]
        %v3716 = vld [vmem:[#allocation16 + $0x1e0] sm:$0xff]
        %v3717 = vld [vmem:[#allocation16 + $0x1e8] sm:$0xff]
        %v3718 = vld [vmem:[#allocation16 + $0x1f0] sm:$0xff]
        %v3719 = vld [vmem:[#allocation16 + $0x1f8] sm:$0xff]
        %v3720 = vld [vmem:[#allocation16 + $0x200] sm:$0xff]
        %v3721 = vld [vmem:[#allocation16 + $0x208] sm:$0xff]
        %v3722 = vld [vmem:[#allocation16 + $0x210] sm:$0xff]
        %v3723 = vld [vmem:[#allocation16 + $0x218] sm:$0xff]
        %v3724 = vld [vmem:[#allocation16 + $0x220] sm:$0xff]
        %v3725 = vld [vmem:[#allocation16 + $0x228] sm:$0xff]
        %v3726 = vld [vmem:[#allocation16 + $0x230] sm:$0xff]
        %v3727 = vld [vmem:[#allocation16 + $0x238] sm:$0xff]
        %v3728 = vld [vmem:[#allocation16 + $0x240] sm:$0xff]
        %v3729 = vld [vmem:[#allocation16 + $0x248] sm:$0xff]
        %v3730 = vld [vmem:[#allocation16 + $0x250] sm:$0xff]
        %v3731 = vld [vmem:[#allocation16 + $0x258] sm:$0xff]
        %v3732 = vld [vmem:[#allocation16 + $0x260] sm:$0xff]
        %v3733 = vld [vmem:[#allocation16 + $0x268] sm:$0xff]
        %v3734 = vld [vmem:[#allocation16 + $0x270] sm:$0xff]
        %v3735 = vld [vmem:[#allocation16 + $0x278] sm:$0xff]
        %v3736 = vld [vmem:[#allocation16 + $0x280] sm:$0xff]
        %v3737 = vld [vmem:[#allocation16 + $0x288] sm:$0xff]
        %v3738 = vld [vmem:[#allocation16 + $0x290] sm:$0xff]
        %v3739 = vld [vmem:[#allocation16 + $0x298] sm:$0xff]
        %v3740 = vld [vmem:[#allocation16 + $0x2a0] sm:$0xff]
        %v3741 = vld [vmem:[#allocation16 + $0x2a8] sm:$0xff]
        %v3742 = vld [vmem:[#allocation16 + $0x2b0] sm:$0xff]
        %v3743 = vld [vmem:[#allocation16 + $0x2b8] sm:$0xff]
        %v3744 = vld [vmem:[#allocation16 + $0x2c0] sm:$0xff]
        %v3745 = vld [vmem:[#allocation16 + $0x2c8] sm:$0xff]
        %v3746 = vld [vmem:[#allocation16 + $0x2d0] sm:$0xff]
        %v3747 = vld [vmem:[#allocation16 + $0x2d8] sm:$0xff]
        %v3748 = vld [vmem:[#allocation16 + $0x2e0] sm:$0xff]
        %v3749 = vld [vmem:[#allocation16 + $0x2e8] sm:$0xff]
        %v3750 = vld [vmem:[#allocation16 + $0x2f0] sm:$0xff]
        %v3751 = vld [vmem:[#allocation16 + $0x2f8] sm:$0xff]
        %v3752 = vld [vmem:[#allocation16 + $0x300] sm:$0xff]
        %v3753 = vld [vmem:[#allocation16 + $0x308] sm:$0xff]
        %v3754 = vld [vmem:[#allocation16 + $0x310] sm:$0xff]
        %v3755 = vld [vmem:[#allocation16 + $0x318] sm:$0xff]
        %v3756 = vld [vmem:[#allocation16 + $0x320] sm:$0xff]
        %v3757 = vld [vmem:[#allocation16 + $0x328] sm:$0xff]
        %v3758 = vld [vmem:[#allocation16 + $0x330] sm:$0xff]
        %v3759 = vld [vmem:[#allocation16 + $0x338] sm:$0xff]
        %v3760 = vld [vmem:[#allocation16 + $0x340] sm:$0xff]
        %v3761 = vld [vmem:[#allocation16 + $0x348] sm:$0xff]
        %v3762 = vld [vmem:[#allocation16 + $0x350] sm:$0xff]
        %v3763 = vld [vmem:[#allocation16 + $0x358] sm:$0xff]
        %v3764 = vld [vmem:[#allocation16 + $0x360] sm:$0xff]
        %v3765 = vld [vmem:[#allocation16 + $0x368] sm:$0xff]
        %v3766 = vld [vmem:[#allocation16 + $0x370] sm:$0xff]
        %v3767 = vld [vmem:[#allocation16 + $0x378] sm:$0xff]
        %v3768 = vld [vmem:[#allocation16 + $0x380] sm:$0xff]
        %v3769 = vld [vmem:[#allocation16 + $0x388] sm:$0xff]
        %v3770 = vld [vmem:[#allocation16 + $0x390] sm:$0xff]
        %v3771 = vld [vmem:[#allocation16 + $0x398] sm:$0xff]
        %v3772 = vld [vmem:[#allocation16 + $0x3a0] sm:$0xff]
        %v3773 = vld [vmem:[#allocation16 + $0x3a8] sm:$0xff]
        %v3774 = vld [vmem:[#allocation16 + $0x3b0] sm:$0xff]
        %v3775 = vld [vmem:[#allocation16 + $0x3b8] sm:$0xff]
        %v3776 = vld [vmem:[#allocation16 + $0x3c0] sm:$0xff]
        %v3777 = vld [vmem:[#allocation16 + $0x3c8] sm:$0xff]
        %v3778 = vld [vmem:[#allocation16 + $0x3d0] sm:$0xff]
        %v3779 = vld [vmem:[#allocation16 + $0x3d8] sm:$0xff]
        %v3780 = vld [vmem:[#allocation16 + $0x3e0] sm:$0xff]
        %v3781 = vld [vmem:[#allocation16 + $0x3e8] sm:$0xff]
        %v3782 = vld [vmem:[#allocation16 + $0x3f0] sm:$0xff]
        %v3783 = vld [vmem:[#allocation16 + $0x3f8] sm:$0xff]
        %v3784 = vld [vmem:[#allocation16 + $0x400] sm:$0xff]
        %v3785 = vld [vmem:[#allocation16 + $0x408] sm:$0xff]
        %v3786 = vld [vmem:[#allocation16 + $0x410] sm:$0xff]
        %v3787 = vld [vmem:[#allocation16 + $0x418] sm:$0xff]
        %v3788 = vld [vmem:[#allocation16 + $0x420] sm:$0xff]
        %v3789 = vld [vmem:[#allocation16 + $0x428] sm:$0xff]
        %v3790 = vld [vmem:[#allocation16 + $0x430] sm:$0xff]
        %v3791 = vld [vmem:[#allocation16 + $0x438] sm:$0xff]
        %v3792 = vld [vmem:[#allocation16 + $0x440] sm:$0xff]
        %v3793 = vld [vmem:[#allocation16 + $0x448] sm:$0xff]
        %v3794 = vld [vmem:[#allocation16 + $0x450] sm:$0xff]
        %v3795 = vld [vmem:[#allocation16 + $0x458] sm:$0xff]
        %v3796 = vld [vmem:[#allocation16 + $0x460] sm:$0xff]
        %v3797 = vld [vmem:[#allocation16 + $0x468] sm:$0xff]
        %v3798 = vld [vmem:[#allocation16 + $0x470] sm:$0xff]
        %v3799 = vld [vmem:[#allocation16 + $0x478] sm:$0xff]
        %v3800 = vld [vmem:[#allocation16 + $0x480] sm:$0xff]
        %v3801 = vld [vmem:[#allocation16 + $0x488] sm:$0xff]
        %v3802 = vld [vmem:[#allocation16 + $0x490] sm:$0xff]
        %v3803 = vld [vmem:[#allocation16 + $0x498] sm:$0xff]
        %v3804 = vld [vmem:[#allocation16 + $0x4a0] sm:$0xff]
        %v3805 = vld [vmem:[#allocation16 + $0x4a8] sm:$0xff]
        %v3806 = vld [vmem:[#allocation16 + $0x4b0] sm:$0xff]
        %v3807 = vld [vmem:[#allocation16 + $0x4b8] sm:$0xff]
        %v3808 = vld [vmem:[#allocation16 + $0x4c0] sm:$0xff]
        %v3809 = vld [vmem:[#allocation16 + $0x4c8] sm:$0xff]
        %v3810 = vld [vmem:[#allocation16 + $0x4d0] sm:$0xff]
        %v3811 = vld [vmem:[#allocation16 + $0x4d8] sm:$0xff]
        %v3812 = vld [vmem:[#allocation16 + $0x4e0] sm:$0xff]
        %v3813 = vld [vmem:[#allocation16 + $0x4e8] sm:$0xff]
        %v3814 = vld [vmem:[#allocation16 + $0x4f0] sm:$0xff]
        %v3815 = vld [vmem:[#allocation16 + $0x4f8] sm:$0xff]
        %v3816 = vld [vmem:[#allocation16 + $0x500] sm:$0xff]
        %v3817 = vld [vmem:[#allocation16 + $0x508] sm:$0xff]
        %v3818 = vld [vmem:[#allocation16 + $0x510] sm:$0xff]
        %v3819 = vld [vmem:[#allocation16 + $0x518] sm:$0xff]
        %v3820 = vld [vmem:[#allocation16 + $0x520] sm:$0xff]
        %v3821 = vld [vmem:[#allocation16 + $0x528] sm:$0xff]
        %v3822 = vld [vmem:[#allocation16 + $0x530] sm:$0xff]
        %v3823 = vld [vmem:[#allocation16 + $0x538] sm:$0xff]
        %v3824 = vld [vmem:[#allocation16 + $0x540] sm:$0xff]
        %v3825 = vld [vmem:[#allocation16 + $0x548] sm:$0xff]
        %v3826 = vld [vmem:[#allocation16 + $0x550] sm:$0xff]
        %v3827 = vld [vmem:[#allocation16 + $0x558] sm:$0xff]
        %v3828 = vld [vmem:[#allocation16 + $0x560] sm:$0xff]
        %v3829 = vld [vmem:[#allocation16 + $0x568] sm:$0xff]
        %v3830 = vld [vmem:[#allocation16 + $0x570] sm:$0xff]
        %v3831 = vld [vmem:[#allocation16 + $0x578] sm:$0xff]
        %v3832 = vld [vmem:[#allocation16 + $0x580] sm:$0xff]
        %v3833 = vld [vmem:[#allocation16 + $0x588] sm:$0xff]
        %v3834 = vld [vmem:[#allocation16 + $0x590] sm:$0xff]
        %v3835 = vld [vmem:[#allocation16 + $0x598] sm:$0xff]
        %v3836 = vld [vmem:[#allocation16 + $0x5a0] sm:$0xff]
        %v3837 = vld [vmem:[#allocation16 + $0x5a8] sm:$0xff]
        %v3838 = vld [vmem:[#allocation16 + $0x5b0] sm:$0xff]
        %v3839 = vld [vmem:[#allocation16 + $0x5b8] sm:$0xff]
        %v3840 = vld [vmem:[#allocation16 + $0x5c0] sm:$0xff]
        %v3841 = vld [vmem:[#allocation16 + $0x5c8] sm:$0xff]
        %v3842 = vld [vmem:[#allocation16 + $0x5d0] sm:$0xff]
        %v3843 = vld [vmem:[#allocation16 + $0x5d8] sm:$0xff]
        %v3844 = vld [vmem:[#allocation16 + $0x5e0] sm:$0xff]
        %v3845 = vld [vmem:[#allocation16 + $0x5e8] sm:$0xff]
        %v3846 = vld [vmem:[#allocation16 + $0x5f0] sm:$0xff]
        %v3847 = vld [vmem:[#allocation16 + $0x5f8] sm:$0xff]
        %v3848 = vld [vmem:[%s12] sm:$0x3f]
        %v3850 = vlaneseq
        %v3851 = vshrl.u32 %v3850, 7
        %v3852 = vsub.s32 0, %v3851
        %v3853 = vrot.slane %v3848, %v3852
        %v3854 = vlaneseq
        %v3855 = vshrl.u32 %v3854, 7
        %v3856 = vsub.s32 1, %v3855
        %v3857 = vrot.slane %v3848, %v3856
        %v3858 = vlaneseq
        %v3859 = vshrl.u32 %v3858, 7
        %v3860 = vsub.s32 2, %v3859
        %v3861 = vrot.slane %v3848, %v3860
        %v3862 = vlaneseq
        %v3863 = vshrl.u32 %v3862, 7
        %v3864 = vsub.s32 3, %v3863
        %v3865 = vrot.slane %v3848, %v3864
        %v3866 = vlaneseq
        %v3867 = vshrl.u32 %v3866, 7
        %v3868 = vsub.s32 4, %v3867
        %v3869 = vrot.slane %v3848, %v3868
        %v3870 = vlaneseq
        %v3871 = vshrl.u32 %v3870, 7
        %v3872 = vsub.s32 5, %v3871
        %v3873 = vrot.slane %v3848, %v3872
        %v4072 = vunpack.c.l.b16 %v3656
        %v4073 = vunpack.c.h.b16 %v3656
        %v4074 = vunpack.c.l.b16 %v3657
        %v4075 = vunpack.c.h.b16 %v3657
        %v4076 = vunpack.c.l.b16 %v3658
        %v4077 = vunpack.c.h.b16 %v3658
        %v4078 = vunpack.c.l.b16 %v3659
        %v4079 = vunpack.c.h.b16 %v3659
        %v4080 = vunpack.c.l.b16 %v3660
        %v4081 = vunpack.c.h.b16 %v3660
        %v4082 = vunpack.c.l.b16 %v3661
        %v4083 = vunpack.c.h.b16 %v3661
        %v4084 = vunpack.c.l.b16 %v3662
        %v4085 = vunpack.c.h.b16 %v3662
        %v4086 = vunpack.c.l.b16 %v3663
        %v4087 = vunpack.c.h.b16 %v3663
        %v4088 = vunpack.c.l.b16 %v3664
        %v4089 = vunpack.c.h.b16 %v3664
        %v4090 = vunpack.c.l.b16 %v3665
        %v4091 = vunpack.c.h.b16 %v3665
        %v4092 = vunpack.c.l.b16 %v3666
        %v4093 = vunpack.c.h.b16 %v3666
        %v4094 = vunpack.c.l.b16 %v3667
        %v4095 = vunpack.c.h.b16 %v3667
        %v4096 = vunpack.c.l.b16 %v3668
        %v4097 = vunpack.c.h.b16 %v3668
        %v4098 = vunpack.c.l.b16 %v3669
        %v4099 = vunpack.c.h.b16 %v3669
        %v4100 = vunpack.c.l.b16 %v3670
        %v4101 = vunpack.c.h.b16 %v3670
        %v4102 = vunpack.c.l.b16 %v3671
        %v4103 = vunpack.c.h.b16 %v3671
        %v4104 = vunpack.c.l.b16 %v3672
        %v4105 = vunpack.c.h.b16 %v3672
        %v4106 = vunpack.c.l.b16 %v3673
        %v4107 = vunpack.c.h.b16 %v3673
        %v4108 = vunpack.c.l.b16 %v3674
        %v4109 = vunpack.c.h.b16 %v3674
        %v4110 = vunpack.c.l.b16 %v3675
        %v4111 = vunpack.c.h.b16 %v3675
        %v4112 = vunpack.c.l.b16 %v3676
        %v4113 = vunpack.c.h.b16 %v3676
        %v4114 = vunpack.c.l.b16 %v3677
        %v4115 = vunpack.c.h.b16 %v3677
        %v4116 = vunpack.c.l.b16 %v3678
        %v4117 = vunpack.c.h.b16 %v3678
        %v4118 = vunpack.c.l.b16 %v3679
        %v4119 = vunpack.c.h.b16 %v3679
        %v4120 = vunpack.c.l.b16 %v3680
        %v4121 = vunpack.c.h.b16 %v3680
        %v4122 = vunpack.c.l.b16 %v3681
        %v4123 = vunpack.c.h.b16 %v3681
        %v4124 = vunpack.c.l.b16 %v3682
        %v4125 = vunpack.c.h.b16 %v3682
        %v4126 = vunpack.c.l.b16 %v3683
        %v4127 = vunpack.c.h.b16 %v3683
        %v4128 = vunpack.c.l.b16 %v3684
        %v4129 = vunpack.c.h.b16 %v3684
        %v4130 = vunpack.c.l.b16 %v3685
        %v4131 = vunpack.c.h.b16 %v3685
        %v4132 = vunpack.c.l.b16 %v3686
        %v4133 = vunpack.c.h.b16 %v3686
        %v4134 = vunpack.c.l.b16 %v3687
        %v4135 = vunpack.c.h.b16 %v3687
        %v4136 = vunpack.c.l.b16 %v3688
        %v4137 = vunpack.c.h.b16 %v3688
        %v4138 = vunpack.c.l.b16 %v3689
        %v4139 = vunpack.c.h.b16 %v3689
        %v4140 = vunpack.c.l.b16 %v3690
        %v4141 = vunpack.c.h.b16 %v3690
        %v4142 = vunpack.c.l.b16 %v3691
        %v4143 = vunpack.c.h.b16 %v3691
        %v4144 = vunpack.c.l.b16 %v3692
        %v4145 = vunpack.c.h.b16 %v3692
        %v4146 = vunpack.c.l.b16 %v3693
        %v4147 = vunpack.c.h.b16 %v3693
        %v4148 = vunpack.c.l.b16 %v3694
        %v4149 = vunpack.c.h.b16 %v3694
        %v4150 = vunpack.c.l.b16 %v3695
        %v4151 = vunpack.c.h.b16 %v3695
        %v4152 = vunpack.c.l.b16 %v3696
        %v4153 = vunpack.c.h.b16 %v3696
        %v4154 = vunpack.c.l.b16 %v3697
        %v4155 = vunpack.c.h.b16 %v3697
        %v4156 = vunpack.c.l.b16 %v3698
        %v4157 = vunpack.c.h.b16 %v3698
        %v4158 = vunpack.c.l.b16 %v3699
        %v4159 = vunpack.c.h.b16 %v3699
        %v4160 = vunpack.c.l.b16 %v3700
        %v4161 = vunpack.c.h.b16 %v3700
        %v4162 = vunpack.c.l.b16 %v3701
        %v4163 = vunpack.c.h.b16 %v3701
        %v4164 = vunpack.c.l.b16 %v3702
        %v4165 = vunpack.c.h.b16 %v3702
        %v4166 = vunpack.c.l.b16 %v3703
        %v4167 = vunpack.c.h.b16 %v3703
        %v4168 = vunpack.c.l.b16 %v3704
        %v4169 = vunpack.c.h.b16 %v3704
        %v4170 = vunpack.c.l.b16 %v3705
        %v4171 = vunpack.c.h.b16 %v3705
        %v4172 = vunpack.c.l.b16 %v3706
        %v4173 = vunpack.c.h.b16 %v3706
        %v4174 = vunpack.c.l.b16 %v3707
        %v4175 = vunpack.c.h.b16 %v3707
        %v4176 = vunpack.c.l.b16 %v3708
        %v4177 = vunpack.c.h.b16 %v3708
        %v4178 = vunpack.c.l.b16 %v3709
        %v4179 = vunpack.c.h.b16 %v3709
        %v4180 = vunpack.c.l.b16 %v3710
        %v4181 = vunpack.c.h.b16 %v3710
        %v4182 = vunpack.c.l.b16 %v3711
        %v4183 = vunpack.c.h.b16 %v3711
        %v4184 = vunpack.c.l.b16 %v3712
        %v4185 = vunpack.c.h.b16 %v3712
        %v4186 = vunpack.c.l.b16 %v3713
        %v4187 = vunpack.c.h.b16 %v3713
        %v4188 = vunpack.c.l.b16 %v3714
        %v4189 = vunpack.c.h.b16 %v3714
        %v4190 = vunpack.c.l.b16 %v3715
        %v4191 = vunpack.c.h.b16 %v3715
        %v4192 = vunpack.c.l.b16 %v3716
        %v4193 = vunpack.c.h.b16 %v3716
        %v4194 = vunpack.c.l.b16 %v3717
        %v4195 = vunpack.c.h.b16 %v3717
        %v4196 = vunpack.c.l.b16 %v3718
        %v4197 = vunpack.c.h.b16 %v3718
        %v4198 = vunpack.c.l.b16 %v3719
        %v4199 = vunpack.c.h.b16 %v3719
        %v4200 = vunpack.c.l.b16 %v3720
        %v4201 = vunpack.c.h.b16 %v3720
        %v4202 = vunpack.c.l.b16 %v3721
        %v4203 = vunpack.c.h.b16 %v3721
        %v4204 = vunpack.c.l.b16 %v3722
        %v4205 = vunpack.c.h.b16 %v3722
        %v4206 = vunpack.c.l.b16 %v3723
        %v4207 = vunpack.c.h.b16 %v3723
        %v4208 = vunpack.c.l.b16 %v3724
        %v4209 = vunpack.c.h.b16 %v3724
        %v4210 = vunpack.c.l.b16 %v3725
        %v4211 = vunpack.c.h.b16 %v3725
        %v4212 = vunpack.c.l.b16 %v3726
        %v4213 = vunpack.c.h.b16 %v3726
        %v4214 = vunpack.c.l.b16 %v3727
        %v4215 = vunpack.c.h.b16 %v3727
        %v4216 = vunpack.c.l.b16 %v3728
        %v4217 = vunpack.c.h.b16 %v3728
        %v4218 = vunpack.c.l.b16 %v3729
        %v4219 = vunpack.c.h.b16 %v3729
        %v4220 = vunpack.c.l.b16 %v3730
        %v4221 = vunpack.c.h.b16 %v3730
        %v4222 = vunpack.c.l.b16 %v3731
        %v4223 = vunpack.c.h.b16 %v3731
        %v4224 = vunpack.c.l.b16 %v3732
        %v4225 = vunpack.c.h.b16 %v3732
        %v4226 = vunpack.c.l.b16 %v3733
        %v4227 = vunpack.c.h.b16 %v3733
        %v4228 = vunpack.c.l.b16 %v3734
        %v4229 = vunpack.c.h.b16 %v3734
        %v4230 = vunpack.c.l.b16 %v3735
        %v4231 = vunpack.c.h.b16 %v3735
        %v4232 = vunpack.c.l.b16 %v3736
        %v4233 = vunpack.c.h.b16 %v3736
        %v4234 = vunpack.c.l.b16 %v3737
        %v4235 = vunpack.c.h.b16 %v3737
        %v4236 = vunpack.c.l.b16 %v3738
        %v4237 = vunpack.c.h.b16 %v3738
        %v4238 = vunpack.c.l.b16 %v3739
        %v4239 = vunpack.c.h.b16 %v3739
        %v4240 = vunpack.c.l.b16 %v3740
        %v4241 = vunpack.c.h.b16 %v3740
        %v4242 = vunpack.c.l.b16 %v3741
        %v4243 = vunpack.c.h.b16 %v3741
        %v4244 = vunpack.c.l.b16 %v3742
        %v4245 = vunpack.c.h.b16 %v3742
        %v4246 = vunpack.c.l.b16 %v3743
        %v4247 = vunpack.c.h.b16 %v3743
        %v4248 = vunpack.c.l.b16 %v3744
        %v4249 = vunpack.c.h.b16 %v3744
        %v4250 = vunpack.c.l.b16 %v3745
        %v4251 = vunpack.c.h.b16 %v3745
        %v4252 = vunpack.c.l.b16 %v3746
        %v4253 = vunpack.c.h.b16 %v3746
        %v4254 = vunpack.c.l.b16 %v3747
        %v4255 = vunpack.c.h.b16 %v3747
        %v4256 = vunpack.c.l.b16 %v3748
        %v4257 = vunpack.c.h.b16 %v3748
        %v4258 = vunpack.c.l.b16 %v3749
        %v4259 = vunpack.c.h.b16 %v3749
        %v4260 = vunpack.c.l.b16 %v3750
        %v4261 = vunpack.c.h.b16 %v3750
        %v4262 = vunpack.c.l.b16 %v3751
        %v4263 = vunpack.c.h.b16 %v3751
        %v4264 = vunpack.c.l.b16 %v3752
        %v4265 = vunpack.c.h.b16 %v3752
        %v4266 = vunpack.c.l.b16 %v3753
        %v4267 = vunpack.c.h.b16 %v3753
        %v4268 = vunpack.c.l.b16 %v3754
        %v4269 = vunpack.c.h.b16 %v3754
        %v4270 = vunpack.c.l.b16 %v3755
        %v4271 = vunpack.c.h.b16 %v3755
        %v4272 = vunpack.c.l.b16 %v3756
        %v4273 = vunpack.c.h.b16 %v3756
        %v4274 = vunpack.c.l.b16 %v3757
        %v4275 = vunpack.c.h.b16 %v3757
        %v4276 = vunpack.c.l.b16 %v3758
        %v4277 = vunpack.c.h.b16 %v3758
        %v4278 = vunpack.c.l.b16 %v3759
        %v4279 = vunpack.c.h.b16 %v3759
        %v4280 = vunpack.c.l.b16 %v3760
        %v4281 = vunpack.c.h.b16 %v3760
        %v4282 = vunpack.c.l.b16 %v3761
        %v4283 = vunpack.c.h.b16 %v3761
        %v4284 = vunpack.c.l.b16 %v3762
        %v4285 = vunpack.c.h.b16 %v3762
        %v4286 = vunpack.c.l.b16 %v3763
        %v4287 = vunpack.c.h.b16 %v3763
        %v4288 = vunpack.c.l.b16 %v3764
        %v4289 = vunpack.c.h.b16 %v3764
        %v4290 = vunpack.c.l.b16 %v3765
        %v4291 = vunpack.c.h.b16 %v3765
        %v4292 = vunpack.c.l.b16 %v3766
        %v4293 = vunpack.c.h.b16 %v3766
        %v4294 = vunpack.c.l.b16 %v3767
        %v4295 = vunpack.c.h.b16 %v3767
        %v4296 = vunpack.c.l.b16 %v3768
        %v4297 = vunpack.c.h.b16 %v3768
        %v4298 = vunpack.c.l.b16 %v3769
        %v4299 = vunpack.c.h.b16 %v3769
        %v4300 = vunpack.c.l.b16 %v3770
        %v4301 = vunpack.c.h.b16 %v3770
        %v4302 = vunpack.c.l.b16 %v3771
        %v4303 = vunpack.c.h.b16 %v3771
        %v4304 = vunpack.c.l.b16 %v3772
        %v4305 = vunpack.c.h.b16 %v3772
        %v4306 = vunpack.c.l.b16 %v3773
        %v4307 = vunpack.c.h.b16 %v3773
        %v4308 = vunpack.c.l.b16 %v3774
        %v4309 = vunpack.c.h.b16 %v3774
        %v4310 = vunpack.c.l.b16 %v3775
        %v4311 = vunpack.c.h.b16 %v3775
        %v4312 = vunpack.c.l.b16 %v3776
        %v4313 = vunpack.c.h.b16 %v3776
        %v4314 = vunpack.c.l.b16 %v3777
        %v4315 = vunpack.c.h.b16 %v3777
        %v4316 = vunpack.c.l.b16 %v3778
        %v4317 = vunpack.c.h.b16 %v3778
        %v4318 = vunpack.c.l.b16 %v3779
        %v4319 = vunpack.c.h.b16 %v3779
        %v4320 = vunpack.c.l.b16 %v3780
        %v4321 = vunpack.c.h.b16 %v3780
        %v4322 = vunpack.c.l.b16 %v3781
        %v4323 = vunpack.c.h.b16 %v3781
        %v4324 = vunpack.c.l.b16 %v3782
        %v4325 = vunpack.c.h.b16 %v3782
        %v4326 = vunpack.c.l.b16 %v3783
        %v4327 = vunpack.c.h.b16 %v3783
        %v4328 = vunpack.c.l.b16 %v3784
        %v4329 = vunpack.c.h.b16 %v3784
        %v4330 = vunpack.c.l.b16 %v3785
        %v4331 = vunpack.c.h.b16 %v3785
        %v4332 = vunpack.c.l.b16 %v3786
        %v4333 = vunpack.c.h.b16 %v3786
        %v4334 = vunpack.c.l.b16 %v3787
        %v4335 = vunpack.c.h.b16 %v3787
        %v4336 = vunpack.c.l.b16 %v3788
        %v4337 = vunpack.c.h.b16 %v3788
        %v4338 = vunpack.c.l.b16 %v3789
        %v4339 = vunpack.c.h.b16 %v3789
        %v4340 = vunpack.c.l.b16 %v3790
        %v4341 = vunpack.c.h.b16 %v3790
        %v4342 = vunpack.c.l.b16 %v3791
        %v4343 = vunpack.c.h.b16 %v3791
        %v4344 = vunpack.c.l.b16 %v3792
        %v4345 = vunpack.c.h.b16 %v3792
        %v4346 = vunpack.c.l.b16 %v3793
        %v4347 = vunpack.c.h.b16 %v3793
        %v4348 = vunpack.c.l.b16 %v3794
        %v4349 = vunpack.c.h.b16 %v3794
        %v4350 = vunpack.c.l.b16 %v3795
        %v4351 = vunpack.c.h.b16 %v3795
        %v4352 = vunpack.c.l.b16 %v3796
        %v4353 = vunpack.c.h.b16 %v3796
        %v4354 = vunpack.c.l.b16 %v3797
        %v4355 = vunpack.c.h.b16 %v3797
        %v4356 = vunpack.c.l.b16 %v3798
        %v4357 = vunpack.c.h.b16 %v3798
        %v4358 = vunpack.c.l.b16 %v3799
        %v4359 = vunpack.c.h.b16 %v3799
        %v4360 = vunpack.c.l.b16 %v3800
        %v4361 = vunpack.c.h.b16 %v3800
        %v4362 = vunpack.c.l.b16 %v3801
        %v4363 = vunpack.c.h.b16 %v3801
        %v4364 = vunpack.c.l.b16 %v3802
        %v4365 = vunpack.c.h.b16 %v3802
        %v4366 = vunpack.c.l.b16 %v3803
        %v4367 = vunpack.c.h.b16 %v3803
        %v4368 = vunpack.c.l.b16 %v3804
        %v4369 = vunpack.c.h.b16 %v3804
        %v4370 = vunpack.c.l.b16 %v3805
        %v4371 = vunpack.c.h.b16 %v3805
        %v4372 = vunpack.c.l.b16 %v3806
        %v4373 = vunpack.c.h.b16 %v3806
        %v4374 = vunpack.c.l.b16 %v3807
        %v4375 = vunpack.c.h.b16 %v3807
        %v4376 = vunpack.c.l.b16 %v3808
        %v4377 = vunpack.c.h.b16 %v3808
        %v4378 = vunpack.c.l.b16 %v3809
        %v4379 = vunpack.c.h.b16 %v3809
        %v4380 = vunpack.c.l.b16 %v3810
        %v4381 = vunpack.c.h.b16 %v3810
        %v4382 = vunpack.c.l.b16 %v3811
        %v4383 = vunpack.c.h.b16 %v3811
        %v4384 = vunpack.c.l.b16 %v3812
        %v4385 = vunpack.c.h.b16 %v3812
        %v4386 = vunpack.c.l.b16 %v3813
        %v4387 = vunpack.c.h.b16 %v3813
        %v4388 = vunpack.c.l.b16 %v3814
        %v4389 = vunpack.c.h.b16 %v3814
        %v4390 = vunpack.c.l.b16 %v3815
        %v4391 = vunpack.c.h.b16 %v3815
        %v4392 = vunpack.c.l.b16 %v3816
        %v4393 = vunpack.c.h.b16 %v3816
        %v4394 = vunpack.c.l.b16 %v3817
        %v4395 = vunpack.c.h.b16 %v3817
        %v4396 = vunpack.c.l.b16 %v3818
        %v4397 = vunpack.c.h.b16 %v3818
        %v4398 = vunpack.c.l.b16 %v3819
        %v4399 = vunpack.c.h.b16 %v3819
        %v4400 = vunpack.c.l.b16 %v3820
        %v4401 = vunpack.c.h.b16 %v3820
        %v4402 = vunpack.c.l.b16 %v3821
        %v4403 = vunpack.c.h.b16 %v3821
        %v4404 = vunpack.c.l.b16 %v3822
        %v4405 = vunpack.c.h.b16 %v3822
        %v4406 = vunpack.c.l.b16 %v3823
        %v4407 = vunpack.c.h.b16 %v3823
        %v4408 = vunpack.c.l.b16 %v3824
        %v4409 = vunpack.c.h.b16 %v3824
        %v4410 = vunpack.c.l.b16 %v3825
        %v4411 = vunpack.c.h.b16 %v3825
        %v4412 = vunpack.c.l.b16 %v3826
        %v4413 = vunpack.c.h.b16 %v3826
        %v4414 = vunpack.c.l.b16 %v3827
        %v4415 = vunpack.c.h.b16 %v3827
        %v4416 = vunpack.c.l.b16 %v3828
        %v4417 = vunpack.c.h.b16 %v3828
        %v4418 = vunpack.c.l.b16 %v3829
        %v4419 = vunpack.c.h.b16 %v3829
        %v4420 = vunpack.c.l.b16 %v3830
        %v4421 = vunpack.c.h.b16 %v3830
        %v4422 = vunpack.c.l.b16 %v3831
        %v4423 = vunpack.c.h.b16 %v3831
        %v4424 = vunpack.c.l.b16 %v3832
        %v4425 = vunpack.c.h.b16 %v3832
        %v4426 = vunpack.c.l.b16 %v3833
        %v4427 = vunpack.c.h.b16 %v3833
        %v4428 = vunpack.c.l.b16 %v3834
        %v4429 = vunpack.c.h.b16 %v3834
        %v4430 = vunpack.c.l.b16 %v3835
        %v4431 = vunpack.c.h.b16 %v3835
        %v4432 = vunpack.c.l.b16 %v3836
        %v4433 = vunpack.c.h.b16 %v3836
        %v4434 = vunpack.c.l.b16 %v3837
        %v4435 = vunpack.c.h.b16 %v3837
        %v4436 = vunpack.c.l.b16 %v3838
        %v4437 = vunpack.c.h.b16 %v3838
        %v4438 = vunpack.c.l.b16 %v3839
        %v4439 = vunpack.c.h.b16 %v3839
        %v4440 = vunpack.c.l.b16 %v3840
        %v4441 = vunpack.c.h.b16 %v3840
        %v4442 = vunpack.c.l.b16 %v3841
        %v4443 = vunpack.c.h.b16 %v3841
        %v4444 = vunpack.c.l.b16 %v3842
        %v4445 = vunpack.c.h.b16 %v3842
        %v4446 = vunpack.c.l.b16 %v3843
        %v4447 = vunpack.c.h.b16 %v3843
        %v4448 = vunpack.c.l.b16 %v3844
        %v4449 = vunpack.c.h.b16 %v3844
        %v4450 = vunpack.c.l.b16 %v3845
        %v4451 = vunpack.c.h.b16 %v3845
        %v4452 = vunpack.c.l.b16 %v3846
        %v4453 = vunpack.c.h.b16 %v3846
        %v4454 = vunpack.c.l.b16 %v3847
        %v4455 = vunpack.c.h.b16 %v3847
        %v4456 = vpack.c.b16 %v4078, %v4072
        %v4457 = vpack.c.b16 %v4079, %v4073
        %v4458 = vpack.c.b16 %v4080, %v4074
        %v4459 = vpack.c.b16 %v4081, %v4075
        %v4460 = vpack.c.b16 %v4082, %v4076
        %v4461 = vpack.c.b16 %v4083, %v4077
        %v4462 = vpack.c.b16 %v4090, %v4084
        %v4463 = vpack.c.b16 %v4091, %v4085
        %v4464 = vpack.c.b16 %v4092, %v4086
        %v4465 = vpack.c.b16 %v4093, %v4087
        %v4466 = vpack.c.b16 %v4094, %v4088
        %v4467 = vpack.c.b16 %v4095, %v4089
        %v4468 = vpack.c.b16 %v4102, %v4096
        %v4469 = vpack.c.b16 %v4103, %v4097
        %v4470 = vpack.c.b16 %v4104, %v4098
        %v4471 = vpack.c.b16 %v4105, %v4099
        %v4472 = vpack.c.b16 %v4106, %v4100
        %v4473 = vpack.c.b16 %v4107, %v4101
        %v4474 = vpack.c.b16 %v4114, %v4108
        %v4475 = vpack.c.b16 %v4115, %v4109
        %v4476 = vpack.c.b16 %v4116, %v4110
        %v4477 = vpack.c.b16 %v4117, %v4111
        %v4478 = vpack.c.b16 %v4118, %v4112
        %v4479 = vpack.c.b16 %v4119, %v4113
        %v4480 = vpack.c.b16 %v4126, %v4120
        %v4481 = vpack.c.b16 %v4127, %v4121
        %v4482 = vpack.c.b16 %v4128, %v4122
        %v4483 = vpack.c.b16 %v4129, %v4123
        %v4484 = vpack.c.b16 %v4130, %v4124
        %v4485 = vpack.c.b16 %v4131, %v4125
        %v4486 = vpack.c.b16 %v4138, %v4132
        %v4487 = vpack.c.b16 %v4139, %v4133
        %v4488 = vpack.c.b16 %v4140, %v4134
        %v4489 = vpack.c.b16 %v4141, %v4135
        %v4490 = vpack.c.b16 %v4142, %v4136
        %v4491 = vpack.c.b16 %v4143, %v4137
        %v4492 = vpack.c.b16 %v4150, %v4144
        %v4493 = vpack.c.b16 %v4151, %v4145
        %v4494 = vpack.c.b16 %v4152, %v4146
        %v4495 = vpack.c.b16 %v4153, %v4147
        %v4496 = vpack.c.b16 %v4154, %v4148
        %v4497 = vpack.c.b16 %v4155, %v4149
        %v4498 = vpack.c.b16 %v4162, %v4156
        %v4499 = vpack.c.b16 %v4163, %v4157
        %v4500 = vpack.c.b16 %v4164, %v4158
        %v4501 = vpack.c.b16 %v4165, %v4159
        %v4502 = vpack.c.b16 %v4166, %v4160
        %v4503 = vpack.c.b16 %v4167, %v4161
        %v4504 = vpack.c.b16 %v4174, %v4168
        %v4505 = vpack.c.b16 %v4175, %v4169
        %v4506 = vpack.c.b16 %v4176, %v4170
        %v4507 = vpack.c.b16 %v4177, %v4171
        %v4508 = vpack.c.b16 %v4178, %v4172
        %v4509 = vpack.c.b16 %v4179, %v4173
        %v4510 = vpack.c.b16 %v4186, %v4180
        %v4511 = vpack.c.b16 %v4187, %v4181
        %v4512 = vpack.c.b16 %v4188, %v4182
        %v4513 = vpack.c.b16 %v4189, %v4183
        %v4514 = vpack.c.b16 %v4190, %v4184
        %v4515 = vpack.c.b16 %v4191, %v4185
        %v4516 = vpack.c.b16 %v4198, %v4192
        %v4517 = vpack.c.b16 %v4199, %v4193
        %v4518 = vpack.c.b16 %v4200, %v4194
        %v4519 = vpack.c.b16 %v4201, %v4195
        %v4520 = vpack.c.b16 %v4202, %v4196
        %v4521 = vpack.c.b16 %v4203, %v4197
        %v4522 = vpack.c.b16 %v4210, %v4204
        %v4523 = vpack.c.b16 %v4211, %v4205
        %v4524 = vpack.c.b16 %v4212, %v4206
        %v4525 = vpack.c.b16 %v4213, %v4207
        %v4526 = vpack.c.b16 %v4214, %v4208
        %v4527 = vpack.c.b16 %v4215, %v4209
        %v4528 = vpack.c.b16 %v4222, %v4216
        %v4529 = vpack.c.b16 %v4223, %v4217
        %v4530 = vpack.c.b16 %v4224, %v4218
        %v4531 = vpack.c.b16 %v4225, %v4219
        %v4532 = vpack.c.b16 %v4226, %v4220
        %v4533 = vpack.c.b16 %v4227, %v4221
        %v4534 = vpack.c.b16 %v4234, %v4228
        %v4535 = vpack.c.b16 %v4235, %v4229
        %v4536 = vpack.c.b16 %v4236, %v4230
        %v4537 = vpack.c.b16 %v4237, %v4231
        %v4538 = vpack.c.b16 %v4238, %v4232
        %v4539 = vpack.c.b16 %v4239, %v4233
        %v4540 = vpack.c.b16 %v4246, %v4240
        %v4541 = vpack.c.b16 %v4247, %v4241
        %v4542 = vpack.c.b16 %v4248, %v4242
        %v4543 = vpack.c.b16 %v4249, %v4243
        %v4544 = vpack.c.b16 %v4250, %v4244
        %v4545 = vpack.c.b16 %v4251, %v4245
        %v4546 = vpack.c.b16 %v4258, %v4252
        %v4547 = vpack.c.b16 %v4259, %v4253
        %v4548 = vpack.c.b16 %v4260, %v4254
        %v4549 = vpack.c.b16 %v4261, %v4255
        %v4550 = vpack.c.b16 %v4262, %v4256
        %v4551 = vpack.c.b16 %v4263, %v4257
        %v4552 = vpack.c.b16 %v4270, %v4264
        %v4553 = vpack.c.b16 %v4271, %v4265
        %v4554 = vpack.c.b16 %v4272, %v4266
        %v4555 = vpack.c.b16 %v4273, %v4267
        %v4556 = vpack.c.b16 %v4274, %v4268
        %v4557 = vpack.c.b16 %v4275, %v4269
        %v4558 = vpack.c.b16 %v4282, %v4276
        %v4559 = vpack.c.b16 %v4283, %v4277
        %v4560 = vpack.c.b16 %v4284, %v4278
        %v4561 = vpack.c.b16 %v4285, %v4279
        %v4562 = vpack.c.b16 %v4286, %v4280
        %v4563 = vpack.c.b16 %v4287, %v4281
        %v4564 = vpack.c.b16 %v4294, %v4288
        %v4565 = vpack.c.b16 %v4295, %v4289
        %v4566 = vpack.c.b16 %v4296, %v4290
        %v4567 = vpack.c.b16 %v4297, %v4291
        %v4568 = vpack.c.b16 %v4298, %v4292
        %v4569 = vpack.c.b16 %v4299, %v4293
        %v4570 = vpack.c.b16 %v4306, %v4300
        %v4571 = vpack.c.b16 %v4307, %v4301
        %v4572 = vpack.c.b16 %v4308, %v4302
        %v4573 = vpack.c.b16 %v4309, %v4303
        %v4574 = vpack.c.b16 %v4310, %v4304
        %v4575 = vpack.c.b16 %v4311, %v4305
        %v4576 = vpack.c.b16 %v4318, %v4312
        %v4577 = vpack.c.b16 %v4319, %v4313
        %v4578 = vpack.c.b16 %v4320, %v4314
        %v4579 = vpack.c.b16 %v4321, %v4315
        %v4580 = vpack.c.b16 %v4322, %v4316
        %v4581 = vpack.c.b16 %v4323, %v4317
        %v4582 = vpack.c.b16 %v4330, %v4324
        %v4583 = vpack.c.b16 %v4331, %v4325
        %v4584 = vpack.c.b16 %v4332, %v4326
        %v4585 = vpack.c.b16 %v4333, %v4327
        %v4586 = vpack.c.b16 %v4334, %v4328
        %v4587 = vpack.c.b16 %v4335, %v4329
        %v4588 = vpack.c.b16 %v4342, %v4336
        %v4589 = vpack.c.b16 %v4343, %v4337
        %v4590 = vpack.c.b16 %v4344, %v4338
        %v4591 = vpack.c.b16 %v4345, %v4339
        %v4592 = vpack.c.b16 %v4346, %v4340
        %v4593 = vpack.c.b16 %v4347, %v4341
        %v4594 = vpack.c.b16 %v4354, %v4348
        %v4595 = vpack.c.b16 %v4355, %v4349
        %v4596 = vpack.c.b16 %v4356, %v4350
        %v4597 = vpack.c.b16 %v4357, %v4351
        %v4598 = vpack.c.b16 %v4358, %v4352
        %v4599 = vpack.c.b16 %v4359, %v4353
        %v4600 = vpack.c.b16 %v4366, %v4360
        %v4601 = vpack.c.b16 %v4367, %v4361
        %v4602 = vpack.c.b16 %v4368, %v4362
        %v4603 = vpack.c.b16 %v4369, %v4363
        %v4604 = vpack.c.b16 %v4370, %v4364
        %v4605 = vpack.c.b16 %v4371, %v4365
        %v4606 = vpack.c.b16 %v4378, %v4372
        %v4607 = vpack.c.b16 %v4379, %v4373
        %v4608 = vpack.c.b16 %v4380, %v4374
        %v4609 = vpack.c.b16 %v4381, %v4375
        %v4610 = vpack.c.b16 %v4382, %v4376
        %v4611 = vpack.c.b16 %v4383, %v4377
        %v4612 = vpack.c.b16 %v4390, %v4384
        %v4613 = vpack.c.b16 %v4391, %v4385
        %v4614 = vpack.c.b16 %v4392, %v4386
        %v4615 = vpack.c.b16 %v4393, %v4387
        %v4616 = vpack.c.b16 %v4394, %v4388
        %v4617 = vpack.c.b16 %v4395, %v4389
        %v4618 = vpack.c.b16 %v4402, %v4396
        %v4619 = vpack.c.b16 %v4403, %v4397
        %v4620 = vpack.c.b16 %v4404, %v4398
        %v4621 = vpack.c.b16 %v4405, %v4399
        %v4622 = vpack.c.b16 %v4406, %v4400
        %v4623 = vpack.c.b16 %v4407, %v4401
        %v4624 = vpack.c.b16 %v4414, %v4408
        %v4625 = vpack.c.b16 %v4415, %v4409
        %v4626 = vpack.c.b16 %v4416, %v4410
        %v4627 = vpack.c.b16 %v4417, %v4411
        %v4628 = vpack.c.b16 %v4418, %v4412
        %v4629 = vpack.c.b16 %v4419, %v4413
        %v4630 = vpack.c.b16 %v4426, %v4420
        %v4631 = vpack.c.b16 %v4427, %v4421
        %v4632 = vpack.c.b16 %v4428, %v4422
        %v4633 = vpack.c.b16 %v4429, %v4423
        %v4634 = vpack.c.b16 %v4430, %v4424
        %v4635 = vpack.c.b16 %v4431, %v4425
        %v4636 = vpack.c.b16 %v4438, %v4432
        %v4637 = vpack.c.b16 %v4439, %v4433
        %v4638 = vpack.c.b16 %v4440, %v4434
        %v4639 = vpack.c.b16 %v4441, %v4435
        %v4640 = vpack.c.b16 %v4442, %v4436
        %v4641 = vpack.c.b16 %v4443, %v4437
        %v4642 = vpack.c.b16 %v4450, %v4444
        %v4643 = vpack.c.b16 %v4451, %v4445
        %v4644 = vpack.c.b16 %v4452, %v4446
        %v4645 = vpack.c.b16 %v4453, %v4447
        %v4646 = vpack.c.b16 %v4454, %v4448
        %v4647 = vpack.c.b16 %v4455, %v4449
        %4840 = vmatprep.subr.bf16.mxu0 %v4499
        %4841 = vmatpush1.bf16.msra.mxu0 %v4498
        %4842 = vmatprep.subr.bf16.mxu0 %v4493
        %4843 = vmatpush1.bf16.msra.mxu0 %v4492
        %4844 = vmatprep.subr.bf16.mxu0 %v4487
        %4845 = vmatpush1.bf16.msra.mxu0 %v4486
        %4846 = vmatprep.subr.bf16.mxu0 %v4481
        %4847 = vmatpush1.bf16.msra.mxu0 %v4480
        %4848 = vmatprep.subr.bf16.mxu0 %v4475
        %4849 = vmatpush1.bf16.msra.mxu0 %v4474
        %4850 = vmatprep.subr.bf16.mxu0 %v4469
        %4851 = vmatpush1.bf16.msra.mxu0 %v4468
        %4852 = vmatprep.subr.bf16.mxu0 %v4463
        %4853 = vmatpush1.bf16.msra.mxu0 %v4462
        %4854 = vmatprep.subr.bf16.mxu0 %v4457
        %4855 = vmatpush1.bf16.msra.mxu0 %v4456
        %4856 = vmatprep.subr.bf16.mxu0 %v4547
        %4857 = vmatpush2.bf16.msra.mxu0 %v4546
        %4858 = vmatprep.subr.bf16.mxu0 %v4541
        %4859 = vmatpush2.bf16.msra.mxu0 %v4540
        %4860 = vmatprep.subr.bf16.mxu0 %v4535
        %4861 = vmatpush2.bf16.msra.mxu0 %v4534
        %4862 = vmatprep.subr.bf16.mxu0 %v4529
        %4863 = vmatpush2.bf16.msra.mxu0 %v4528
        %4864 = vmatprep.subr.bf16.mxu0 %v4523
        %4865 = vmatpush2.bf16.msra.mxu0 %v4522
        %4866 = vmatprep.subr.bf16.mxu0 %v4517
        %4867 = vmatpush2.bf16.msra.mxu0 %v4516
        %4868 = vmatprep.subr.bf16.mxu0 %v4511
        %4869 = vmatpush2.bf16.msra.mxu0 %v4510
        %4870 = vmatprep.subr.bf16.mxu0 %v4505
        %4871 = vmatpush2.bf16.msra.mxu0 %v4504
        %4872 = vmatprep.mubr.bf16.mxu0 %v3653
        %4873 = vmatmul.mubr.bf16.gmra.mxu0 %v3652
        %v4874 = vpop.f32.mrf.mxu0
        %v4875 = vadd.f32 %v3853, %v4874
        %v4876 = vpop.f32.mrf.mxu0
        %v4877 = vadd.f32 %v3857, %v4876
        %v4878 = vpop.f32.mrf.mxu0
        %v4879 = vadd.f32 %v3853, %v4878
        %v4880 = vpop.f32.mrf.mxu0
        %v4881 = vadd.f32 %v3857, %v4880
        %4882 = vdwg.mxu0
        %4883 = vmatprep.subr.bf16.mxu0 %v4595
        %4884 = vmatpush1.bf16.msra.mxu0 %v4594
        %4885 = vmatprep.subr.bf16.mxu0 %v4589
        %4886 = vmatpush1.bf16.msra.mxu0 %v4588
        %4887 = vmatprep.subr.bf16.mxu0 %v4583
        %4888 = vmatpush1.bf16.msra.mxu0 %v4582
        %4889 = vmatprep.subr.bf16.mxu0 %v4577
        %4890 = vmatpush1.bf16.msra.mxu0 %v4576
        %4891 = vmatprep.subr.bf16.mxu0 %v4571
        %4892 = vmatpush1.bf16.msra.mxu0 %v4570
        %4893 = vmatprep.subr.bf16.mxu0 %v4565
        %4894 = vmatpush1.bf16.msra.mxu0 %v4564
        %4895 = vmatprep.subr.bf16.mxu0 %v4559
        %4896 = vmatpush1.bf16.msra.mxu0 %v4558
        %4897 = vmatprep.subr.bf16.mxu0 %v4553
        %4898 = vmatpush1.bf16.msra.mxu0 %v4552
        %4899 = vmatprep.subr.bf16.mxu0 %v4643
        %4900 = vmatpush2.bf16.msra.mxu0 %v4642
        %4901 = vmatprep.subr.bf16.mxu0 %v4637
        %4902 = vmatpush2.bf16.msra.mxu0 %v4636
        %4903 = vmatprep.subr.bf16.mxu0 %v4631
        %4904 = vmatpush2.bf16.msra.mxu0 %v4630
        %4905 = vmatprep.subr.bf16.mxu0 %v4625
        %4906 = vmatpush2.bf16.msra.mxu0 %v4624
        %4907 = vmatprep.subr.bf16.mxu0 %v4619
        %4908 = vmatpush2.bf16.msra.mxu0 %v4618
        %4909 = vmatprep.subr.bf16.mxu0 %v4613
        %4910 = vmatpush2.bf16.msra.mxu0 %v4612
        %4911 = vmatprep.subr.bf16.mxu0 %v4607
        %4912 = vmatpush2.bf16.msra.mxu0 %v4606
        %4913 = vmatprep.subr.bf16.mxu0 %v4601
        %4914 = vmatpush2.bf16.msra.mxu0 %v4600
        %4915 = vmatprep.mubr.bf16.mxu0 %v3655
        %4916 = vmatmul.mubr.bf16.gmra.mxu0 %v3654
        %v4917 = vpop.f32.mrf.mxu0
        %v4918 = vadd.f32 %v4875, %v4917
        %v4919 = vpop.f32.mrf.mxu0
        %v4920 = vadd.f32 %v4877, %v4919
        %v4921 = vpop.f32.mrf.mxu0
        %v4922 = vadd.f32 %v4879, %v4921
        %v4923 = vpop.f32.mrf.mxu0
        %v4924 = vadd.f32 %v4881, %v4923
        %4925 = vdwg.mxu0
        %4926 = vmatprep.subr.bf16.mxu0 %v4501
        %4927 = vmatpush1.bf16.msra.mxu0 %v4500
        %4928 = vmatprep.subr.bf16.mxu0 %v4495
        %4929 = vmatpush1.bf16.msra.mxu0 %v4494
        %4930 = vmatprep.subr.bf16.mxu0 %v4489
        %4931 = vmatpush1.bf16.msra.mxu0 %v4488
        %4932 = vmatprep.subr.bf16.mxu0 %v4483
        %4933 = vmatpush1.bf16.msra.mxu0 %v4482
        %4934 = vmatprep.subr.bf16.mxu0 %v4477
        %4935 = vmatpush1.bf16.msra.mxu0 %v4476
        %4936 = vmatprep.subr.bf16.mxu0 %v4471
        %4937 = vmatpush1.bf16.msra.mxu0 %v4470
        %4938 = vmatprep.subr.bf16.mxu0 %v4465
        %4939 = vmatpush1.bf16.msra.mxu0 %v4464
        %4940 = vmatprep.subr.bf16.mxu0 %v4459
        %4941 = vmatpush1.bf16.msra.mxu0 %v4458
        %4942 = vmatprep.subr.bf16.mxu0 %v4549
        %4943 = vmatpush2.bf16.msra.mxu0 %v4548
        %4944 = vmatprep.subr.bf16.mxu0 %v4543
        %4945 = vmatpush2.bf16.msra.mxu0 %v4542
        %4946 = vmatprep.subr.bf16.mxu0 %v4537
        %4947 = vmatpush2.bf16.msra.mxu0 %v4536
        %4948 = vmatprep.subr.bf16.mxu0 %v4531
        %4949 = vmatpush2.bf16.msra.mxu0 %v4530
        %4950 = vmatprep.subr.bf16.mxu0 %v4525
        %4951 = vmatpush2.bf16.msra.mxu0 %v4524
        %4952 = vmatprep.subr.bf16.mxu0 %v4519
        %4953 = vmatpush2.bf16.msra.mxu0 %v4518
        %4954 = vmatprep.subr.bf16.mxu0 %v4513
        %4955 = vmatpush2.bf16.msra.mxu0 %v4512
        %4956 = vmatprep.subr.bf16.mxu0 %v4507
        %4957 = vmatpush2.bf16.msra.mxu0 %v4506
        %4958 = vmatprep.mubr.bf16.mxu0 %v3653
        %4959 = vmatmul.mubr.bf16.gmra.mxu0 %v3652
        %v4960 = vpop.f32.mrf.mxu0
        %v4961 = vadd.f32 %v3861, %v4960
        %v4962 = vpop.f32.mrf.mxu0
        %v4963 = vadd.f32 %v3865, %v4962
        %v4964 = vpop.f32.mrf.mxu0
        %v4965 = vadd.f32 %v3861, %v4964
        %v4966 = vpop.f32.mrf.mxu0
        %v4967 = vadd.f32 %v3865, %v4966
        %4968 = vdwg.mxu0
        %4969 = vmatprep.subr.bf16.mxu0 %v4597
        %4970 = vmatpush1.bf16.msra.mxu0 %v4596
        %4971 = vmatprep.subr.bf16.mxu0 %v4591
        %4972 = vmatpush1.bf16.msra.mxu0 %v4590
        %4973 = vmatprep.subr.bf16.mxu0 %v4585
        %4974 = vmatpush1.bf16.msra.mxu0 %v4584
        %4975 = vmatprep.subr.bf16.mxu0 %v4579
        %4976 = vmatpush1.bf16.msra.mxu0 %v4578
        %4977 = vmatprep.subr.bf16.mxu0 %v4573
        %4978 = vmatpush1.bf16.msra.mxu0 %v4572
        %4979 = vmatprep.subr.bf16.mxu0 %v4567
        %4980 = vmatpush1.bf16.msra.mxu0 %v4566
        %4981 = vmatprep.subr.bf16.mxu0 %v4561
        %4982 = vmatpush1.bf16.msra.mxu0 %v4560
        %4983 = vmatprep.subr.bf16.mxu0 %v4555
        %4984 = vmatpush1.bf16.msra.mxu0 %v4554
        %4985 = vmatprep.subr.bf16.mxu0 %v4645
        %4986 = vmatpush2.bf16.msra.mxu0 %v4644
        %4987 = vmatprep.subr.bf16.mxu0 %v4639
        %4988 = vmatpush2.bf16.msra.mxu0 %v4638
        %4989 = vmatprep.subr.bf16.mxu0 %v4633
        %4990 = vmatpush2.bf16.msra.mxu0 %v4632
        %4991 = vmatprep.subr.bf16.mxu0 %v4627
        %4992 = vmatpush2.bf16.msra.mxu0 %v4626
        %4993 = vmatprep.subr.bf16.mxu0 %v4621
        %4994 = vmatpush2.bf16.msra.mxu0 %v4620
        %4995 = vmatprep.subr.bf16.mxu0 %v4615
        %4996 = vmatpush2.bf16.msra.mxu0 %v4614
        %4997 = vmatprep.subr.bf16.mxu0 %v4609
        %4998 = vmatpush2.bf16.msra.mxu0 %v4608
        %4999 = vmatprep.subr.bf16.mxu0 %v4603
        %5000 = vmatpush2.bf16.msra.mxu0 %v4602
        %5001 = vmatprep.mubr.bf16.mxu0 %v3655
        %5002 = vmatmul.mubr.bf16.gmra.mxu0 %v3654
        %v5003 = vpop.f32.mrf.mxu0
        %v5004 = vadd.f32 %v4961, %v5003
        %v5005 = vpop.f32.mrf.mxu0
        %v5006 = vadd.f32 %v4963, %v5005
        %v5007 = vpop.f32.mrf.mxu0
        %v5008 = vadd.f32 %v4965, %v5007
        %v5009 = vpop.f32.mrf.mxu0
        %v5010 = vadd.f32 %v4967, %v5009
        %5011 = vdwg.mxu0
        %5012 = vmatprep.subr.bf16.mxu0 %v4503
        %5013 = vmatpush1.bf16.msra.mxu0 %v4502
        %5014 = vmatprep.subr.bf16.mxu0 %v4497
        %5015 = vmatpush1.bf16.msra.mxu0 %v4496
        %5016 = vmatprep.subr.bf16.mxu0 %v4491
        %5017 = vmatpush1.bf16.msra.mxu0 %v4490
        %5018 = vmatprep.subr.bf16.mxu0 %v4485
        %5019 = vmatpush1.bf16.msra.mxu0 %v4484
        %5020 = vmatprep.subr.bf16.mxu0 %v4479
        %5021 = vmatpush1.bf16.msra.mxu0 %v4478
        %5022 = vmatprep.subr.bf16.mxu0 %v4473
        %5023 = vmatpush1.bf16.msra.mxu0 %v4472
        %5024 = vmatprep.subr.bf16.mxu0 %v4467
        %5025 = vmatpush1.bf16.msra.mxu0 %v4466
        %5026 = vmatprep.subr.bf16.mxu0 %v4461
        %5027 = vmatpush1.bf16.msra.mxu0 %v4460
        %5028 = vmatprep.subr.bf16.mxu0 %v4551
        %5029 = vmatpush2.bf16.msra.mxu0 %v4550
        %5030 = vmatprep.subr.bf16.mxu0 %v4545
        %5031 = vmatpush2.bf16.msra.mxu0 %v4544
        %5032 = vmatprep.subr.bf16.mxu0 %v4539
        %5033 = vmatpush2.bf16.msra.mxu0 %v4538
        %5034 = vmatprep.subr.bf16.mxu0 %v4533
        %5035 = vmatpush2.bf16.msra.mxu0 %v4532
        %5036 = vmatprep.subr.bf16.mxu0 %v4527
        %5037 = vmatpush2.bf16.msra.mxu0 %v4526
        %5038 = vmatprep.subr.bf16.mxu0 %v4521
        %5039 = vmatpush2.bf16.msra.mxu0 %v4520
        %5040 = vmatprep.subr.bf16.mxu0 %v4515
        %5041 = vmatpush2.bf16.msra.mxu0 %v4514
        %5042 = vmatprep.subr.bf16.mxu0 %v4509
        %5043 = vmatpush2.bf16.msra.mxu0 %v4508
        %5044 = vmatprep.mubr.bf16.mxu0 %v3653
        %5045 = vmatmul.mubr.bf16.gmra.mxu0 %v3652
        %v5046 = vpop.f32.mrf.mxu0
        %v5047 = vadd.f32 %v3869, %v5046
        %v5048 = vpop.f32.mrf.mxu0
        %v5049 = vadd.f32 %v3873, %v5048
        %v5050 = vpop.f32.mrf.mxu0
        %v5051 = vadd.f32 %v3869, %v5050
        %v5052 = vpop.f32.mrf.mxu0
        %v5053 = vadd.f32 %v3873, %v5052
        %5054 = vdwg.mxu0
        %5055 = vmatprep.subr.bf16.mxu0 %v4599
        %5056 = vmatpush1.bf16.msra.mxu0 %v4598
        %5057 = vmatprep.subr.bf16.mxu0 %v4593
        %5058 = vmatpush1.bf16.msra.mxu0 %v4592
        %5059 = vmatprep.subr.bf16.mxu0 %v4587
        %5060 = vmatpush1.bf16.msra.mxu0 %v4586
        %5061 = vmatprep.subr.bf16.mxu0 %v4581
        %5062 = vmatpush1.bf16.msra.mxu0 %v4580
        %5063 = vmatprep.subr.bf16.mxu0 %v4575
        %5064 = vmatpush1.bf16.msra.mxu0 %v4574
        %5065 = vmatprep.subr.bf16.mxu0 %v4569
        %5066 = vmatpush1.bf16.msra.mxu0 %v4568
        %5067 = vmatprep.subr.bf16.mxu0 %v4563
        %5068 = vmatpush1.bf16.msra.mxu0 %v4562
        %5069 = vmatprep.subr.bf16.mxu0 %v4557
        %5070 = vmatpush1.bf16.msra.mxu0 %v4556
        %5071 = vmatprep.subr.bf16.mxu0 %v4647
        %5072 = vmatpush2.bf16.msra.mxu0 %v4646
        %5073 = vmatprep.subr.bf16.mxu0 %v4641
        %5074 = vmatpush2.bf16.msra.mxu0 %v4640
        %5075 = vmatprep.subr.bf16.mxu0 %v4635
        %5076 = vmatpush2.bf16.msra.mxu0 %v4634
        %5077 = vmatprep.subr.bf16.mxu0 %v4629
        %5078 = vmatpush2.bf16.msra.mxu0 %v4628
        %5079 = vmatprep.subr.bf16.mxu0 %v4623
        %5080 = vmatpush2.bf16.msra.mxu0 %v4622
        %5081 = vmatprep.subr.bf16.mxu0 %v4617
        %5082 = vmatpush2.bf16.msra.mxu0 %v4616
        %5083 = vmatprep.subr.bf16.mxu0 %v4611
        %5084 = vmatpush2.bf16.msra.mxu0 %v4610
        %5085 = vmatprep.subr.bf16.mxu0 %v4605
        %5086 = vmatpush2.bf16.msra.mxu0 %v4604
        %5087 = vmatprep.mubr.bf16.mxu0 %v3655
        %5088 = vmatmul.mubr.bf16.gmra.mxu0 %v3654
        %v5089 = vpop.f32.mrf.mxu0
        %v5090 = vadd.f32 %v5047, %v5089
        %v5091 = vpop.f32.mrf.mxu0
        %v5092 = vadd.f32 %v5049, %v5091
        %v5093 = vpop.f32.mrf.mxu0
        %v5094 = vadd.f32 %v5051, %v5093
        %v5095 = vpop.f32.mrf.mxu0
        %v5096 = vadd.f32 %v5053, %v5095
        %5097 = vdwg.mxu0
        %v5098 = vld [vmem:[#allocation17] sm:$0xf]
        %v5099 = vld [vmem:[#allocation17 + $0x4] sm:$0xf]
        %v5100 = vld [vmem:[#allocation17 + $0x8] sm:$0xf]
        %v5101 = vld [vmem:[#allocation17 + $0xc] sm:$0xf]
        %v5102 = vld [vmem:[#allocation17 + $0x10] sm:$0xf]
        %v5103 = vld [vmem:[#allocation17 + $0x14] sm:$0xf]
        %v5104 = vld [vmem:[#allocation17 + $0x18] sm:$0xf]
        %v5105 = vld [vmem:[#allocation17 + $0x1c] sm:$0xf]
        %v5106 = vld [vmem:[#allocation17 + $0x20] sm:$0xf]
        %v5107 = vld [vmem:[#allocation17 + $0x24] sm:$0xf]
        %v5108 = vld [vmem:[#allocation17 + $0x28] sm:$0xf]
        %v5109 = vld [vmem:[#allocation17 + $0x2c] sm:$0xf]
        %v5110 = vld [vmem:[#allocation17 + $0x30] sm:$0xf]
        %v5111 = vld [vmem:[#allocation17 + $0x34] sm:$0xf]
        %v5112 = vld [vmem:[#allocation17 + $0x38] sm:$0xf]
        %v5113 = vld [vmem:[#allocation17 + $0x3c] sm:$0xf]
        %v5130 = vunpack.c.l.b16 %v5098
        %v5131 = vunpack.c.l.b16 %v5099
        %v5132 = vunpack.c.l.b16 %v5100
        %v5133 = vunpack.c.l.b16 %v5101
        %v5134 = vunpack.c.l.b16 %v5102
        %v5135 = vunpack.c.l.b16 %v5103
        %v5136 = vunpack.c.l.b16 %v5104
        %v5137 = vunpack.c.l.b16 %v5105
        %v5138 = vunpack.c.l.b16 %v5106
        %v5139 = vunpack.c.l.b16 %v5107
        %v5140 = vunpack.c.l.b16 %v5108
        %v5141 = vunpack.c.l.b16 %v5109
        %v5142 = vunpack.c.l.b16 %v5110
        %v5143 = vunpack.c.l.b16 %v5111
        %v5144 = vunpack.c.l.b16 %v5112
        %v5145 = vunpack.c.l.b16 %v5113
        %v5146 = vpack.c.b16 %v5131, %v5130
        %v5147 = vpack.c.b16 %v5133, %v5132
        %v5148 = vpack.c.b16 %v5135, %v5134
        %v5149 = vpack.c.b16 %v5137, %v5136
        %v5150 = vpack.c.b16 %v5139, %v5138
        %v5151 = vpack.c.b16 %v5141, %v5140
        %v5152 = vpack.c.b16 %v5143, %v5142
        %v5153 = vpack.c.b16 %v5145, %v5144
        %5162 = vmatprep.subr.bf16.mxu0 0
        %5163 = vmatpush1.bf16.msra.mxu0 %v5153
        %5164 = vmatprep.subr.bf16.mxu0 0
        %5165 = vmatpush1.bf16.msra.mxu0 %v5152
        %5166 = vmatprep.subr.bf16.mxu0 0
        %5167 = vmatpush1.bf16.msra.mxu0 %v5151
        %5168 = vmatprep.subr.bf16.mxu0 0
        %5169 = vmatpush1.bf16.msra.mxu0 %v5150
        %5170 = vmatprep.subr.bf16.mxu0 0
        %5171 = vmatpush1.bf16.msra.mxu0 %v5149
        %5172 = vmatprep.subr.bf16.mxu0 0
        %5173 = vmatpush1.bf16.msra.mxu0 %v5148
        %5174 = vmatprep.subr.bf16.mxu0 0
        %5175 = vmatpush1.bf16.msra.mxu0 %v5147
        %5176 = vmatprep.subr.bf16.mxu0 0
        %5177 = vmatpush1.bf16.msra.mxu0 %v5146
        %5178 = vmatprep.subr.bf16.mxu0 0
        %5179 = vmatpush2.bf16.msra.mxu0 0
        %5180 = vmatprep.subr.bf16.mxu0 0
        %5181 = vmatpush2.bf16.msra.mxu0 0
        %5182 = vmatprep.subr.bf16.mxu0 0
        %5183 = vmatpush2.bf16.msra.mxu0 0
        %5184 = vmatprep.subr.bf16.mxu0 0
        %5185 = vmatpush2.bf16.msra.mxu0 0
        %5186 = vmatprep.subr.bf16.mxu0 0
        %5187 = vmatpush2.bf16.msra.mxu0 0
        %5188 = vmatprep.subr.bf16.mxu0 0
        %5189 = vmatpush2.bf16.msra.mxu0 0
        %5190 = vmatprep.subr.bf16.mxu0 0
        %5191 = vmatpush2.bf16.msra.mxu0 0
        %5192 = vmatprep.subr.bf16.mxu0 0
        %5193 = vmatpush2.bf16.msra.mxu0 0
        %5194 = vmatprep.mubr.bf16.mxu0 0
        %5195 = vmatmul.mubr.bf16.gmra.mxu0 %v2946
        %v5196 = vpop.f32.mrf.mxu0
        %v5197 = vadd.f32 0.0, %v5196
        %v5198 = vpop.f32.mrf.mxu0
        %v5199 = vpop.f32.mrf.mxu0
        %v5200 = vadd.f32 0.0, %v5199
        %v5201 = vpop.f32.mrf.mxu0
        %5202 = vdwg.mxu0
        %v5203 = vpack.c.bf16 %v5200, %v5197
        %v5204 = vld [vmem:[%s14] sm:$0x1]
        %v5205 = vpack.c.bf16 %v5204, %v5204
        %v5207 = vpack.i.b16 %v5205, %v5205
        %v5209 = vlaneseq
        %v5210 = vshrl.u32 %v5209, 7
        %v5211 = vsub.s32 0, %v5210
        %v5212 = vrot.slane %v5207, %v5211
        %v5213 = vadd.bf16 %v5203, %v5212
        %v5214 = vmax.bf16 %v5213, 0
        %v5215 = vld [vmem:[#allocation19] sm:$0xf]
        %v5216 = vld [vmem:[#allocation19 + $0x4] sm:$0xf]
        %v5217 = vld [vmem:[#allocation19 + $0x8] sm:$0xf]
        %v5218 = vld [vmem:[#allocation19 + $0xc] sm:$0xf]
        %v5219 = vld [vmem:[#allocation19 + $0x10] sm:$0xf]
        %v5220 = vld [vmem:[#allocation19 + $0x14] sm:$0xf]
        %v5221 = vld [vmem:[#allocation19 + $0x18] sm:$0xf]
        %v5222 = vld [vmem:[#allocation19 + $0x1c] sm:$0xf]
        %v5223 = vld [vmem:[#allocation19 + $0x20] sm:$0xf]
        %v5224 = vld [vmem:[#allocation19 + $0x24] sm:$0xf]
        %v5225 = vld [vmem:[#allocation19 + $0x28] sm:$0xf]
        %v5226 = vld [vmem:[#allocation19 + $0x2c] sm:$0xf]
        %v5227 = vld [vmem:[#allocation19 + $0x30] sm:$0xf]
        %v5228 = vld [vmem:[#allocation19 + $0x34] sm:$0xf]
        %v5229 = vld [vmem:[#allocation19 + $0x38] sm:$0xf]
        %v5230 = vld [vmem:[#allocation19 + $0x3c] sm:$0xf]
        %v5231 = vld [vmem:[%s16] sm:$0x1]
        %v5233 = vlaneseq
        %v5234 = vshrl.u32 %v5233, 7
        %v5235 = vsub.s32 0, %v5234
        %v5236 = vrot.slane %v5231, %v5235
        %v5254 = vunpack.c.l.b16 %v5215
        %v5255 = vunpack.c.l.b16 %v5216
        %v5256 = vunpack.c.l.b16 %v5217
        %v5257 = vunpack.c.l.b16 %v5218
        %v5258 = vunpack.c.l.b16 %v5219
        %v5259 = vunpack.c.l.b16 %v5220
        %v5260 = vunpack.c.l.b16 %v5221
        %v5261 = vunpack.c.l.b16 %v5222
        %v5262 = vunpack.c.l.b16 %v5223
        %v5263 = vunpack.c.l.b16 %v5224
        %v5264 = vunpack.c.l.b16 %v5225
        %v5265 = vunpack.c.l.b16 %v5226
        %v5266 = vunpack.c.l.b16 %v5227
        %v5267 = vunpack.c.l.b16 %v5228
        %v5268 = vunpack.c.l.b16 %v5229
        %v5269 = vunpack.c.l.b16 %v5230
        %v5270 = vpack.c.b16 %v5255, %v5254
        %v5271 = vpack.c.b16 %v5257, %v5256
        %v5272 = vpack.c.b16 %v5259, %v5258
        %v5273 = vpack.c.b16 %v5261, %v5260
        %v5274 = vpack.c.b16 %v5263, %v5262
        %v5275 = vpack.c.b16 %v5265, %v5264
        %v5276 = vpack.c.b16 %v5267, %v5266
        %v5277 = vpack.c.b16 %v5269, %v5268
        %5286 = vmatprep.subr.bf16.mxu0 0
        %5287 = vmatpush1.bf16.msra.mxu0 %v5277
        %5288 = vmatprep.subr.bf16.mxu0 0
        %5289 = vmatpush1.bf16.msra.mxu0 %v5276
        %5290 = vmatprep.subr.bf16.mxu0 0
        %5291 = vmatpush1.bf16.msra.mxu0 %v5275
        %5292 = vmatprep.subr.bf16.mxu0 0
        %5293 = vmatpush1.bf16.msra.mxu0 %v5274
        %5294 = vmatprep.subr.bf16.mxu0 0
        %5295 = vmatpush1.bf16.msra.mxu0 %v5273
        %5296 = vmatprep.subr.bf16.mxu0 0
        %5297 = vmatpush1.bf16.msra.mxu0 %v5272
        %5298 = vmatprep.subr.bf16.mxu0 0
        %5299 = vmatpush1.bf16.msra.mxu0 %v5271
        %5300 = vmatprep.subr.bf16.mxu0 0
        %5301 = vmatpush1.bf16.msra.mxu0 %v5270
        %5302 = vmatprep.subr.bf16.mxu0 0
        %5303 = vmatpush2.bf16.msra.mxu0 0
        %5304 = vmatprep.subr.bf16.mxu0 0
        %5305 = vmatpush2.bf16.msra.mxu0 0
        %5306 = vmatprep.subr.bf16.mxu0 0
        %5307 = vmatpush2.bf16.msra.mxu0 0
        %5308 = vmatprep.subr.bf16.mxu0 0
        %5309 = vmatpush2.bf16.msra.mxu0 0
        %5310 = vmatprep.subr.bf16.mxu0 0
        %5311 = vmatpush2.bf16.msra.mxu0 0
        %5312 = vmatprep.subr.bf16.mxu0 0
        %5313 = vmatpush2.bf16.msra.mxu0 0
        %5314 = vmatprep.subr.bf16.mxu0 0
        %5315 = vmatpush2.bf16.msra.mxu0 0
        %5316 = vmatprep.subr.bf16.mxu0 0
        %5317 = vmatpush2.bf16.msra.mxu0 0
        %5318 = vmatprep.mubr.bf16.mxu0 0
        %5319 = vmatmul.mubr.bf16.gmra.mxu0 %v5214
        %v5320 = vpop.f32.mrf.mxu0
        %v5321 = vadd.f32 %v5236, %v5320
        %v5322 = vpop.f32.mrf.mxu0
        %v5323 = vpop.f32.mrf.mxu0
        %v5324 = vadd.f32 %v5236, %v5323
        %v5325 = vpop.f32.mrf.mxu0
        %5326 = vdwg.mxu0
        %v5327 = vpack.c.bf16 %v4922, %v4918
        %v5328 = vpack.c.bf16 %v4924, %v4920
        %v5329 = vpack.c.bf16 %v5008, %v5004
        %v5330 = vpack.c.bf16 %v5010, %v5006
        %v5331 = vpack.c.bf16 %v5094, %v5090
        %v5332 = vpack.c.bf16 %v5096, %v5092
        %v5339 = vunpack.c.l.b16 %v5327
        %v5340 = vunpack.c.l.b16 %v5328
        %v5341 = vunpack.c.l.b16 %v5329
        %v5342 = vunpack.c.l.b16 %v5330
        %v5343 = vunpack.c.l.b16 %v5331
        %v5344 = vunpack.c.l.b16 %v5332
        %v5345 = vunpack.c.h.b16 %v5327
        %v5346 = vunpack.c.h.b16 %v5328
        %v5347 = vunpack.c.h.b16 %v5329
        %v5348 = vunpack.c.h.b16 %v5330
        %v5349 = vunpack.c.h.b16 %v5331
        %v5350 = vunpack.c.h.b16 %v5332
        %v5351 = vpack.c.b16 %v5340, %v5339
        %v5352 = vpack.c.b16 %v5342, %v5341
        %v5353 = vpack.c.b16 %v5344, %v5343
        %v5354 = vpack.c.b16 %v5346, %v5345
        %v5355 = vpack.c.b16 %v5348, %v5347
        %v5356 = vpack.c.b16 %v5350, %v5349
        %5363 = vst [vmem:[%s746] sm:$0xff] %v5351
        %5364 = vst [vmem:[%s746 + $0x8] sm:$0xff] %v5352
        %5365 = vst [vmem:[%s746 + $0x10] sm:$0xff] %v5353
        %5366 = vst [vmem:[%s746 + $0x18] sm:$0xff] %v5354
        %5367 = vst [vmem:[%s746 + $0x20] sm:$0xff] %v5355
        %5368 = vst [vmem:[%s746 + $0x28] sm:$0xff] %v5356
        %v5369 = vadd.f32 %v2940, %v5321
        %v5370 = vadd.f32 %v2943, %v5324
        %v5371 = vpack.c.bf16 %v5370, %v5369
        %v5373 = vunpack.c.l.b16 %v5371
        %v5374 = vunpack.c.h.b16 %v5371
        %v5375 = vpack.c.b16 %v5373, %v5373
        %v5376 = vpack.c.b16 %v5374, %v5374
        %5379 = vst [vmem:[%s753] sm:$0xf] %v5375
        %5380 = vst [vmem:[%s753 + $0x4] sm:$0xf] %v5376
        %s5381 = sand.u32 %s414, 1
        %s5382 = scalar_lea.sflag [#allocation4], %s5381
        %s5383 = sand.u32 %s414, 1
        %s5384 = smul.addr %s5383, 48
        %s5385 = scalar_lea.vmem [#allocation20], %s5384
        %s5386 = sand.u32 %s440, 1
        %s5387 = scalar_lea.sflag [#allocation22], %s5386
        %s5388 = sand.u32 %s440, 1
        %s5389 = smul.addr %s5388, 8
        %s5390 = scalar_lea.vmem [#allocation21], %s5389
        // Predicated region
        $region133: #{tpu_custom_call.1} parent=87 // pred_check
          %p5391 = pneg %p424
        $region134: #{tpu_custom_call.1} parent=87 // pred_check_branch
          %5393 = sbr.rel (%p5391) target = $region136
        $region135: #{tpu_custom_call.1} parent=87 // pred_region
          %s5394 = smul.u32 2, %s44
          %s5395 = ssub.s32 3, %s5394
          %p5396 = scmp.lt.s32.totalorder %s5395, 2
          %s5397 = scalar_select %p5396, %s5395, 2
          %s5398 = smul.u32 64, %s5397
          %s5399 = smul.u32 %s5398, 6
          %s5401 = ssub.s32 768, %s5399
          %5402 = vsyncadd %s5382, %s5401
          %p5403 = scmp.ne.s32.totalorder 0, %s5399
          %s5404 = smul.addr %s5394, 6
          %s5405 = smul.addr %s5404, 64
          %s5406 = scalar_lea.hbm %s17, %s5405
          %s5407 = smul.u32 24, %s5397
          %s5408 = sshll.u32 %s5385, 4
          %s5409 = int_to_ptr.vmem [resolvable:$true] %s5408
          %s5410 = sshll.u32 %s5407, 4
          %5414 = dma.vmem_to_hbm [thread:$0]  (%p5403), %s5409, %s5410, %s5406, %s5382, 384, 384, 24
        $region136: #{tpu_custom_call.1} parent=87 // pred_fallthru
          _
        // Predicated region
        $region137: #{tpu_custom_call.1} parent=87 // pred_check
          %p5415 = pneg %p450
        $region138: #{tpu_custom_call.1} parent=87 // pred_check_branch
          %5417 = sbr.rel (%p5415) target = $region140
        $region139: #{tpu_custom_call.1} parent=87 // pred_region
          %s5418 = smul.u32 2, %s44
          %s5419 = ssub.s32 3, %s5418
          %p5420 = scmp.lt.s32.totalorder %s5419, 2
          %s5421 = scalar_select %p5420, %s5419, 2
          %s5422 = smul.u32 64, %s5421
          %s5424 = ssub.s32 128, %s5422
          %5425 = vsyncadd %s5387, %s5424
          %p5426 = scmp.ne.s32.totalorder 0, %s5422
          %s5427 = smul.addr %s5418, 64
          %s5428 = scalar_lea.hbm %s18, %s5427
          %s5429 = smul.u32 4, %s5421
          %s5430 = sshll.u32 %s5390, 4
          %s5431 = int_to_ptr.vmem [resolvable:$true] %s5430
          %s5432 = sshll.u32 %s5429, 4
          %5436 = dma.vmem_to_hbm [thread:$0]  (%p5426), %s5431, %s5432, %s5428, %s5387, 64, 64, 4
        $region140: #{tpu_custom_call.1} parent=87 // pred_fallthru
          _
      $region88: #{tpu_custom_call.1} parent=5 // pred_fallthru
        _
      %p5437 = scmp.le.s32.totalorder 2, %s39
      // Predicated region
      $region141: #{tpu_custom_call.1} parent=5 // pred_check
        %p5438 = pneg %p5437
      $region142: #{tpu_custom_call.1} parent=5 // pred_check_branch
        %5440 = sbr.rel (%p5438) target = $region144
      $region143: #{tpu_custom_call.1} parent=5 // pred_region
        %s5441 = ssub.s32 %s39, 2
        // Predicated region
        $region145: #{tpu_custom_call.1} parent=143 // pred_check
          %p5442 = pneg %p430
        $region146: #{tpu_custom_call.1} parent=143 // pred_check_branch
          %5444 = sbr.rel (%p5442) target = $region148
        $region147: #{tpu_custom_call.1} parent=143 // pred_region
          %s5445 = sand.u32 %s415, 1
          %s5446 = scalar_lea.sflag [#allocation4], %s5445
          %s5447 = sand.u32 %s415, 1
          %s5448 = smul.addr %s5447, 48
          %s5449 = scalar_lea.vmem [#allocation20], %s5448
          %5450 = dma.done %s5446, 768
        $region148: #{tpu_custom_call.1} parent=143 // pred_fallthru
          _
        // Predicated region
        $region149: #{tpu_custom_call.1} parent=143 // pred_check
          %p5451 = pneg %p456
        $region150: #{tpu_custom_call.1} parent=143 // pred_check_branch
          %5453 = sbr.rel (%p5451) target = $region152
        $region151: #{tpu_custom_call.1} parent=143 // pred_region
          %s5454 = sand.u32 %s441, 1
          %s5455 = scalar_lea.sflag [#allocation22], %s5454
          %s5456 = sand.u32 %s441, 1
          %s5457 = smul.addr %s5456, 8
          %s5458 = scalar_lea.vmem [#allocation21], %s5457
          %5459 = dma.done %s5455, 128
        $region152: #{tpu_custom_call.1} parent=143 // pred_fallthru
          _
      $region144: #{tpu_custom_call.1} parent=5 // pred_fallthru
        _
    $region6: #{tpu_custom_call.1} parent=1 // loop_footer
      %s43 = sadd.s32 1, %s39
    $region7: #{tpu_custom_call.1} parent=1 // loop_footer_branch
      %38 = sbr.rel target = $region3
    $region8: #{tpu_custom_call.1} parent=1 // loop_exit
      _
    %5460 = vsyncpa [#allocation3], 1
    %s5461 = scalar_lea.sflag [#allocation3], 1
    %5462 = vsyncpa %s5461, 1
    %5463 = vsyncpa [#allocation6], 1
    %5464 = vsyncpa [#allocation9], 1
    %5465 = vsyncpa [#allocation12], 1
    %5466 = vsyncpa [#allocation15], 1
    %5467 = vsyncpa [#allocation18], 1
    %5468 = vsyncpa [#allocation4], 1
    %s5469 = scalar_lea.sflag [#allocation4], 1
    %5470 = vsyncpa %s5469, 1
    %5471 = vsyncpa [#allocation22], 1
    %s5472 = scalar_lea.sflag [#allocation22], 1
    %5473 = vsyncpa %s5472, 1

</llo_original>
